<compile_context>
chip_gen: v6e
topology: v6e:2x2x1
jax: 0.10.0
libtpu: 0.0.40
codegen_flags: <defaults>
</compile_context>

<pallas_src>
import functools
import math

import jax
import jax.numpy as jnp
from jax.experimental import pallas as pl
from jax.experimental.pallas import tpu as pltpu


CONFIG = dict(
    vocab_size=128,
    hidden=64,
    num_layers=2,
    num_heads=2,
    intermediate=256,
    max_pos=32,
    type_vocab=2,
    num_labels=6,
)

LANE = 128       # classifier output padded to a full 128-lane (unmasked) store
HEAD_PAD = 128   # per-head Q/K/V width padded to one full lane tile
TYPE_PAD = 8     # token-type embedding table padded to one full sublane tile


def _ln(x, g, b, eps):
    """LayerNorm over the last axis (f32)."""
    mu = jnp.mean(x, axis=-1, keepdims=True)
    xc = x - mu
    var = jnp.mean(xc * xc, axis=-1, keepdims=True)
    return xc * jax.lax.rsqrt(var + eps) * g + b


def _bert_fused_kernel(ids_ref, tt_ref, mask_ref,
                       wemb_ref, temb_ref, pemb_ref, embg_ref, embb_ref,
                       wqkv_ref, bqkv_ref, wo_ref, bo_ref,
                       ln1g_ref, ln1b_ref, w1_ref, b1_ref, w2_ref, b2_ref,
                       ln2g_ref, ln2b_ref,
                       pw_ref, pb_ref, cw_ref, cb_ref,
                       out_ref,
                       *, batch, seq, num_heads, num_layers, eps):
    B, S, NH, L = batch, seq, num_heads, num_layers
    M = B * S
    DP = HEAD_PAD
    f32, bf16 = jnp.float32, jnp.bfloat16

    # ---- embeddings: one-hot MXU gathers (no dynamic indexing needed) ------
    ids = ids_ref[...]                                   # (M, 1) int32
    tts = tt_ref[...]                                    # (M, 1) int32
    V = wemb_ref.shape[0]
    TV = temb_ref.shape[0]
    word_oh = jnp.where(
        ids == jax.lax.broadcasted_iota(jnp.int32, (M, V), 1), 1.0, 0.0
    ).astype(bf16)
    type_oh = jnp.where(
        tts == jax.lax.broadcasted_iota(jnp.int32, (M, TV), 1), 1.0, 0.0
    ).astype(bf16)
    word = jnp.dot(word_oh, wemb_ref[...], preferred_element_type=f32)
    typ = jnp.dot(type_oh, temb_ref[...], preferred_element_type=f32)
    pos_slab = pemb_ref[0:S, :]                          # (S, H) f32
    pos = jnp.concatenate([pos_slab] * B, axis=0)        # (M, H)
    x = _ln(word + typ + pos, embg_ref[...], embb_ref[...], eps)
    # embedding dropout(0.1): identity at inference

    # additive mask (M, M): 0 for valid, -10000 for padded keys / cross-batch
    mask = mask_ref[...]

    # ---- encoder layers (static unroll over stacked layer axis) ------------
    for l in range(L):
        xb = x.astype(bf16)
        # fused, per-head lane-padded QKV projection (1/sqrt(Dh) pre-folded)
        qkv = jnp.dot(xb, wqkv_ref[l], preferred_element_type=f32) + bqkv_ref[l]
        attn = jnp.zeros_like(x)
        for h in range(NH):
            base = 3 * h * DP
            qh = qkv[:, base:base + DP].astype(bf16)          # 128-lane aligned
            kh = qkv[:, base + DP:base + 2 * DP].astype(bf16)
            vh = qkv[:, base + 2 * DP:base + 3 * DP].astype(bf16)
            s = jax.lax.dot_general(qh, kh, (((1,), (1,)), ((), ())),
                                    preferred_element_type=f32)   # (M, M)
            s = s + mask
            s = s - jnp.max(s, axis=-1, keepdims=True)
            p = jnp.exp(s)
            p = p / jnp.sum(p, axis=-1, keepdims=True)
            ctx = jnp.dot(p.astype(bf16), vh, preferred_element_type=f32)
            # head merge on the MXU accumulator (no lane concat)
            attn = attn + jnp.dot(ctx.astype(bf16), wo_ref[l * NH + h],
                                  preferred_element_type=f32)
        attn = attn + bo_ref[l]
        # attention-output dropout(0.1): identity at inference
        h1 = _ln(attn + x, ln1g_ref[l], ln1b_ref[l], eps)

        # ---- FFN: dense -> GELU -> dense --------------------------------
        ff = jnp.dot(h1.astype(bf16), w1_ref[l],
                     preferred_element_type=f32) + b1_ref[l]
        # TODO(synk): HF BERT uses erf-based GELU; tanh approximation (~1e-3).
        c = 0.7978845608028654
        ff = 0.5 * ff * (1.0 + jnp.tanh(c * (ff + 0.044715 * ff * ff * ff)))
        ff = jnp.dot(ff.astype(bf16), w2_ref[l],
                     preferred_element_type=f32) + b2_ref[l]
        # FFN-output dropout(0.1): identity at inference
        x = _ln(ff + h1, ln2g_ref[l], ln2b_ref[l], eps)

    # ---- pooler (CLS token) + classifier + sigmoid, fused -------------------
    cls = jnp.concatenate([x[b * S:b * S + 1, :] for b in range(B)], axis=0)
    pooled = jnp.tanh(jnp.dot(cls.astype(bf16), pw_ref[...],
                              preferred_element_type=f32) + pb_ref[...])
    # classifier dropout(0.1): identity at inference
    logits = jnp.dot(pooled.astype(bf16), cw_ref[...],
                     preferred_element_type=f32) + cb_ref[...]
    # numerically stable sigmoid
    probs = jnp.where(logits >= 0.0,
                      1.0 / (1.0 + jnp.exp(-logits)),
                      jnp.exp(logits) / (1.0 + jnp.exp(logits)))
    out_ref[...] = probs.astype(out_ref.dtype)


# ----------------------------------------------------------------------------
# Parameter setup
# ----------------------------------------------------------------------------

def init_params(key, cfg):
    # TODO(synk): random init stands in for BertModel.from_pretrained (no I/O).
    H, I, NH = cfg["hidden"], cfg["intermediate"], cfg["num_heads"]
    L = cfg["num_layers"]
    Dh = H // NH
    NL = cfg["num_labels"]
    scale = 1.0 / math.sqrt(Dh)

    def nrm(k, shape, s=0.02):
        return s * jax.random.normal(k, shape, dtype=jnp.float32)

    keys = iter(jax.random.split(key, 16 + 8 * L))

    cls_w = jnp.zeros((H, LANE), jnp.float32)
    cls_w = cls_w.at[:, :NL].set(nrm(next(keys), (H, NL)))

    type_emb = jnp.zeros((TYPE_PAD, H), jnp.float32)
    type_emb = type_emb.at[:cfg["type_vocab"], :].set(
        nrm(next(keys), (cfg["type_vocab"], H)))

    params = dict(
        word_emb=nrm(next(keys), (cfg["vocab_size"], H)).astype(jnp.bfloat16),
        type_emb=type_emb.astype(jnp.bfloat16),
        pos_emb=nrm(next(keys), (cfg["max_pos"], H)),
        emb_ln_g=jnp.ones((1, H), jnp.float32),
        emb_ln_b=jnp.zeros((1, H), jnp.float32),
        pool_w=nrm(next(keys), (H, H)).astype(jnp.bfloat16),
        pool_b=jnp.zeros((1, H), jnp.float32),
        cls_w=cls_w.astype(jnp.bfloat16),
        cls_b=jnp.zeros((1, LANE), jnp.float32),
    )

    QKVW = 3 * NH * HEAD_PAD
    wqkv_l, bqkv_l, wo_l, bo_l = [], [], [], []
    ln1g_l, ln1b_l, w1_l, b1_l = [], [], [], []
    w2_l, b2_l, ln2g_l, ln2b_l = [], [], [], []
    for _ in range(L):
        wq, wk, wv, wo = (nrm(next(keys), (H, H)) for _ in range(4))
        # per-head lane-tile (128) padded QKV weights; 1/sqrt(Dh) folded into Q
        wqkv = jnp.zeros((H, QKVW), jnp.float32)
        wo_pad = jnp.zeros((NH, HEAD_PAD, H), jnp.float32)
        for h in range(NH):
            base = 3 * h * HEAD_PAD
            hs = slice(h * Dh, (h + 1) * Dh)
            wqkv = wqkv.at[:, base:base + Dh].set(wq[:, hs] * scale)
            wqkv = wqkv.at[:, base + HEAD_PAD:base + HEAD_PAD + Dh].set(wk[:, hs])
            wqkv = wqkv.at[:, base + 2 * HEAD_PAD:
                           base + 2 * HEAD_PAD + Dh].set(wv[:, hs])
            wo_pad = wo_pad.at[h, :Dh, :].set(wo[hs, :])
        wqkv_l.append(wqkv)
        bqkv_l.append(jnp.zeros((1, QKVW), jnp.float32))
        wo_l.append(wo_pad)
        bo_l.append(jnp.zeros((1, H), jnp.float32))
        ln1g_l.append(jnp.ones((1, H), jnp.float32))
        ln1b_l.append(jnp.zeros((1, H), jnp.float32))
        w1_l.append(nrm(next(keys), (H, I)))
        b1_l.append(jnp.zeros((1, I), jnp.float32))
        w2_l.append(nrm(next(keys), (I, H)))
        b2_l.append(jnp.zeros((1, H), jnp.float32))
        ln2g_l.append(jnp.ones((1, H), jnp.float32))
        ln2b_l.append(jnp.zeros((1, H), jnp.float32))

    params.update(
        wqkv=jnp.stack(wqkv_l).astype(jnp.bfloat16),         # (L, H, QKVW)
        bqkv=jnp.stack(bqkv_l),                               # (L, 1, QKVW)
        wo=jnp.concatenate(wo_l, axis=0).astype(jnp.bfloat16),  # (L*NH, 128, H)
        bo=jnp.stack(bo_l),
        ln1_g=jnp.stack(ln1g_l), ln1_b=jnp.stack(ln1b_l),
        w1=jnp.stack(w1_l).astype(jnp.bfloat16), b1=jnp.stack(b1_l),
        w2=jnp.stack(w2_l).astype(jnp.bfloat16), b2=jnp.stack(b2_l),
        ln2_g=jnp.stack(ln2g_l), ln2_b=jnp.stack(ln2b_l),
    )
    return params


# ----------------------------------------------------------------------------
# Forward (single fused pallas_call)
# ----------------------------------------------------------------------------

def bert_multilabel_forward(params, input_ids, attention_mask,
                            token_type_ids=None, cfg=CONFIG):
    B, S = input_ids.shape
    H, I = cfg["hidden"], cfg["intermediate"]
    NH, L = cfg["num_heads"], cfg["num_layers"]
    V, MP = cfg["vocab_size"], cfg["max_pos"]
    M = B * S
    QKVW = 3 * NH * HEAD_PAD

    if token_type_ids is None:
        token_type_ids = jnp.zeros_like(input_ids)

    ids = input_ids.reshape(M, 1).astype(jnp.int32)
    tts = token_type_ids.reshape(M, 1).astype(jnp.int32)

    # additive attention mask over the flattened batch: padded keys and
    # cross-batch (query,key) pairs get -10000, valid pairs get 0.
    key_valid = attention_mask.astype(jnp.float32).reshape(1, M)
    batch_id = jnp.repeat(jnp.arange(B, dtype=jnp.int32), S)
    same = (batch_id[:, None] == batch_id[None, :]).astype(jnp.float32)
    mask_add = (1.0 - same * key_valid) * -10000.0        # (M, M)

    kernel = functools.partial(_bert_fused_kernel, batch=B, seq=S,
                               num_heads=NH, num_layers=L, eps=1e-12)

    def spec(shape):
        return pl.BlockSpec(shape, lambda i: (0,) * len(shape))

    probs_padded = pl.pallas_call(
        kernel,
        out_shape=jax.ShapeDtypeStruct((B, LANE), jnp.float32),
        grid=(1,),
        in_specs=[
            spec((M, 1)),                  # input ids
            spec((M, 1)),                  # token type ids
            spec((M, M)),                  # additive attention mask
            spec((V, H)),                  # word embedding table (bf16)
            spec((TYPE_PAD, H)),           # type embedding table (bf16)
            spec((MP, H)),                 # position embedding table (f32)
            spec((1, H)), spec((1, H)),    # embedding LN gamma/beta
            spec((L, H, QKVW)),            # wqkv (per-head lane-padded, bf16)
            spec((L, 1, QKVW)),            # bqkv
            spec((L * NH, HEAD_PAD, H)),   # wo (per-head row-padded, bf16)
            spec((L, 1, H)),               # bo
            spec((L, 1, H)), spec((L, 1, H)),   # ln1 gamma/beta
            spec((L, H, I)),               # w1 (bf16)
            spec((L, 1, I)),               # b1
            spec((L, I, H)),               # w2 (bf16)
            spec((L, 1, H)),               # b2
            spec((L, 1, H)), spec((L, 1, H)),   # ln2 gamma/beta
            spec((H, H)),                  # pooler weight (bf16)
            spec((1, H)),                  # pooler bias
            spec((H, LANE)),               # classifier weight (lane-padded)
            spec((1, LANE)),               # classifier bias
        ],
        out_specs=spec((B, LANE)),
        compiler_params=pltpu.CompilerParams(
            dimension_semantics=("arbitrary",)),
    )(ids, tts, mask_add,
      params["word_emb"], params["type_emb"], params["pos_emb"],
      params["emb_ln_g"], params["emb_ln_b"],
      params["wqkv"], params["bqkv"], params["wo"], params["bo"],
      params["ln1_g"], params["ln1_b"], params["w1"], params["b1"],
      params["w2"], params["b2"], params["ln2_g"], params["ln2_b"],
      params["pool_w"], params["pool_b"], params["cls_w"], params["cls_b"])

    probs = probs_padded[:, :cfg["num_labels"]]
    # TODO(synk): labels/BCELoss branch not implemented (labels=None path only).
    return {"logits": probs}


# ----------------------------------------------------------------------------
# Main
# ----------------------------------------------------------------------------

if __name__ == "__main__":
    key = jax.random.PRNGKey(0)
    pkey, ikey = jax.random.split(key)

    params = init_params(pkey, CONFIG)

    B, S = 2, 16
    input_ids = jax.random.randint(ikey, (B, S), 0, CONFIG["vocab_size"],
                                   dtype=jnp.int32)
    attention_mask = jnp.ones((B, S), jnp.int32)
    # mask out the last 4 tokens of the second sequence (padding)
    attention_mask = attention_mask.at[1, -4:].set(0)
    token_type_ids = jnp.zeros((B, S), jnp.int32)

    out = bert_multilabel_forward(params, input_ids, attention_mask,
                                  token_type_ids)
    logits = jax.block_until_ready(out["logits"])

    assert logits.shape == (B, CONFIG["num_labels"])
    assert bool(jnp.all(jnp.isfinite(logits)))
    assert bool(jnp.all((logits >= 0.0) & (logits <= 1.0)))  # sigmoid output
    print("KERNEL_OK")
</pallas_src>

<mosaic_0001>
module attributes {stable_mosaic.version = 11 : i64} {
  func.func @_bert_fused_kernel(%arg0: i32, %arg1: memref<32x1xi32, #tpu.memory_space<vmem>>, %arg2: memref<32x1xi32, #tpu.memory_space<vmem>>, %arg3: memref<32x32xf32, #tpu.memory_space<vmem>>, %arg4: memref<128x64xbf16, #tpu.memory_space<vmem>>, %arg5: memref<8x64xbf16, #tpu.memory_space<vmem>>, %arg6: memref<32x64xf32, #tpu.memory_space<vmem>>, %arg7: memref<1x64xf32, #tpu.memory_space<vmem>>, %arg8: memref<1x64xf32, #tpu.memory_space<vmem>>, %arg9: memref<2x64x768xbf16, #tpu.memory_space<vmem>>, %arg10: memref<2x1x768xf32, #tpu.memory_space<vmem>>, %arg11: memref<4x128x64xbf16, #tpu.memory_space<vmem>>, %arg12: memref<2x1x64xf32, #tpu.memory_space<vmem>>, %arg13: memref<2x1x64xf32, #tpu.memory_space<vmem>>, %arg14: memref<2x1x64xf32, #tpu.memory_space<vmem>>, %arg15: memref<2x64x256xbf16, #tpu.memory_space<vmem>>, %arg16: memref<2x1x256xf32, #tpu.memory_space<vmem>>, %arg17: memref<2x256x64xbf16, #tpu.memory_space<vmem>>, %arg18: memref<2x1x64xf32, #tpu.memory_space<vmem>>, %arg19: memref<2x1x64xf32, #tpu.memory_space<vmem>>, %arg20: memref<2x1x64xf32, #tpu.memory_space<vmem>>, %arg21: memref<64x64xbf16, #tpu.memory_space<vmem>>, %arg22: memref<1x64xf32, #tpu.memory_space<vmem>>, %arg23: memref<64x128xbf16, #tpu.memory_space<vmem>>, %arg24: memref<1x128xf32, #tpu.memory_space<vmem>>, %arg25: memref<2x128xf32, #tpu.memory_space<vmem>>) attributes {dimension_semantics = [#tpu.dimension_semantics<arbitrary>], iteration_bounds = array<i64: 1>, scalar_prefetch = 0 : i64, scratch_operands = 0 : i64, tpu.core_type = #tpu.core_type<tc>, window_params = [{pipeline_mode = #tpu.pipeline_mode<synchronous>, transform_indices = @transform_0, window_bounds = array<i64: 32, 1>}, {pipeline_mode = #tpu.pipeline_mode<synchronous>, transform_indices = @transform_1, window_bounds = array<i64: 32, 1>}, {pipeline_mode = #tpu.pipeline_mode<synchronous>, transform_indices = @transform_2, window_bounds = array<i64: 32, 32>}, {pipeline_mode = #tpu.pipeline_mode<synchronous>, transform_indices = @transform_3, window_bounds = array<i64: 128, 64>}, {pipeline_mode = #tpu.pipeline_mode<synchronous>, transform_indices = @transform_4, window_bounds = array<i64: 8, 64>}, {pipeline_mode = #tpu.pipeline_mode<synchronous>, transform_indices = @transform_5, window_bounds = array<i64: 32, 64>}, {pipeline_mode = #tpu.pipeline_mode<synchronous>, transform_indices = @transform_6, window_bounds = array<i64: 1, 64>}, {pipeline_mode = #tpu.pipeline_mode<synchronous>, transform_indices = @transform_7, window_bounds = array<i64: 1, 64>}, {pipeline_mode = #tpu.pipeline_mode<synchronous>, transform_indices = @transform_8, window_bounds = array<i64: 2, 64, 768>}, {pipeline_mode = #tpu.pipeline_mode<synchronous>, transform_indices = @transform_9, window_bounds = array<i64: 2, 1, 768>}, {pipeline_mode = #tpu.pipeline_mode<synchronous>, transform_indices = @transform_10, window_bounds = array<i64: 4, 128, 64>}, {pipeline_mode = #tpu.pipeline_mode<synchronous>, transform_indices = @transform_11, window_bounds = array<i64: 2, 1, 64>}, {pipeline_mode = #tpu.pipeline_mode<synchronous>, transform_indices = @transform_12, window_bounds = array<i64: 2, 1, 64>}, {pipeline_mode = #tpu.pipeline_mode<synchronous>, transform_indices = @transform_13, window_bounds = array<i64: 2, 1, 64>}, {pipeline_mode = #tpu.pipeline_mode<synchronous>, transform_indices = @transform_14, window_bounds = array<i64: 2, 64, 256>}, {pipeline_mode = #tpu.pipeline_mode<synchronous>, transform_indices = @transform_15, window_bounds = array<i64: 2, 1, 256>}, {pipeline_mode = #tpu.pipeline_mode<synchronous>, transform_indices = @transform_16, window_bounds = array<i64: 2, 256, 64>}, {pipeline_mode = #tpu.pipeline_mode<synchronous>, transform_indices = @transform_17, window_bounds = array<i64: 2, 1, 64>}, {pipeline_mode = #tpu.pipeline_mode<synchronous>, transform_indices = @transform_18, window_bounds = array<i64: 2, 1, 64>}, {pipeline_mode = #tpu.pipeline_mode<synchronous>, transform_indices = @transform_19, window_bounds = array<i64: 2, 1, 64>}, {pipeline_mode = #tpu.pipeline_mode<synchronous>, transform_indices = @transform_20, window_bounds = array<i64: 64, 64>}, {pipeline_mode = #tpu.pipeline_mode<synchronous>, transform_indices = @transform_21, window_bounds = array<i64: 1, 64>}, {pipeline_mode = #tpu.pipeline_mode<synchronous>, transform_indices = @transform_22, window_bounds = array<i64: 64, 128>}, {pipeline_mode = #tpu.pipeline_mode<synchronous>, transform_indices = @transform_23, window_bounds = array<i64: 1, 128>}, {pipeline_mode = #tpu.pipeline_mode<synchronous>, transform_indices = @transform_24, window_bounds = array<i64: 2, 128>}]} {
    %c0 = arith.constant 0 : index
    %c0_0 = arith.constant 0 : index
    %0 = vector.load %arg1[%c0, %c0_0] : memref<32x1xi32, #tpu.memory_space<vmem>>, vector<32x1xi32>
    %c0_1 = arith.constant 0 : index
    %c0_2 = arith.constant 0 : index
    %1 = vector.load %arg2[%c0_1, %c0_2] : memref<32x1xi32, #tpu.memory_space<vmem>>, vector<32x1xi32>
    %2 = tpu.iota {dimensions = array<i32: 1>} : vector<32x128xi32>
    %3 = vector.broadcast %0 : vector<32x1xi32> to vector<32x128xi32>
    %4 = arith.cmpi eq, %3, %2 : vector<32x128xi32>
    %cst = arith.constant 1.000000e+00 : f32
    %cst_3 = arith.constant 0.000000e+00 : f32
    %5 = vector.broadcast %cst : f32 to vector<32x128xf32>
    %6 = vector.broadcast %cst_3 : f32 to vector<32x128xf32>
    %7 = arith.select %4, %5, %6 : vector<32x128xi1>, vector<32x128xf32>
    %8 = arith.truncf %7 : vector<32x128xf32> to vector<32x128xbf16>
    %9 = tpu.iota {dimensions = array<i32: 1>} : vector<32x8xi32>
    %10 = vector.broadcast %1 : vector<32x1xi32> to vector<32x8xi32>
    %11 = arith.cmpi eq, %10, %9 : vector<32x8xi32>
    %cst_4 = arith.constant 1.000000e+00 : f32
    %cst_5 = arith.constant 0.000000e+00 : f32
    %12 = vector.broadcast %cst_4 : f32 to vector<32x8xf32>
    %13 = vector.broadcast %cst_5 : f32 to vector<32x8xf32>
    %14 = arith.select %11, %12, %13 : vector<32x8xi1>, vector<32x8xf32>
    %15 = arith.truncf %14 : vector<32x8xf32> to vector<32x8xbf16>
    %c0_6 = arith.constant 0 : index
    %c0_7 = arith.constant 0 : index
    %16 = vector.load %arg4[%c0_6, %c0_7] : memref<128x64xbf16, #tpu.memory_space<vmem>>, vector<128x64xbf16>
    %cst_8 = arith.constant dense<0.000000e+00> : vector<32x64xf32>
    %17 = tpu.matmul %8, %16, %cst_8 {dimension_numbers = #tpu.dot_dimension_numbers<[1], [0], [0], [1], [0, 0, 1, 1], [], []>} : vector<32x128xbf16>, vector<128x64xbf16>, vector<32x64xf32> -> vector<32x64xf32>
    %c0_9 = arith.constant 0 : index
    %c0_10 = arith.constant 0 : index
    %18 = vector.load %arg5[%c0_9, %c0_10] : memref<8x64xbf16, #tpu.memory_space<vmem>>, vector<8x64xbf16>
    %cst_11 = arith.constant dense<0.000000e+00> : vector<32x64xf32>
    %19 = tpu.matmul %15, %18, %cst_11 {dimension_numbers = #tpu.dot_dimension_numbers<[1], [0], [0], [1], [0, 0, 1, 1], [], []>} : vector<32x8xbf16>, vector<8x64xbf16>, vector<32x64xf32> -> vector<32x64xf32>
    %c0_12 = arith.constant 0 : index
    %c0_13 = arith.constant 0 : index
    %20 = vector.load %arg6[%c0_12, %c0_13] : memref<32x64xf32, #tpu.memory_space<vmem>>, vector<16x64xf32>
    %21 = tpu.concatenate %20, %20 in 0 : vector<16x64xf32>, vector<16x64xf32> -> vector<32x64xf32>
    %22 = arith.addf %17, %19 : vector<32x64xf32>
    %23 = arith.addf %22, %21 : vector<32x64xf32>
    %c0_14 = arith.constant 0 : index
    %c0_15 = arith.constant 0 : index
    %24 = vector.load %arg7[%c0_14, %c0_15] : memref<1x64xf32, #tpu.memory_space<vmem>>, vector<1x64xf32>
    %c0_16 = arith.constant 0 : index
    %c0_17 = arith.constant 0 : index
    %25 = vector.load %arg8[%c0_16, %c0_17] : memref<1x64xf32, #tpu.memory_space<vmem>>, vector<1x64xf32>
    %cst_18 = arith.constant dense<0.000000e+00> : vector<32xf32>
    %26 = vector.multi_reduction <add>, %23, %cst_18 [1] : vector<32x64xf32> to vector<32xf32>
    %27 = vector.shape_cast %26 : vector<32xf32> to vector<32x1xf32>
    %cst_19 = arith.constant 6.400000e+01 : f32
    %28 = vector.broadcast %cst_19 : f32 to vector<32x1xf32>
    %29 = arith.divf %27, %28 : vector<32x1xf32>
    %30 = vector.broadcast %29 : vector<32x1xf32> to vector<32x64xf32>
    %31 = arith.subf %23, %30 : vector<32x64xf32>
    %32 = arith.mulf %31, %31 : vector<32x64xf32>
    %cst_20 = arith.constant dense<0.000000e+00> : vector<32xf32>
    %33 = vector.multi_reduction <add>, %32, %cst_20 [1] : vector<32x64xf32> to vector<32xf32>
    %34 = vector.shape_cast %33 : vector<32xf32> to vector<32x1xf32>
    %cst_21 = arith.constant 6.400000e+01 : f32
    %35 = vector.broadcast %cst_21 : f32 to vector<32x1xf32>
    %36 = arith.divf %34, %35 : vector<32x1xf32>
    %cst_22 = arith.constant 9.99999996E-13 : f32
    %37 = vector.broadcast %cst_22 : f32 to vector<32x1xf32>
    %38 = arith.addf %36, %37 : vector<32x1xf32>
    %39 = math.rsqrt %38 : vector<32x1xf32>
    %40 = vector.broadcast %39 : vector<32x1xf32> to vector<32x64xf32>
    %41 = arith.mulf %31, %40 : vector<32x64xf32>
    %42 = vector.broadcast %24 : vector<1x64xf32> to vector<32x64xf32>
    %43 = arith.mulf %41, %42 : vector<32x64xf32>
    %44 = vector.broadcast %25 : vector<1x64xf32> to vector<32x64xf32>
    %45 = arith.addf %43, %44 : vector<32x64xf32>
    %c0_23 = arith.constant 0 : index
    %c0_24 = arith.constant 0 : index
    %46 = vector.load %arg3[%c0_23, %c0_24] : memref<32x32xf32, #tpu.memory_space<vmem>>, vector<32x32xf32>
    %47 = arith.truncf %45 : vector<32x64xf32> to vector<32x64xbf16>
    %c0_25 = arith.constant 0 : index
    %c0_26 = arith.constant 0 : index
    %c0_27 = arith.constant 0 : index
    %48 = vector.load %arg9[%c0_25, %c0_26, %c0_27] : memref<2x64x768xbf16, #tpu.memory_space<vmem>>, vector<1x64x768xbf16>
    %49 = vector.shape_cast %48 : vector<1x64x768xbf16> to vector<64x768xbf16>
    %cst_28 = arith.constant dense<0.000000e+00> : vector<32x768xf32>
    %50 = tpu.matmul %47, %49, %cst_28 {dimension_numbers = #tpu.dot_dimension_numbers<[1], [0], [0], [1], [0, 0, 1, 1], [], []>} : vector<32x64xbf16>, vector<64x768xbf16>, vector<32x768xf32> -> vector<32x768xf32>
    %c0_29 = arith.constant 0 : index
    %c0_30 = arith.constant 0 : index
    %c0_31 = arith.constant 0 : index
    %51 = vector.load %arg10[%c0_29, %c0_30, %c0_31] : memref<2x1x768xf32, #tpu.memory_space<vmem>>, vector<1x1x768xf32>
    %52 = vector.shape_cast %51 : vector<1x1x768xf32> to vector<1x768xf32>
    %53 = vector.broadcast %52 : vector<1x768xf32> to vector<32x768xf32>
    %54 = arith.addf %50, %53 : vector<32x768xf32>
    %cst_32 = arith.constant 0.000000e+00 : f32
    %55 = vector.broadcast %cst_32 : f32 to vector<32x64xf32>
    %56 = vector.extract_strided_slice %54 {offsets = [0, 0], sizes = [32, 128], strides = [1, 1]} : vector<32x768xf32> to vector<32x128xf32>
    %57 = arith.truncf %56 : vector<32x128xf32> to vector<32x128xbf16>
    %58 = vector.extract_strided_slice %54 {offsets = [0, 128], sizes = [32, 128], strides = [1, 1]} : vector<32x768xf32> to vector<32x128xf32>
    %59 = arith.truncf %58 : vector<32x128xf32> to vector<32x128xbf16>
    %60 = vector.extract_strided_slice %54 {offsets = [0, 256], sizes = [32, 128], strides = [1, 1]} : vector<32x768xf32> to vector<32x128xf32>
    %61 = arith.truncf %60 : vector<32x128xf32> to vector<32x128xbf16>
    %cst_33 = arith.constant dense<0.000000e+00> : vector<32x32xf32>
    %62 = tpu.matmul %57, %59, %cst_33 {dimension_numbers = #tpu.dot_dimension_numbers<[1], [1], [0], [0], [0, 0, 1, 0], [], []>} : vector<32x128xbf16>, vector<32x128xbf16>, vector<32x32xf32> -> vector<32x32xf32>
    %63 = arith.addf %62, %46 : vector<32x32xf32>
    %cst_34 = arith.constant dense<0xFF800000> : vector<32xf32>
    %64 = vector.multi_reduction <maximumf>, %63, %cst_34 [1] : vector<32x32xf32> to vector<32xf32>
    %65 = vector.shape_cast %64 : vector<32xf32> to vector<32x1xf32>
    %66 = vector.broadcast %65 : vector<32x1xf32> to vector<32x32xf32>
    %67 = arith.subf %63, %66 : vector<32x32xf32>
    %68 = math.exp %67 : vector<32x32xf32>
    %cst_35 = arith.constant dense<0.000000e+00> : vector<32xf32>
    %69 = vector.multi_reduction <add>, %68, %cst_35 [1] : vector<32x32xf32> to vector<32xf32>
    %70 = vector.shape_cast %69 : vector<32xf32> to vector<32x1xf32>
    %71 = vector.broadcast %70 : vector<32x1xf32> to vector<32x32xf32>
    %72 = arith.divf %68, %71 : vector<32x32xf32>
    %73 = arith.truncf %72 : vector<32x32xf32> to vector<32x32xbf16>
    %cst_36 = arith.constant dense<0.000000e+00> : vector<32x128xf32>
    %74 = tpu.matmul %73, %61, %cst_36 {dimension_numbers = #tpu.dot_dimension_numbers<[1], [0], [0], [1], [0, 0, 1, 1], [], []>} : vector<32x32xbf16>, vector<32x128xbf16>, vector<32x128xf32> -> vector<32x128xf32>
    %75 = arith.truncf %74 : vector<32x128xf32> to vector<32x128xbf16>
    %c0_37 = arith.constant 0 : index
    %c0_38 = arith.constant 0 : index
    %c0_39 = arith.constant 0 : index
    %76 = vector.load %arg11[%c0_37, %c0_38, %c0_39] : memref<4x128x64xbf16, #tpu.memory_space<vmem>>, vector<1x128x64xbf16>
    %77 = vector.shape_cast %76 : vector<1x128x64xbf16> to vector<128x64xbf16>
    %cst_40 = arith.constant dense<0.000000e+00> : vector<32x64xf32>
    %78 = tpu.matmul %75, %77, %cst_40 {dimension_numbers = #tpu.dot_dimension_numbers<[1], [0], [0], [1], [0, 0, 1, 1], [], []>} : vector<32x128xbf16>, vector<128x64xbf16>, vector<32x64xf32> -> vector<32x64xf32>
    %79 = arith.addf %55, %78 : vector<32x64xf32>
    %80 = vector.extract_strided_slice %54 {offsets = [0, 384], sizes = [32, 128], strides = [1, 1]} : vector<32x768xf32> to vector<32x128xf32>
    %81 = arith.truncf %80 : vector<32x128xf32> to vector<32x128xbf16>
    %82 = vector.extract_strided_slice %54 {offsets = [0, 512], sizes = [32, 128], strides = [1, 1]} : vector<32x768xf32> to vector<32x128xf32>
    %83 = arith.truncf %82 : vector<32x128xf32> to vector<32x128xbf16>
    %84 = vector.extract_strided_slice %54 {offsets = [0, 640], sizes = [32, 128], strides = [1, 1]} : vector<32x768xf32> to vector<32x128xf32>
    %85 = arith.truncf %84 : vector<32x128xf32> to vector<32x128xbf16>
    %cst_41 = arith.constant dense<0.000000e+00> : vector<32x32xf32>
    %86 = tpu.matmul %81, %83, %cst_41 {dimension_numbers = #tpu.dot_dimension_numbers<[1], [1], [0], [0], [0, 0, 1, 0], [], []>} : vector<32x128xbf16>, vector<32x128xbf16>, vector<32x32xf32> -> vector<32x32xf32>
    %87 = arith.addf %86, %46 : vector<32x32xf32>
    %cst_42 = arith.constant dense<0xFF800000> : vector<32xf32>
    %88 = vector.multi_reduction <maximumf>, %87, %cst_42 [1] : vector<32x32xf32> to vector<32xf32>
    %89 = vector.shape_cast %88 : vector<32xf32> to vector<32x1xf32>
    %90 = vector.broadcast %89 : vector<32x1xf32> to vector<32x32xf32>
    %91 = arith.subf %87, %90 : vector<32x32xf32>
    %92 = math.exp %91 : vector<32x32xf32>
    %cst_43 = arith.constant dense<0.000000e+00> : vector<32xf32>
    %93 = vector.multi_reduction <add>, %92, %cst_43 [1] : vector<32x32xf32> to vector<32xf32>
    %94 = vector.shape_cast %93 : vector<32xf32> to vector<32x1xf32>
    %95 = vector.broadcast %94 : vector<32x1xf32> to vector<32x32xf32>
    %96 = arith.divf %92, %95 : vector<32x32xf32>
    %97 = arith.truncf %96 : vector<32x32xf32> to vector<32x32xbf16>
    %cst_44 = arith.constant dense<0.000000e+00> : vector<32x128xf32>
    %98 = tpu.matmul %97, %85, %cst_44 {dimension_numbers = #tpu.dot_dimension_numbers<[1], [0], [0], [1], [0, 0, 1, 1], [], []>} : vector<32x32xbf16>, vector<32x128xbf16>, vector<32x128xf32> -> vector<32x128xf32>
    %99 = arith.truncf %98 : vector<32x128xf32> to vector<32x128xbf16>
    %c1 = arith.constant 1 : index
    %c0_45 = arith.constant 0 : index
    %c0_46 = arith.constant 0 : index
    %100 = vector.load %arg11[%c1, %c0_45, %c0_46] : memref<4x128x64xbf16, #tpu.memory_space<vmem>>, vector<1x128x64xbf16>
    %101 = vector.shape_cast %100 : vector<1x128x64xbf16> to vector<128x64xbf16>
    %cst_47 = arith.constant dense<0.000000e+00> : vector<32x64xf32>
    %102 = tpu.matmul %99, %101, %cst_47 {dimension_numbers = #tpu.dot_dimension_numbers<[1], [0], [0], [1], [0, 0, 1, 1], [], []>} : vector<32x128xbf16>, vector<128x64xbf16>, vector<32x64xf32> -> vector<32x64xf32>
    %103 = arith.addf %79, %102 : vector<32x64xf32>
    %c0_48 = arith.constant 0 : index
    %c0_49 = arith.constant 0 : index
    %c0_50 = arith.constant 0 : index
    %104 = vector.load %arg12[%c0_48, %c0_49, %c0_50] : memref<2x1x64xf32, #tpu.memory_space<vmem>>, vector<1x1x64xf32>
    %105 = vector.shape_cast %104 : vector<1x1x64xf32> to vector<1x64xf32>
    %106 = vector.broadcast %105 : vector<1x64xf32> to vector<32x64xf32>
    %107 = arith.addf %103, %106 : vector<32x64xf32>
    %108 = arith.addf %107, %45 : vector<32x64xf32>
    %c0_51 = arith.constant 0 : index
    %c0_52 = arith.constant 0 : index
    %c0_53 = arith.constant 0 : index
    %109 = vector.load %arg13[%c0_51, %c0_52, %c0_53] : memref<2x1x64xf32, #tpu.memory_space<vmem>>, vector<1x1x64xf32>
    %110 = vector.shape_cast %109 : vector<1x1x64xf32> to vector<1x64xf32>
    %c0_54 = arith.constant 0 : index
    %c0_55 = arith.constant 0 : index
    %c0_56 = arith.constant 0 : index
    %111 = vector.load %arg14[%c0_54, %c0_55, %c0_56] : memref<2x1x64xf32, #tpu.memory_space<vmem>>, vector<1x1x64xf32>
    %112 = vector.shape_cast %111 : vector<1x1x64xf32> to vector<1x64xf32>
    %cst_57 = arith.constant dense<0.000000e+00> : vector<32xf32>
    %113 = vector.multi_reduction <add>, %108, %cst_57 [1] : vector<32x64xf32> to vector<32xf32>
    %114 = vector.shape_cast %113 : vector<32xf32> to vector<32x1xf32>
    %cst_58 = arith.constant 6.400000e+01 : f32
    %115 = vector.broadcast %cst_58 : f32 to vector<32x1xf32>
    %116 = arith.divf %114, %115 : vector<32x1xf32>
    %117 = vector.broadcast %116 : vector<32x1xf32> to vector<32x64xf32>
    %118 = arith.subf %108, %117 : vector<32x64xf32>
    %119 = arith.mulf %118, %118 : vector<32x64xf32>
    %cst_59 = arith.constant dense<0.000000e+00> : vector<32xf32>
    %120 = vector.multi_reduction <add>, %119, %cst_59 [1] : vector<32x64xf32> to vector<32xf32>
    %121 = vector.shape_cast %120 : vector<32xf32> to vector<32x1xf32>
    %cst_60 = arith.constant 6.400000e+01 : f32
    %122 = vector.broadcast %cst_60 : f32 to vector<32x1xf32>
    %123 = arith.divf %121, %122 : vector<32x1xf32>
    %cst_61 = arith.constant 9.99999996E-13 : f32
    %124 = vector.broadcast %cst_61 : f32 to vector<32x1xf32>
    %125 = arith.addf %123, %124 : vector<32x1xf32>
    %126 = math.rsqrt %125 : vector<32x1xf32>
    %127 = vector.broadcast %126 : vector<32x1xf32> to vector<32x64xf32>
    %128 = arith.mulf %118, %127 : vector<32x64xf32>
    %129 = vector.broadcast %110 : vector<1x64xf32> to vector<32x64xf32>
    %130 = arith.mulf %128, %129 : vector<32x64xf32>
    %131 = vector.broadcast %112 : vector<1x64xf32> to vector<32x64xf32>
    %132 = arith.addf %130, %131 : vector<32x64xf32>
    %133 = arith.truncf %132 : vector<32x64xf32> to vector<32x64xbf16>
    %c0_62 = arith.constant 0 : index
    %c0_63 = arith.constant 0 : index
    %c0_64 = arith.constant 0 : index
    %134 = vector.load %arg15[%c0_62, %c0_63, %c0_64] : memref<2x64x256xbf16, #tpu.memory_space<vmem>>, vector<1x64x256xbf16>
    %135 = vector.shape_cast %134 : vector<1x64x256xbf16> to vector<64x256xbf16>
    %cst_65 = arith.constant dense<0.000000e+00> : vector<32x256xf32>
    %136 = tpu.matmul %133, %135, %cst_65 {dimension_numbers = #tpu.dot_dimension_numbers<[1], [0], [0], [1], [0, 0, 1, 1], [], []>} : vector<32x64xbf16>, vector<64x256xbf16>, vector<32x256xf32> -> vector<32x256xf32>
    %c0_66 = arith.constant 0 : index
    %c0_67 = arith.constant 0 : index
    %c0_68 = arith.constant 0 : index
    %137 = vector.load %arg16[%c0_66, %c0_67, %c0_68] : memref<2x1x256xf32, #tpu.memory_space<vmem>>, vector<1x1x256xf32>
    %138 = vector.shape_cast %137 : vector<1x1x256xf32> to vector<1x256xf32>
    %139 = vector.broadcast %138 : vector<1x256xf32> to vector<32x256xf32>
    %140 = arith.addf %136, %139 : vector<32x256xf32>
    %cst_69 = arith.constant 5.000000e-01 : f32
    %141 = vector.broadcast %cst_69 : f32 to vector<32x256xf32>
    %142 = arith.mulf %141, %140 : vector<32x256xf32>
    %cst_70 = arith.constant 4.471500e-02 : f32
    %143 = vector.broadcast %cst_70 : f32 to vector<32x256xf32>
    %144 = arith.mulf %143, %140 : vector<32x256xf32>
    %145 = arith.mulf %144, %140 : vector<32x256xf32>
    %146 = arith.mulf %145, %140 : vector<32x256xf32>
    %147 = arith.addf %140, %146 : vector<32x256xf32>
    %cst_71 = arith.constant 0.797884583 : f32
    %148 = vector.broadcast %cst_71 : f32 to vector<32x256xf32>
    %149 = arith.mulf %148, %147 : vector<32x256xf32>
    %150 = math.tanh %149 : vector<32x256xf32>
    %cst_72 = arith.constant 1.000000e+00 : f32
    %151 = vector.broadcast %cst_72 : f32 to vector<32x256xf32>
    %152 = arith.addf %151, %150 : vector<32x256xf32>
    %153 = arith.mulf %142, %152 : vector<32x256xf32>
    %154 = arith.truncf %153 : vector<32x256xf32> to vector<32x256xbf16>
    %c0_73 = arith.constant 0 : index
    %c0_74 = arith.constant 0 : index
    %c0_75 = arith.constant 0 : index
    %155 = vector.load %arg17[%c0_73, %c0_74, %c0_75] : memref<2x256x64xbf16, #tpu.memory_space<vmem>>, vector<1x256x64xbf16>
    %156 = vector.shape_cast %155 : vector<1x256x64xbf16> to vector<256x64xbf16>
    %cst_76 = arith.constant dense<0.000000e+00> : vector<32x64xf32>
    %157 = tpu.matmul %154, %156, %cst_76 {dimension_numbers = #tpu.dot_dimension_numbers<[1], [0], [0], [1], [0, 0, 1, 1], [], []>} : vector<32x256xbf16>, vector<256x64xbf16>, vector<32x64xf32> -> vector<32x64xf32>
    %c0_77 = arith.constant 0 : index
    %c0_78 = arith.constant 0 : index
    %c0_79 = arith.constant 0 : index
    %158 = vector.load %arg18[%c0_77, %c0_78, %c0_79] : memref<2x1x64xf32, #tpu.memory_space<vmem>>, vector<1x1x64xf32>
    %159 = vector.shape_cast %158 : vector<1x1x64xf32> to vector<1x64xf32>
    %160 = vector.broadcast %159 : vector<1x64xf32> to vector<32x64xf32>
    %161 = arith.addf %157, %160 : vector<32x64xf32>
    %162 = arith.addf %161, %132 : vector<32x64xf32>
    %c0_80 = arith.constant 0 : index
    %c0_81 = arith.constant 0 : index
    %c0_82 = arith.constant 0 : index
    %163 = vector.load %arg19[%c0_80, %c0_81, %c0_82] : memref<2x1x64xf32, #tpu.memory_space<vmem>>, vector<1x1x64xf32>
    %164 = vector.shape_cast %163 : vector<1x1x64xf32> to vector<1x64xf32>
    %c0_83 = arith.constant 0 : index
    %c0_84 = arith.constant 0 : index
    %c0_85 = arith.constant 0 : index
    %165 = vector.load %arg20[%c0_83, %c0_84, %c0_85] : memref<2x1x64xf32, #tpu.memory_space<vmem>>, vector<1x1x64xf32>
    %166 = vector.shape_cast %165 : vector<1x1x64xf32> to vector<1x64xf32>
    %cst_86 = arith.constant dense<0.000000e+00> : vector<32xf32>
    %167 = vector.multi_reduction <add>, %162, %cst_86 [1] : vector<32x64xf32> to vector<32xf32>
    %168 = vector.shape_cast %167 : vector<32xf32> to vector<32x1xf32>
    %cst_87 = arith.constant 6.400000e+01 : f32
    %169 = vector.broadcast %cst_87 : f32 to vector<32x1xf32>
    %170 = arith.divf %168, %169 : vector<32x1xf32>
    %171 = vector.broadcast %170 : vector<32x1xf32> to vector<32x64xf32>
    %172 = arith.subf %162, %171 : vector<32x64xf32>
    %173 = arith.mulf %172, %172 : vector<32x64xf32>
    %cst_88 = arith.constant dense<0.000000e+00> : vector<32xf32>
    %174 = vector.multi_reduction <add>, %173, %cst_88 [1] : vector<32x64xf32> to vector<32xf32>
    %175 = vector.shape_cast %174 : vector<32xf32> to vector<32x1xf32>
    %cst_89 = arith.constant 6.400000e+01 : f32
    %176 = vector.broadcast %cst_89 : f32 to vector<32x1xf32>
    %177 = arith.divf %175, %176 : vector<32x1xf32>
    %cst_90 = arith.constant 9.99999996E-13 : f32
    %178 = vector.broadcast %cst_90 : f32 to vector<32x1xf32>
    %179 = arith.addf %177, %178 : vector<32x1xf32>
    %180 = math.rsqrt %179 : vector<32x1xf32>
    %181 = vector.broadcast %180 : vector<32x1xf32> to vector<32x64xf32>
    %182 = arith.mulf %172, %181 : vector<32x64xf32>
    %183 = vector.broadcast %164 : vector<1x64xf32> to vector<32x64xf32>
    %184 = arith.mulf %182, %183 : vector<32x64xf32>
    %185 = vector.broadcast %166 : vector<1x64xf32> to vector<32x64xf32>
    %186 = arith.addf %184, %185 : vector<32x64xf32>
    %187 = arith.truncf %186 : vector<32x64xf32> to vector<32x64xbf16>
    %c1_91 = arith.constant 1 : index
    %c0_92 = arith.constant 0 : index
    %c0_93 = arith.constant 0 : index
    %188 = vector.load %arg9[%c1_91, %c0_92, %c0_93] : memref<2x64x768xbf16, #tpu.memory_space<vmem>>, vector<1x64x768xbf16>
    %189 = vector.shape_cast %188 : vector<1x64x768xbf16> to vector<64x768xbf16>
    %cst_94 = arith.constant dense<0.000000e+00> : vector<32x768xf32>
    %190 = tpu.matmul %187, %189, %cst_94 {dimension_numbers = #tpu.dot_dimension_numbers<[1], [0], [0], [1], [0, 0, 1, 1], [], []>} : vector<32x64xbf16>, vector<64x768xbf16>, vector<32x768xf32> -> vector<32x768xf32>
    %c1_95 = arith.constant 1 : index
    %c0_96 = arith.constant 0 : index
    %c0_97 = arith.constant 0 : index
    %191 = vector.load %arg10[%c1_95, %c0_96, %c0_97] : memref<2x1x768xf32, #tpu.memory_space<vmem>>, vector<1x1x768xf32>
    %192 = vector.shape_cast %191 : vector<1x1x768xf32> to vector<1x768xf32>
    %193 = vector.broadcast %192 : vector<1x768xf32> to vector<32x768xf32>
    %194 = arith.addf %190, %193 : vector<32x768xf32>
    %cst_98 = arith.constant 0.000000e+00 : f32
    %195 = vector.broadcast %cst_98 : f32 to vector<32x64xf32>
    %196 = vector.extract_strided_slice %194 {offsets = [0, 0], sizes = [32, 128], strides = [1, 1]} : vector<32x768xf32> to vector<32x128xf32>
    %197 = arith.truncf %196 : vector<32x128xf32> to vector<32x128xbf16>
    %198 = vector.extract_strided_slice %194 {offsets = [0, 128], sizes = [32, 128], strides = [1, 1]} : vector<32x768xf32> to vector<32x128xf32>
    %199 = arith.truncf %198 : vector<32x128xf32> to vector<32x128xbf16>
    %200 = vector.extract_strided_slice %194 {offsets = [0, 256], sizes = [32, 128], strides = [1, 1]} : vector<32x768xf32> to vector<32x128xf32>
    %201 = arith.truncf %200 : vector<32x128xf32> to vector<32x128xbf16>
    %cst_99 = arith.constant dense<0.000000e+00> : vector<32x32xf32>
    %202 = tpu.matmul %197, %199, %cst_99 {dimension_numbers = #tpu.dot_dimension_numbers<[1], [1], [0], [0], [0, 0, 1, 0], [], []>} : vector<32x128xbf16>, vector<32x128xbf16>, vector<32x32xf32> -> vector<32x32xf32>
    %203 = arith.addf %202, %46 : vector<32x32xf32>
    %cst_100 = arith.constant dense<0xFF800000> : vector<32xf32>
    %204 = vector.multi_reduction <maximumf>, %203, %cst_100 [1] : vector<32x32xf32> to vector<32xf32>
    %205 = vector.shape_cast %204 : vector<32xf32> to vector<32x1xf32>
    %206 = vector.broadcast %205 : vector<32x1xf32> to vector<32x32xf32>
    %207 = arith.subf %203, %206 : vector<32x32xf32>
    %208 = math.exp %207 : vector<32x32xf32>
    %cst_101 = arith.constant dense<0.000000e+00> : vector<32xf32>
    %209 = vector.multi_reduction <add>, %208, %cst_101 [1] : vector<32x32xf32> to vector<32xf32>
    %210 = vector.shape_cast %209 : vector<32xf32> to vector<32x1xf32>
    %211 = vector.broadcast %210 : vector<32x1xf32> to vector<32x32xf32>
    %212 = arith.divf %208, %211 : vector<32x32xf32>
    %213 = arith.truncf %212 : vector<32x32xf32> to vector<32x32xbf16>
    %cst_102 = arith.constant dense<0.000000e+00> : vector<32x128xf32>
    %214 = tpu.matmul %213, %201, %cst_102 {dimension_numbers = #tpu.dot_dimension_numbers<[1], [0], [0], [1], [0, 0, 1, 1], [], []>} : vector<32x32xbf16>, vector<32x128xbf16>, vector<32x128xf32> -> vector<32x128xf32>
    %215 = arith.truncf %214 : vector<32x128xf32> to vector<32x128xbf16>
    %c2 = arith.constant 2 : index
    %c0_103 = arith.constant 0 : index
    %c0_104 = arith.constant 0 : index
    %216 = vector.load %arg11[%c2, %c0_103, %c0_104] : memref<4x128x64xbf16, #tpu.memory_space<vmem>>, vector<1x128x64xbf16>
    %217 = vector.shape_cast %216 : vector<1x128x64xbf16> to vector<128x64xbf16>
    %cst_105 = arith.constant dense<0.000000e+00> : vector<32x64xf32>
    %218 = tpu.matmul %215, %217, %cst_105 {dimension_numbers = #tpu.dot_dimension_numbers<[1], [0], [0], [1], [0, 0, 1, 1], [], []>} : vector<32x128xbf16>, vector<128x64xbf16>, vector<32x64xf32> -> vector<32x64xf32>
    %219 = arith.addf %195, %218 : vector<32x64xf32>
    %220 = vector.extract_strided_slice %194 {offsets = [0, 384], sizes = [32, 128], strides = [1, 1]} : vector<32x768xf32> to vector<32x128xf32>
    %221 = arith.truncf %220 : vector<32x128xf32> to vector<32x128xbf16>
    %222 = vector.extract_strided_slice %194 {offsets = [0, 512], sizes = [32, 128], strides = [1, 1]} : vector<32x768xf32> to vector<32x128xf32>
    %223 = arith.truncf %222 : vector<32x128xf32> to vector<32x128xbf16>
    %224 = vector.extract_strided_slice %194 {offsets = [0, 640], sizes = [32, 128], strides = [1, 1]} : vector<32x768xf32> to vector<32x128xf32>
    %225 = arith.truncf %224 : vector<32x128xf32> to vector<32x128xbf16>
    %cst_106 = arith.constant dense<0.000000e+00> : vector<32x32xf32>
    %226 = tpu.matmul %221, %223, %cst_106 {dimension_numbers = #tpu.dot_dimension_numbers<[1], [1], [0], [0], [0, 0, 1, 0], [], []>} : vector<32x128xbf16>, vector<32x128xbf16>, vector<32x32xf32> -> vector<32x32xf32>
    %227 = arith.addf %226, %46 : vector<32x32xf32>
    %cst_107 = arith.constant dense<0xFF800000> : vector<32xf32>
    %228 = vector.multi_reduction <maximumf>, %227, %cst_107 [1] : vector<32x32xf32> to vector<32xf32>
    %229 = vector.shape_cast %228 : vector<32xf32> to vector<32x1xf32>
    %230 = vector.broadcast %229 : vector<32x1xf32> to vector<32x32xf32>
    %231 = arith.subf %227, %230 : vector<32x32xf32>
    %232 = math.exp %231 : vector<32x32xf32>
    %cst_108 = arith.constant dense<0.000000e+00> : vector<32xf32>
    %233 = vector.multi_reduction <add>, %232, %cst_108 [1] : vector<32x32xf32> to vector<32xf32>
    %234 = vector.shape_cast %233 : vector<32xf32> to vector<32x1xf32>
    %235 = vector.broadcast %234 : vector<32x1xf32> to vector<32x32xf32>
    %236 = arith.divf %232, %235 : vector<32x32xf32>
    %237 = arith.truncf %236 : vector<32x32xf32> to vector<32x32xbf16>
    %cst_109 = arith.constant dense<0.000000e+00> : vector<32x128xf32>
    %238 = tpu.matmul %237, %225, %cst_109 {dimension_numbers = #tpu.dot_dimension_numbers<[1], [0], [0], [1], [0, 0, 1, 1], [], []>} : vector<32x32xbf16>, vector<32x128xbf16>, vector<32x128xf32> -> vector<32x128xf32>
    %239 = arith.truncf %238 : vector<32x128xf32> to vector<32x128xbf16>
    %c3 = arith.constant 3 : index
    %c0_110 = arith.constant 0 : index
    %c0_111 = arith.constant 0 : index
    %240 = vector.load %arg11[%c3, %c0_110, %c0_111] : memref<4x128x64xbf16, #tpu.memory_space<vmem>>, vector<1x128x64xbf16>
    %241 = vector.shape_cast %240 : vector<1x128x64xbf16> to vector<128x64xbf16>
    %cst_112 = arith.constant dense<0.000000e+00> : vector<32x64xf32>
    %242 = tpu.matmul %239, %241, %cst_112 {dimension_numbers = #tpu.dot_dimension_numbers<[1], [0], [0], [1], [0, 0, 1, 1], [], []>} : vector<32x128xbf16>, vector<128x64xbf16>, vector<32x64xf32> -> vector<32x64xf32>
    %243 = arith.addf %219, %242 : vector<32x64xf32>
    %c1_113 = arith.constant 1 : index
    %c0_114 = arith.constant 0 : index
    %c0_115 = arith.constant 0 : index
    %244 = vector.load %arg12[%c1_113, %c0_114, %c0_115] : memref<2x1x64xf32, #tpu.memory_space<vmem>>, vector<1x1x64xf32>
    %245 = vector.shape_cast %244 : vector<1x1x64xf32> to vector<1x64xf32>
    %246 = vector.broadcast %245 : vector<1x64xf32> to vector<32x64xf32>
    %247 = arith.addf %243, %246 : vector<32x64xf32>
    %248 = arith.addf %247, %186 : vector<32x64xf32>
    %c1_116 = arith.constant 1 : index
    %c0_117 = arith.constant 0 : index
    %c0_118 = arith.constant 0 : index
    %249 = vector.load %arg13[%c1_116, %c0_117, %c0_118] : memref<2x1x64xf32, #tpu.memory_space<vmem>>, vector<1x1x64xf32>
    %250 = vector.shape_cast %249 : vector<1x1x64xf32> to vector<1x64xf32>
    %c1_119 = arith.constant 1 : index
    %c0_120 = arith.constant 0 : index
    %c0_121 = arith.constant 0 : index
    %251 = vector.load %arg14[%c1_119, %c0_120, %c0_121] : memref<2x1x64xf32, #tpu.memory_space<vmem>>, vector<1x1x64xf32>
    %252 = vector.shape_cast %251 : vector<1x1x64xf32> to vector<1x64xf32>
    %cst_122 = arith.constant dense<0.000000e+00> : vector<32xf32>
    %253 = vector.multi_reduction <add>, %248, %cst_122 [1] : vector<32x64xf32> to vector<32xf32>
    %254 = vector.shape_cast %253 : vector<32xf32> to vector<32x1xf32>
    %cst_123 = arith.constant 6.400000e+01 : f32
    %255 = vector.broadcast %cst_123 : f32 to vector<32x1xf32>
    %256 = arith.divf %254, %255 : vector<32x1xf32>
    %257 = vector.broadcast %256 : vector<32x1xf32> to vector<32x64xf32>
    %258 = arith.subf %248, %257 : vector<32x64xf32>
    %259 = arith.mulf %258, %258 : vector<32x64xf32>
    %cst_124 = arith.constant dense<0.000000e+00> : vector<32xf32>
    %260 = vector.multi_reduction <add>, %259, %cst_124 [1] : vector<32x64xf32> to vector<32xf32>
    %261 = vector.shape_cast %260 : vector<32xf32> to vector<32x1xf32>
    %cst_125 = arith.constant 6.400000e+01 : f32
    %262 = vector.broadcast %cst_125 : f32 to vector<32x1xf32>
    %263 = arith.divf %261, %262 : vector<32x1xf32>
    %cst_126 = arith.constant 9.99999996E-13 : f32
    %264 = vector.broadcast %cst_126 : f32 to vector<32x1xf32>
    %265 = arith.addf %263, %264 : vector<32x1xf32>
    %266 = math.rsqrt %265 : vector<32x1xf32>
    %267 = vector.broadcast %266 : vector<32x1xf32> to vector<32x64xf32>
    %268 = arith.mulf %258, %267 : vector<32x64xf32>
    %269 = vector.broadcast %250 : vector<1x64xf32> to vector<32x64xf32>
    %270 = arith.mulf %268, %269 : vector<32x64xf32>
    %271 = vector.broadcast %252 : vector<1x64xf32> to vector<32x64xf32>
    %272 = arith.addf %270, %271 : vector<32x64xf32>
    %273 = arith.truncf %272 : vector<32x64xf32> to vector<32x64xbf16>
    %c1_127 = arith.constant 1 : index
    %c0_128 = arith.constant 0 : index
    %c0_129 = arith.constant 0 : index
    %274 = vector.load %arg15[%c1_127, %c0_128, %c0_129] : memref<2x64x256xbf16, #tpu.memory_space<vmem>>, vector<1x64x256xbf16>
    %275 = vector.shape_cast %274 : vector<1x64x256xbf16> to vector<64x256xbf16>
    %cst_130 = arith.constant dense<0.000000e+00> : vector<32x256xf32>
    %276 = tpu.matmul %273, %275, %cst_130 {dimension_numbers = #tpu.dot_dimension_numbers<[1], [0], [0], [1], [0, 0, 1, 1], [], []>} : vector<32x64xbf16>, vector<64x256xbf16>, vector<32x256xf32> -> vector<32x256xf32>
    %c1_131 = arith.constant 1 : index
    %c0_132 = arith.constant 0 : index
    %c0_133 = arith.constant 0 : index
    %277 = vector.load %arg16[%c1_131, %c0_132, %c0_133] : memref<2x1x256xf32, #tpu.memory_space<vmem>>, vector<1x1x256xf32>
    %278 = vector.shape_cast %277 : vector<1x1x256xf32> to vector<1x256xf32>
    %279 = vector.broadcast %278 : vector<1x256xf32> to vector<32x256xf32>
    %280 = arith.addf %276, %279 : vector<32x256xf32>
    %cst_134 = arith.constant 5.000000e-01 : f32
    %281 = vector.broadcast %cst_134 : f32 to vector<32x256xf32>
    %282 = arith.mulf %281, %280 : vector<32x256xf32>
    %cst_135 = arith.constant 4.471500e-02 : f32
    %283 = vector.broadcast %cst_135 : f32 to vector<32x256xf32>
    %284 = arith.mulf %283, %280 : vector<32x256xf32>
    %285 = arith.mulf %284, %280 : vector<32x256xf32>
    %286 = arith.mulf %285, %280 : vector<32x256xf32>
    %287 = arith.addf %280, %286 : vector<32x256xf32>
    %cst_136 = arith.constant 0.797884583 : f32
    %288 = vector.broadcast %cst_136 : f32 to vector<32x256xf32>
    %289 = arith.mulf %288, %287 : vector<32x256xf32>
    %290 = math.tanh %289 : vector<32x256xf32>
    %cst_137 = arith.constant 1.000000e+00 : f32
    %291 = vector.broadcast %cst_137 : f32 to vector<32x256xf32>
    %292 = arith.addf %291, %290 : vector<32x256xf32>
    %293 = arith.mulf %282, %292 : vector<32x256xf32>
    %294 = arith.truncf %293 : vector<32x256xf32> to vector<32x256xbf16>
    %c1_138 = arith.constant 1 : index
    %c0_139 = arith.constant 0 : index
    %c0_140 = arith.constant 0 : index
    %295 = vector.load %arg17[%c1_138, %c0_139, %c0_140] : memref<2x256x64xbf16, #tpu.memory_space<vmem>>, vector<1x256x64xbf16>
    %296 = vector.shape_cast %295 : vector<1x256x64xbf16> to vector<256x64xbf16>
    %cst_141 = arith.constant dense<0.000000e+00> : vector<32x64xf32>
    %297 = tpu.matmul %294, %296, %cst_141 {dimension_numbers = #tpu.dot_dimension_numbers<[1], [0], [0], [1], [0, 0, 1, 1], [], []>} : vector<32x256xbf16>, vector<256x64xbf16>, vector<32x64xf32> -> vector<32x64xf32>
    %c1_142 = arith.constant 1 : index
    %c0_143 = arith.constant 0 : index
    %c0_144 = arith.constant 0 : index
    %298 = vector.load %arg18[%c1_142, %c0_143, %c0_144] : memref<2x1x64xf32, #tpu.memory_space<vmem>>, vector<1x1x64xf32>
    %299 = vector.shape_cast %298 : vector<1x1x64xf32> to vector<1x64xf32>
    %300 = vector.broadcast %299 : vector<1x64xf32> to vector<32x64xf32>
    %301 = arith.addf %297, %300 : vector<32x64xf32>
    %302 = arith.addf %301, %272 : vector<32x64xf32>
    %c1_145 = arith.constant 1 : index
    %c0_146 = arith.constant 0 : index
    %c0_147 = arith.constant 0 : index
    %303 = vector.load %arg19[%c1_145, %c0_146, %c0_147] : memref<2x1x64xf32, #tpu.memory_space<vmem>>, vector<1x1x64xf32>
    %304 = vector.shape_cast %303 : vector<1x1x64xf32> to vector<1x64xf32>
    %c1_148 = arith.constant 1 : index
    %c0_149 = arith.constant 0 : index
    %c0_150 = arith.constant 0 : index
    %305 = vector.load %arg20[%c1_148, %c0_149, %c0_150] : memref<2x1x64xf32, #tpu.memory_space<vmem>>, vector<1x1x64xf32>
    %306 = vector.shape_cast %305 : vector<1x1x64xf32> to vector<1x64xf32>
    %cst_151 = arith.constant dense<0.000000e+00> : vector<32xf32>
    %307 = vector.multi_reduction <add>, %302, %cst_151 [1] : vector<32x64xf32> to vector<32xf32>
    %308 = vector.shape_cast %307 : vector<32xf32> to vector<32x1xf32>
    %cst_152 = arith.constant 6.400000e+01 : f32
    %309 = vector.broadcast %cst_152 : f32 to vector<32x1xf32>
    %310 = arith.divf %308, %309 : vector<32x1xf32>
    %311 = vector.broadcast %310 : vector<32x1xf32> to vector<32x64xf32>
    %312 = arith.subf %302, %311 : vector<32x64xf32>
    %313 = arith.mulf %312, %312 : vector<32x64xf32>
    %cst_153 = arith.constant dense<0.000000e+00> : vector<32xf32>
    %314 = vector.multi_reduction <add>, %313, %cst_153 [1] : vector<32x64xf32> to vector<32xf32>
    %315 = vector.shape_cast %314 : vector<32xf32> to vector<32x1xf32>
    %cst_154 = arith.constant 6.400000e+01 : f32
    %316 = vector.broadcast %cst_154 : f32 to vector<32x1xf32>
    %317 = arith.divf %315, %316 : vector<32x1xf32>
    %cst_155 = arith.constant 9.99999996E-13 : f32
    %318 = vector.broadcast %cst_155 : f32 to vector<32x1xf32>
    %319 = arith.addf %317, %318 : vector<32x1xf32>
    %320 = math.rsqrt %319 : vector<32x1xf32>
    %321 = vector.broadcast %320 : vector<32x1xf32> to vector<32x64xf32>
    %322 = arith.mulf %312, %321 : vector<32x64xf32>
    %323 = vector.broadcast %304 : vector<1x64xf32> to vector<32x64xf32>
    %324 = arith.mulf %322, %323 : vector<32x64xf32>
    %325 = vector.broadcast %306 : vector<1x64xf32> to vector<32x64xf32>
    %326 = arith.addf %324, %325 : vector<32x64xf32>
    %327 = vector.extract_strided_slice %326 {offsets = [0, 0], sizes = [1, 64], strides = [1, 1]} : vector<32x64xf32> to vector<1x64xf32>
    %328 = vector.extract_strided_slice %326 {offsets = [16, 0], sizes = [1, 64], strides = [1, 1]} : vector<32x64xf32> to vector<1x64xf32>
    %329 = tpu.concatenate %327, %328 in 0 : vector<1x64xf32>, vector<1x64xf32> -> vector<2x64xf32>
    %330 = arith.truncf %329 : vector<2x64xf32> to vector<2x64xbf16>
    %c0_156 = arith.constant 0 : index
    %c0_157 = arith.constant 0 : index
    %331 = vector.load %arg21[%c0_156, %c0_157] : memref<64x64xbf16, #tpu.memory_space<vmem>>, vector<64x64xbf16>
    %cst_158 = arith.constant dense<0.000000e+00> : vector<2x64xf32>
    %332 = tpu.matmul %330, %331, %cst_158 {dimension_numbers = #tpu.dot_dimension_numbers<[1], [0], [0], [1], [0, 0, 1, 1], [], []>} : vector<2x64xbf16>, vector<64x64xbf16>, vector<2x64xf32> -> vector<2x64xf32>
    %c0_159 = arith.constant 0 : index
    %c0_160 = arith.constant 0 : index
    %333 = vector.load %arg22[%c0_159, %c0_160] : memref<1x64xf32, #tpu.memory_space<vmem>>, vector<1x64xf32>
    %334 = vector.broadcast %333 : vector<1x64xf32> to vector<2x64xf32>
    %335 = arith.addf %332, %334 : vector<2x64xf32>
    %336 = math.tanh %335 : vector<2x64xf32>
    %337 = arith.truncf %336 : vector<2x64xf32> to vector<2x64xbf16>
    %c0_161 = arith.constant 0 : index
    %c0_162 = arith.constant 0 : index
    %338 = vector.load %arg23[%c0_161, %c0_162] : memref<64x128xbf16, #tpu.memory_space<vmem>>, vector<64x128xbf16>
    %cst_163 = arith.constant dense<0.000000e+00> : vector<2x128xf32>
    %339 = tpu.matmul %337, %338, %cst_163 {dimension_numbers = #tpu.dot_dimension_numbers<[1], [0], [0], [1], [0, 0, 1, 1], [], []>} : vector<2x64xbf16>, vector<64x128xbf16>, vector<2x128xf32> -> vector<2x128xf32>
    %c0_164 = arith.constant 0 : index
    %c0_165 = arith.constant 0 : index
    %340 = vector.load %arg24[%c0_164, %c0_165] : memref<1x128xf32, #tpu.memory_space<vmem>>, vector<1x128xf32>
    %341 = vector.broadcast %340 : vector<1x128xf32> to vector<2x128xf32>
    %342 = arith.addf %339, %341 : vector<2x128xf32>
    %cst_166 = arith.constant 0.000000e+00 : f32
    %343 = vector.broadcast %cst_166 : f32 to vector<2x128xf32>
    %344 = arith.cmpf oge, %342, %343 : vector<2x128xf32>
    %cst_167 = arith.constant 0.000000e+00 : f32
    %345 = vector.broadcast %cst_167 : f32 to vector<2x128xf32>
    %346 = arith.subf %345, %342 : vector<2x128xf32>
    %347 = math.exp %346 : vector<2x128xf32>
    %cst_168 = arith.constant 1.000000e+00 : f32
    %348 = vector.broadcast %cst_168 : f32 to vector<2x128xf32>
    %349 = arith.addf %348, %347 : vector<2x128xf32>
    %cst_169 = arith.constant 1.000000e+00 : f32
    %350 = vector.broadcast %cst_169 : f32 to vector<2x128xf32>
    %351 = arith.divf %350, %349 : vector<2x128xf32>
    %352 = math.exp %342 : vector<2x128xf32>
    %353 = math.exp %342 : vector<2x128xf32>
    %cst_170 = arith.constant 1.000000e+00 : f32
    %354 = vector.broadcast %cst_170 : f32 to vector<2x128xf32>
    %355 = arith.addf %354, %353 : vector<2x128xf32>
    %356 = arith.divf %352, %355 : vector<2x128xf32>
    %357 = arith.select %344, %351, %356 : vector<2x128xi1>, vector<2x128xf32>
    %c0_171 = arith.constant 0 : index
    %c0_172 = arith.constant 0 : index
    %358 = vector.load %arg25[%c0_171, %c0_172] : memref<2x128xf32, #tpu.memory_space<vmem>>, vector<2x128xf32>
    tpu.vector_store %arg25[%c0_171, %c0_172], %357 {strides = array<i32>} : memref<2x128xf32, #tpu.memory_space<vmem>>, vector<2x128xf32>,
    return
  }
  func.func @transform_0(%arg0: i32) -> (i32, i32) {
    %c0_i32 = arith.constant 0 : i32
    %c0_i32_0 = arith.constant 0 : i32
    %c0_i32_1 = arith.constant 0 : i32
    return %c0_i32, %c0_i32_0 : i32, i32
  }
  func.func @transform_1(%arg0: i32) -> (i32, i32) {
    %c0_i32 = arith.constant 0 : i32
    %c0_i32_0 = arith.constant 0 : i32
    %c0_i32_1 = arith.constant 0 : i32
    return %c0_i32, %c0_i32_0 : i32, i32
  }
  func.func @transform_2(%arg0: i32) -> (i32, i32) {
    %c0_i32 = arith.constant 0 : i32
    %c0_i32_0 = arith.constant 0 : i32
    %c0_i32_1 = arith.constant 0 : i32
    return %c0_i32, %c0_i32_0 : i32, i32
  }
  func.func @transform_3(%arg0: i32) -> (i32, i32) {
    %c0_i32 = arith.constant 0 : i32
    %c0_i32_0 = arith.constant 0 : i32
    %c0_i32_1 = arith.constant 0 : i32
    return %c0_i32, %c0_i32_0 : i32, i32
  }
  func.func @transform_4(%arg0: i32) -> (i32, i32) {
    %c0_i32 = arith.constant 0 : i32
    %c0_i32_0 = arith.constant 0 : i32
    %c0_i32_1 = arith.constant 0 : i32
    return %c0_i32, %c0_i32_0 : i32, i32
  }
  func.func @transform_5(%arg0: i32) -> (i32, i32) {
    %c0_i32 = arith.constant 0 : i32
    %c0_i32_0 = arith.constant 0 : i32
    %c0_i32_1 = arith.constant 0 : i32
    return %c0_i32, %c0_i32_0 : i32, i32
  }
  func.func @transform_6(%arg0: i32) -> (i32, i32) {
    %c0_i32 = arith.constant 0 : i32
    %c0_i32_0 = arith.constant 0 : i32
    %c0_i32_1 = arith.constant 0 : i32
    return %c0_i32, %c0_i32_0 : i32, i32
  }
  func.func @transform_7(%arg0: i32) -> (i32, i32) {
    %c0_i32 = arith.constant 0 : i32
    %c0_i32_0 = arith.constant 0 : i32
    %c0_i32_1 = arith.constant 0 : i32
    return %c0_i32, %c0_i32_0 : i32, i32
  }
  func.func @transform_8(%arg0: i32) -> (i32, i32, i32) {
    %c0_i32 = arith.constant 0 : i32
    %c0_i32_0 = arith.constant 0 : i32
    %c0_i32_1 = arith.constant 0 : i32
    %c0_i32_2 = arith.constant 0 : i32
    return %c0_i32, %c0_i32_0, %c0_i32_1 : i32, i32, i32
  }
  func.func @transform_9(%arg0: i32) -> (i32, i32, i32) {
    %c0_i32 = arith.constant 0 : i32
    %c0_i32_0 = arith.constant 0 : i32
    %c0_i32_1 = arith.constant 0 : i32
    %c0_i32_2 = arith.constant 0 : i32
    return %c0_i32, %c0_i32_0, %c0_i32_1 : i32, i32, i32
  }
  func.func @transform_10(%arg0: i32) -> (i32, i32, i32) {
    %c0_i32 = arith.constant 0 : i32
    %c0_i32_0 = arith.constant 0 : i32
    %c0_i32_1 = arith.constant 0 : i32
    %c0_i32_2 = arith.constant 0 : i32
    return %c0_i32, %c0_i32_0, %c0_i32_1 : i32, i32, i32
  }
  func.func @transform_11(%arg0: i32) -> (i32, i32, i32) {
    %c0_i32 = arith.constant 0 : i32
    %c0_i32_0 = arith.constant 0 : i32
    %c0_i32_1 = arith.constant 0 : i32
    %c0_i32_2 = arith.constant 0 : i32
    return %c0_i32, %c0_i32_0, %c0_i32_1 : i32, i32, i32
  }
  func.func @transform_12(%arg0: i32) -> (i32, i32, i32) {
    %c0_i32 = arith.constant 0 : i32
    %c0_i32_0 = arith.constant 0 : i32
    %c0_i32_1 = arith.constant 0 : i32
    %c0_i32_2 = arith.constant 0 : i32
    return %c0_i32, %c0_i32_0, %c0_i32_1 : i32, i32, i32
  }
  func.func @transform_13(%arg0: i32) -> (i32, i32, i32) {
    %c0_i32 = arith.constant 0 : i32
    %c0_i32_0 = arith.constant 0 : i32
    %c0_i32_1 = arith.constant 0 : i32
    %c0_i32_2 = arith.constant 0 : i32
    return %c0_i32, %c0_i32_0, %c0_i32_1 : i32, i32, i32
  }
  func.func @transform_14(%arg0: i32) -> (i32, i32, i32) {
    %c0_i32 = arith.constant 0 : i32
    %c0_i32_0 = arith.constant 0 : i32
    %c0_i32_1 = arith.constant 0 : i32
    %c0_i32_2 = arith.constant 0 : i32
    return %c0_i32, %c0_i32_0, %c0_i32_1 : i32, i32, i32
  }
  func.func @transform_15(%arg0: i32) -> (i32, i32, i32) {
    %c0_i32 = arith.constant 0 : i32
    %c0_i32_0 = arith.constant 0 : i32
    %c0_i32_1 = arith.constant 0 : i32
    %c0_i32_2 = arith.constant 0 : i32
    return %c0_i32, %c0_i32_0, %c0_i32_1 : i32, i32, i32
  }
  func.func @transform_16(%arg0: i32) -> (i32, i32, i32) {
    %c0_i32 = arith.constant 0 : i32
    %c0_i32_0 = arith.constant 0 : i32
    %c0_i32_1 = arith.constant 0 : i32
    %c0_i32_2 = arith.constant 0 : i32
    return %c0_i32, %c0_i32_0, %c0_i32_1 : i32, i32, i32
  }
  func.func @transform_17(%arg0: i32) -> (i32, i32, i32) {
    %c0_i32 = arith.constant 0 : i32
    %c0_i32_0 = arith.constant 0 : i32
    %c0_i32_1 = arith.constant 0 : i32
    %c0_i32_2 = arith.constant 0 : i32
    return %c0_i32, %c0_i32_0, %c0_i32_1 : i32, i32, i32
  }
  func.func @transform_18(%arg0: i32) -> (i32, i32, i32) {
    %c0_i32 = arith.constant 0 : i32
    %c0_i32_0 = arith.constant 0 : i32
    %c0_i32_1 = arith.constant 0 : i32
    %c0_i32_2 = arith.constant 0 : i32
    return %c0_i32, %c0_i32_0, %c0_i32_1 : i32, i32, i32
  }
  func.func @transform_19(%arg0: i32) -> (i32, i32, i32) {
    %c0_i32 = arith.constant 0 : i32
    %c0_i32_0 = arith.constant 0 : i32
    %c0_i32_1 = arith.constant 0 : i32
    %c0_i32_2 = arith.constant 0 : i32
    return %c0_i32, %c0_i32_0, %c0_i32_1 : i32, i32, i32
  }
  func.func @transform_20(%arg0: i32) -> (i32, i32) {
    %c0_i32 = arith.constant 0 : i32
    %c0_i32_0 = arith.constant 0 : i32
    %c0_i32_1 = arith.constant 0 : i32
    return %c0_i32, %c0_i32_0 : i32, i32
  }
  func.func @transform_21(%arg0: i32) -> (i32, i32) {
    %c0_i32 = arith.constant 0 : i32
    %c0_i32_0 = arith.constant 0 : i32
    %c0_i32_1 = arith.constant 0 : i32
    return %c0_i32, %c0_i32_0 : i32, i32
  }
  func.func @transform_22(%arg0: i32) -> (i32, i32) {
    %c0_i32 = arith.constant 0 : i32
    %c0_i32_0 = arith.constant 0 : i32
    %c0_i32_1 = arith.constant 0 : i32
    return %c0_i32, %c0_i32_0 : i32, i32
  }
  func.func @transform_23(%arg0: i32) -> (i32, i32) {
    %c0_i32 = arith.constant 0 : i32
    %c0_i32_0 = arith.constant 0 : i32
    %c0_i32_1 = arith.constant 0 : i32
    return %c0_i32, %c0_i32_0 : i32, i32
  }
  func.func @transform_24(%arg0: i32) -> (i32, i32) {
    %c0_i32 = arith.constant 0 : i32
    %c0_i32_0 = arith.constant 0 : i32
    %c0_i32_1 = arith.constant 0 : i32
    return %c0_i32, %c0_i32_0 : i32, i32
  }
}

</mosaic_0001>

<llo_original>
// kernel: tpu_custom_call.1
$region0: #{tpu_custom_call.1}
  #allocation0 [shape = 'u32[]', space=smem, size = 0x4, offset = 0x4, fixed_abs, tag = 'smem constant byte address 0x4 - core index']
  #allocation1 [shape = 'u32[144,128]{1,0:T(1,128)}', space=vmem, size = 0x12000, scoped, tag = 'internal scratch']
  %s0 = inlined_call_operand.vmem [shape: s32[32,1], index: 0, kind: input, shape index: {}]
  %s1 = inlined_call_operand.vmem [shape: s32[32,1], index: 1, kind: input, shape index: {}]
  %s2 = inlined_call_operand.vmem [shape: f32[32,32], index: 2, kind: input, shape index: {}]
  %s3 = inlined_call_operand.vmem [shape: bf16[128,64], index: 3, kind: input, shape index: {}]
  %s4 = inlined_call_operand.vmem [shape: bf16[8,64], index: 4, kind: input, shape index: {}]
  %s5 = inlined_call_operand.vmem [shape: f32[32,64], index: 5, kind: input, shape index: {}]
  %s6 = inlined_call_operand.vmem [shape: f32[1,64], index: 6, kind: input, shape index: {}]
  %s7 = inlined_call_operand.vmem [shape: f32[1,64], index: 7, kind: input, shape index: {}]
  %s8 = inlined_call_operand.vmem [shape: bf16[2,64,768], index: 8, kind: input, shape index: {}]
  %s9 = inlined_call_operand.vmem [shape: f32[2,1,768], index: 9, kind: input, shape index: {}]
  %s10 = inlined_call_operand.vmem [shape: bf16[4,128,64], index: 10, kind: input, shape index: {}]
  %s11 = inlined_call_operand.vmem [shape: f32[2,1,64], index: 11, kind: input, shape index: {}]
  %s12 = inlined_call_operand.vmem [shape: f32[2,1,64], index: 12, kind: input, shape index: {}]
  %s13 = inlined_call_operand.vmem [shape: f32[2,1,64], index: 13, kind: input, shape index: {}]
  %s14 = inlined_call_operand.vmem [shape: bf16[2,64,256], index: 14, kind: input, shape index: {}]
  %s15 = inlined_call_operand.vmem [shape: f32[2,1,256], index: 15, kind: input, shape index: {}]
  %s16 = inlined_call_operand.vmem [shape: bf16[2,256,64], index: 16, kind: input, shape index: {}]
  %s17 = inlined_call_operand.vmem [shape: f32[2,1,64], index: 17, kind: input, shape index: {}]
  %s18 = inlined_call_operand.vmem [shape: f32[2,1,64], index: 18, kind: input, shape index: {}]
  %s19 = inlined_call_operand.vmem [shape: f32[2,1,64], index: 19, kind: input, shape index: {}]
  %s20 = inlined_call_operand.vmem [shape: bf16[64,64], index: 20, kind: input, shape index: {}]
  %s21 = inlined_call_operand.vmem [shape: f32[1,64], index: 21, kind: input, shape index: {}]
  %s22 = inlined_call_operand.vmem [shape: bf16[64,128], index: 22, kind: input, shape index: {}]
  %s23 = inlined_call_operand.vmem [shape: f32[1,128], index: 23, kind: input, shape index: {}]
  %s24 = inlined_call_operand.hbm [shape: f32[2,128], index: 24, kind: output, shape index: {}]
  %s25 = sld [smem:[#allocation0]]
  $region106: #{tpu_custom_call.1} parent=0
    _
  %s27 = ssub.s32 1, %s25
  %s28 = scalar_select 0, %s27, %s25
  $region1: #{tpu_custom_call.1} parent=0
    #allocation2 [shape = 'u8[1024]{0}', space=vmem, size = 0x400, scoped, tag = 'output window, operand 0, single buffered']
    #allocation3 [shape = 's32[1]{0}', space=sflag, size = 0x4, scoped, tag = 'scoped memory for tpu_custom_call.1']
    %29 = vsyncpa [#allocation3], 0
    // Predicated region
    $region2: #{tpu_custom_call.1} parent=1 // pred_check
      _
    $region3: #{tpu_custom_call.1} parent=1 // pred_check_branch
      %31 = sbr.rel (0) target = $region5
    $region4: #{tpu_custom_call.1} parent=1 // pred_region
      _
    $region5: #{tpu_custom_call.1} parent=1 // pred_fallthru
      _
    // Predicated region
    $region6: #{tpu_custom_call.1} parent=1 // pred_check
      _
    $region7: #{tpu_custom_call.1} parent=1 // pred_check_branch
      %33 = sbr.rel (0) target = $region9
    $region8: #{tpu_custom_call.1} parent=1 // pred_region
      _
    $region9: #{tpu_custom_call.1} parent=1 // pred_fallthru
      _
    // Predicated region
    $region10: #{tpu_custom_call.1} parent=1 // pred_check
      _
    $region11: #{tpu_custom_call.1} parent=1 // pred_check_branch
      %35 = sbr.rel (0) target = $region13
    $region12: #{tpu_custom_call.1} parent=1 // pred_region
      _
    $region13: #{tpu_custom_call.1} parent=1 // pred_fallthru
      _
    // Predicated region
    $region14: #{tpu_custom_call.1} parent=1 // pred_check
      _
    $region15: #{tpu_custom_call.1} parent=1 // pred_check_branch
      %37 = sbr.rel (0) target = $region17
    $region16: #{tpu_custom_call.1} parent=1 // pred_region
      _
    $region17: #{tpu_custom_call.1} parent=1 // pred_fallthru
      _
    // Predicated region
    $region18: #{tpu_custom_call.1} parent=1 // pred_check
      _
    $region19: #{tpu_custom_call.1} parent=1 // pred_check_branch
      %39 = sbr.rel (0) target = $region21
    $region20: #{tpu_custom_call.1} parent=1 // pred_region
      _
    $region21: #{tpu_custom_call.1} parent=1 // pred_fallthru
      _
    // Predicated region
    $region22: #{tpu_custom_call.1} parent=1 // pred_check
      _
    $region23: #{tpu_custom_call.1} parent=1 // pred_check_branch
      %41 = sbr.rel (0) target = $region25
    $region24: #{tpu_custom_call.1} parent=1 // pred_region
      _
    $region25: #{tpu_custom_call.1} parent=1 // pred_fallthru
      _
    // Predicated region
    $region26: #{tpu_custom_call.1} parent=1 // pred_check
      _
    $region27: #{tpu_custom_call.1} parent=1 // pred_check_branch
      %43 = sbr.rel (0) target = $region29
    $region28: #{tpu_custom_call.1} parent=1 // pred_region
      _
    $region29: #{tpu_custom_call.1} parent=1 // pred_fallthru
      _
    // Predicated region
    $region30: #{tpu_custom_call.1} parent=1 // pred_check
      _
    $region31: #{tpu_custom_call.1} parent=1 // pred_check_branch
      %45 = sbr.rel (0) target = $region33
    $region32: #{tpu_custom_call.1} parent=1 // pred_region
      _
    $region33: #{tpu_custom_call.1} parent=1 // pred_fallthru
      _
    // Predicated region
    $region34: #{tpu_custom_call.1} parent=1 // pred_check
      _
    $region35: #{tpu_custom_call.1} parent=1 // pred_check_branch
      %47 = sbr.rel (0) target = $region37
    $region36: #{tpu_custom_call.1} parent=1 // pred_region
      _
    $region37: #{tpu_custom_call.1} parent=1 // pred_fallthru
      _
    // Predicated region
    $region38: #{tpu_custom_call.1} parent=1 // pred_check
      _
    $region39: #{tpu_custom_call.1} parent=1 // pred_check_branch
      %49 = sbr.rel (0) target = $region41
    $region40: #{tpu_custom_call.1} parent=1 // pred_region
      _
    $region41: #{tpu_custom_call.1} parent=1 // pred_fallthru
      _
    // Predicated region
    $region42: #{tpu_custom_call.1} parent=1 // pred_check
      _
    $region43: #{tpu_custom_call.1} parent=1 // pred_check_branch
      %51 = sbr.rel (0) target = $region45
    $region44: #{tpu_custom_call.1} parent=1 // pred_region
      _
    $region45: #{tpu_custom_call.1} parent=1 // pred_fallthru
      _
    // Predicated region
    $region46: #{tpu_custom_call.1} parent=1 // pred_check
      _
    $region47: #{tpu_custom_call.1} parent=1 // pred_check_branch
      %53 = sbr.rel (0) target = $region49
    $region48: #{tpu_custom_call.1} parent=1 // pred_region
      _
    $region49: #{tpu_custom_call.1} parent=1 // pred_fallthru
      _
    // Predicated region
    $region50: #{tpu_custom_call.1} parent=1 // pred_check
      _
    $region51: #{tpu_custom_call.1} parent=1 // pred_check_branch
      %55 = sbr.rel (0) target = $region53
    $region52: #{tpu_custom_call.1} parent=1 // pred_region
      _
    $region53: #{tpu_custom_call.1} parent=1 // pred_fallthru
      _
    // Predicated region
    $region54: #{tpu_custom_call.1} parent=1 // pred_check
      _
    $region55: #{tpu_custom_call.1} parent=1 // pred_check_branch
      %57 = sbr.rel (0) target = $region57
    $region56: #{tpu_custom_call.1} parent=1 // pred_region
      _
    $region57: #{tpu_custom_call.1} parent=1 // pred_fallthru
      _
    // Predicated region
    $region58: #{tpu_custom_call.1} parent=1 // pred_check
      _
    $region59: #{tpu_custom_call.1} parent=1 // pred_check_branch
      %59 = sbr.rel (0) target = $region61
    $region60: #{tpu_custom_call.1} parent=1 // pred_region
      _
    $region61: #{tpu_custom_call.1} parent=1 // pred_fallthru
      _
    // Predicated region
    $region62: #{tpu_custom_call.1} parent=1 // pred_check
      _
    $region63: #{tpu_custom_call.1} parent=1 // pred_check_branch
      %61 = sbr.rel (0) target = $region65
    $region64: #{tpu_custom_call.1} parent=1 // pred_region
      _
    $region65: #{tpu_custom_call.1} parent=1 // pred_fallthru
      _
    // Predicated region
    $region66: #{tpu_custom_call.1} parent=1 // pred_check
      _
    $region67: #{tpu_custom_call.1} parent=1 // pred_check_branch
      %63 = sbr.rel (0) target = $region69
    $region68: #{tpu_custom_call.1} parent=1 // pred_region
      _
    $region69: #{tpu_custom_call.1} parent=1 // pred_fallthru
      _
    // Predicated region
    $region70: #{tpu_custom_call.1} parent=1 // pred_check
      _
    $region71: #{tpu_custom_call.1} parent=1 // pred_check_branch
      %65 = sbr.rel (0) target = $region73
    $region72: #{tpu_custom_call.1} parent=1 // pred_region
      _
    $region73: #{tpu_custom_call.1} parent=1 // pred_fallthru
      _
    // Predicated region
    $region74: #{tpu_custom_call.1} parent=1 // pred_check
      _
    $region75: #{tpu_custom_call.1} parent=1 // pred_check_branch
      %67 = sbr.rel (0) target = $region77
    $region76: #{tpu_custom_call.1} parent=1 // pred_region
      _
    $region77: #{tpu_custom_call.1} parent=1 // pred_fallthru
      _
    // Predicated region
    $region78: #{tpu_custom_call.1} parent=1 // pred_check
      _
    $region79: #{tpu_custom_call.1} parent=1 // pred_check_branch
      %69 = sbr.rel (0) target = $region81
    $region80: #{tpu_custom_call.1} parent=1 // pred_region
      _
    $region81: #{tpu_custom_call.1} parent=1 // pred_fallthru
      _
    // Predicated region
    $region82: #{tpu_custom_call.1} parent=1 // pred_check
      _
    $region83: #{tpu_custom_call.1} parent=1 // pred_check_branch
      %71 = sbr.rel (0) target = $region85
    $region84: #{tpu_custom_call.1} parent=1 // pred_region
      _
    $region85: #{tpu_custom_call.1} parent=1 // pred_fallthru
      _
    // Predicated region
    $region86: #{tpu_custom_call.1} parent=1 // pred_check
      _
    $region87: #{tpu_custom_call.1} parent=1 // pred_check_branch
      %73 = sbr.rel (0) target = $region89
    $region88: #{tpu_custom_call.1} parent=1 // pred_region
      _
    $region89: #{tpu_custom_call.1} parent=1 // pred_fallthru
      _
    // Predicated region
    $region90: #{tpu_custom_call.1} parent=1 // pred_check
      _
    $region91: #{tpu_custom_call.1} parent=1 // pred_check_branch
      %75 = sbr.rel (0) target = $region93
    $region92: #{tpu_custom_call.1} parent=1 // pred_region
      _
    $region93: #{tpu_custom_call.1} parent=1 // pred_fallthru
      _
    // Predicated region
    $region94: #{tpu_custom_call.1} parent=1 // pred_check
      _
    $region95: #{tpu_custom_call.1} parent=1 // pred_check_branch
      %77 = sbr.rel (0) target = $region97
    $region96: #{tpu_custom_call.1} parent=1 // pred_region
      _
    $region97: #{tpu_custom_call.1} parent=1 // pred_fallthru
      _
    %v79 = vld [vmem:[%s0] sm:$0xff]
    %v80 = vld [vmem:[%s0 + $0x8] sm:$0xff]
    %v81 = vld [vmem:[%s0 + $0x10] sm:$0xff]
    %v82 = vld [vmem:[%s0 + $0x18] sm:$0xff]
    %v83 = vld [vmem:[%s1] sm:$0xff]
    %v84 = vld [vmem:[%s1 + $0x8] sm:$0xff]
    %v85 = vld [vmem:[%s1 + $0x10] sm:$0xff]
    %v86 = vld [vmem:[%s1 + $0x18] sm:$0xff]
    %v87 = vlaneseq
    %v88 = vand.u32 %v87, 127
    %89 = vset.pattern.permute.xlu0 0
    %90 = vperm.xlu0 %89, %v79
    %v91 = vpop.permute.xlu0 %90
    %92 = vset.pattern.permute.xlu0 0
    %93 = vperm.xlu0 %92, %v80
    %v94 = vpop.permute.xlu0 %93
    %95 = vset.pattern.permute.xlu0 0
    %96 = vperm.xlu0 %95, %v81
    %v97 = vpop.permute.xlu0 %96
    %98 = vset.pattern.permute.xlu0 0
    %99 = vperm.xlu0 %98, %v82
    %v100 = vpop.permute.xlu0 %99
    %vm101 = vcmp.eq.s32.totalorder %v91, %v88
    %vm102 = vcmp.eq.s32.totalorder %v94, %v88
    %vm103 = vcmp.eq.s32.totalorder %v97, %v88
    %vm104 = vcmp.eq.s32.totalorder %v100, %v88
    %v105 = vsel %vm101, 1.0, 0.0
    %v106 = vsel %vm102, 1.0, 0.0
    %v107 = vsel %vm103, 1.0, 0.0
    %v108 = vsel %vm104, 1.0, 0.0
    %v109 = vpack.c.bf16 %v106, %v105
    %v110 = vpack.c.bf16 %v108, %v107
    %111 = vset.pattern.permute.xlu0 0
    %112 = vperm.xlu0 %111, %v83
    %v113 = vpop.permute.xlu0 %112
    %114 = vset.pattern.permute.xlu0 0
    %115 = vperm.xlu0 %114, %v84
    %v116 = vpop.permute.xlu0 %115
    %117 = vset.pattern.permute.xlu0 0
    %118 = vperm.xlu0 %117, %v85
    %v119 = vpop.permute.xlu0 %118
    %120 = vset.pattern.permute.xlu0 0
    %121 = vperm.xlu0 %120, %v86
    %v122 = vpop.permute.xlu0 %121
    %vm123 = vcmp.eq.s32.totalorder %v113, %v88
    %vm124 = vcmp.eq.s32.totalorder %v116, %v88
    %vm125 = vcmp.eq.s32.totalorder %v119, %v88
    %vm126 = vcmp.eq.s32.totalorder %v122, %v88
    %v127 = vsel %vm123, 1.0, 0.0
    %v128 = vsel %vm124, 1.0, 0.0
    %v129 = vsel %vm125, 1.0, 0.0
    %v130 = vsel %vm126, 1.0, 0.0
    %v131 = vpack.c.bf16 %v128, %v127
    %v132 = vpack.c.bf16 %v130, %v129
    %v133 = vld [vmem:[%s3] sm:$0xf]
    %v134 = vld [vmem:[%s3 + $0x4] sm:$0xf]
    %v135 = vld [vmem:[%s3 + $0x8] sm:$0xf]
    %v136 = vld [vmem:[%s3 + $0xc] sm:$0xf]
    %v137 = vld [vmem:[%s3 + $0x10] sm:$0xf]
    %v138 = vld [vmem:[%s3 + $0x14] sm:$0xf]
    %v139 = vld [vmem:[%s3 + $0x18] sm:$0xf]
    %v140 = vld [vmem:[%s3 + $0x1c] sm:$0xf]
    %v141 = vld [vmem:[%s3 + $0x20] sm:$0xf]
    %v142 = vld [vmem:[%s3 + $0x24] sm:$0xf]
    %v143 = vld [vmem:[%s3 + $0x28] sm:$0xf]
    %v144 = vld [vmem:[%s3 + $0x2c] sm:$0xf]
    %v145 = vld [vmem:[%s3 + $0x30] sm:$0xf]
    %v146 = vld [vmem:[%s3 + $0x34] sm:$0xf]
    %v147 = vld [vmem:[%s3 + $0x38] sm:$0xf]
    %v148 = vld [vmem:[%s3 + $0x3c] sm:$0xf]
    %v149 = vld [vmem:[%s4] sm:$0xf]
    %vm150 = vcmask 64512
    %v152 = vsel %vm150, %v131, 0
    %v155 = vsel %vm150, %v132, 0
    %vm157 = vcmask 1043456
    %v159 = vsel %vm157, %v149, 0
    %161 = vmatprep.subr.bf16.mxu0 0
    %162 = vmatpush1.bf16.msra.mxu0 0
    %163 = vmatprep.subr.bf16.mxu0 0
    %164 = vmatpush1.bf16.msra.mxu0 0
    %165 = vmatprep.subr.bf16.mxu0 0
    %166 = vmatpush1.bf16.msra.mxu0 0
    %167 = vmatprep.subr.bf16.mxu0 0
    %168 = vmatpush1.bf16.msra.mxu0 0
    %169 = vmatprep.subr.bf16.mxu0 0
    %170 = vmatpush1.bf16.msra.mxu0 0
    %171 = vmatprep.subr.bf16.mxu0 0
    %172 = vmatpush1.bf16.msra.mxu0 0
    %173 = vmatprep.subr.bf16.mxu0 0
    %174 = vmatpush1.bf16.msra.mxu0 0
    %175 = vmatprep.subr.bf16.mxu0 0
    %176 = vmatpush1.bf16.msra.mxu0 %v159
    %177 = vmatprep.subr.bf16.mxu0 0
    %178 = vmatpush2.bf16.msra.mxu0 0
    %179 = vmatprep.subr.bf16.mxu0 0
    %180 = vmatpush2.bf16.msra.mxu0 0
    %181 = vmatprep.subr.bf16.mxu0 0
    %182 = vmatpush2.bf16.msra.mxu0 0
    %183 = vmatprep.subr.bf16.mxu0 0
    %184 = vmatpush2.bf16.msra.mxu0 0
    %185 = vmatprep.subr.bf16.mxu0 0
    %186 = vmatpush2.bf16.msra.mxu0 0
    %187 = vmatprep.subr.bf16.mxu0 0
    %188 = vmatpush2.bf16.msra.mxu0 0
    %189 = vmatprep.subr.bf16.mxu0 0
    %190 = vmatpush2.bf16.msra.mxu0 0
    %191 = vmatprep.subr.bf16.mxu0 0
    %192 = vmatpush2.bf16.msra.mxu0 0
    %193 = vmatprep.mubr.bf16.mxu0 0
    %194 = vmatmul.mubr.bf16.gmra.mxu0 %v152
    %v195 = vpop.f32.mrf.mxu0
    %v196 = vadd.f32 0.0, %v195
    %v197 = vpop.f32.mrf.mxu0
    %v198 = vpop.f32.mrf.mxu0
    %v199 = vadd.f32 0.0, %v198
    %v200 = vpop.f32.mrf.mxu0
    %201 = vmatprep.mubr.bf16.mxu0 0
    %202 = vmatmul.mubr.bf16.gmra.mxu0 %v155
    %v203 = vpop.f32.mrf.mxu0
    %v204 = vadd.f32 0.0, %v203
    %v205 = vpop.f32.mrf.mxu0
    %v206 = vpop.f32.mrf.mxu0
    %v207 = vadd.f32 0.0, %v206
    %v208 = vpop.f32.mrf.mxu0
    %209 = vdwg.mxu0
    %v210 = vld [vmem:[%s5] sm:$0xff]
    %v211 = vld [vmem:[%s5 + $0x8] sm:$0xff]
    %v228 = vunpack.c.l.b16 %v133
    %v229 = vunpack.c.l.b16 %v134
    %v230 = vunpack.c.l.b16 %v135
    %v231 = vunpack.c.l.b16 %v136
    %v232 = vunpack.c.l.b16 %v137
    %v233 = vunpack.c.l.b16 %v138
    %v234 = vunpack.c.l.b16 %v139
    %v235 = vunpack.c.l.b16 %v140
    %v236 = vunpack.c.l.b16 %v141
    %v237 = vunpack.c.l.b16 %v142
    %v238 = vunpack.c.l.b16 %v143
    %v239 = vunpack.c.l.b16 %v144
    %v240 = vunpack.c.l.b16 %v145
    %v241 = vunpack.c.l.b16 %v146
    %v242 = vunpack.c.l.b16 %v147
    %v243 = vunpack.c.l.b16 %v148
    %v244 = vpack.c.b16 %v229, %v228
    %v245 = vpack.c.b16 %v231, %v230
    %v246 = vpack.c.b16 %v233, %v232
    %v247 = vpack.c.b16 %v235, %v234
    %v248 = vpack.c.b16 %v237, %v236
    %v249 = vpack.c.b16 %v239, %v238
    %v250 = vpack.c.b16 %v241, %v240
    %v251 = vpack.c.b16 %v243, %v242
    %260 = vmatprep.subr.bf16.mxu0 0
    %261 = vmatpush1.bf16.msra.mxu0 %v251
    %262 = vmatprep.subr.bf16.mxu0 0
    %263 = vmatpush1.bf16.msra.mxu0 %v250
    %264 = vmatprep.subr.bf16.mxu0 0
    %265 = vmatpush1.bf16.msra.mxu0 %v249
    %266 = vmatprep.subr.bf16.mxu0 0
    %267 = vmatpush1.bf16.msra.mxu0 %v248
    %268 = vmatprep.subr.bf16.mxu0 0
    %269 = vmatpush1.bf16.msra.mxu0 %v247
    %270 = vmatprep.subr.bf16.mxu0 0
    %271 = vmatpush1.bf16.msra.mxu0 %v246
    %272 = vmatprep.subr.bf16.mxu0 0
    %273 = vmatpush1.bf16.msra.mxu0 %v245
    %274 = vmatprep.subr.bf16.mxu0 0
    %275 = vmatpush1.bf16.msra.mxu0 %v244
    %276 = vmatprep.subr.bf16.mxu0 0
    %277 = vmatpush2.bf16.msra.mxu0 0
    %278 = vmatprep.subr.bf16.mxu0 0
    %279 = vmatpush2.bf16.msra.mxu0 0
    %280 = vmatprep.subr.bf16.mxu0 0
    %281 = vmatpush2.bf16.msra.mxu0 0
    %282 = vmatprep.subr.bf16.mxu0 0
    %283 = vmatpush2.bf16.msra.mxu0 0
    %284 = vmatprep.subr.bf16.mxu0 0
    %285 = vmatpush2.bf16.msra.mxu0 0
    %286 = vmatprep.subr.bf16.mxu0 0
    %287 = vmatpush2.bf16.msra.mxu0 0
    %288 = vmatprep.subr.bf16.mxu0 0
    %289 = vmatpush2.bf16.msra.mxu0 0
    %290 = vmatprep.subr.bf16.mxu0 0
    %291 = vmatpush2.bf16.msra.mxu0 0
    %292 = vmatprep.mubr.bf16.mxu0 0
    %293 = vmatmul.mubr.bf16.gmra.mxu0 %v109
    %v294 = vpop.f32.mrf.mxu0
    %v295 = vadd.f32 %v196, %v294
    %v296 = vpop.f32.mrf.mxu0
    %v297 = vpop.f32.mrf.mxu0
    %v298 = vadd.f32 %v199, %v297
    %v299 = vpop.f32.mrf.mxu0
    %300 = vmatprep.mubr.bf16.mxu0 0
    %301 = vmatmul.mubr.bf16.gmra.mxu0 %v110
    %v302 = vpop.f32.mrf.mxu0
    %v303 = vadd.f32 %v204, %v302
    %v304 = vpop.f32.mrf.mxu0
    %v305 = vpop.f32.mrf.mxu0
    %v306 = vadd.f32 %v207, %v305
    %v307 = vpop.f32.mrf.mxu0
    %308 = vdwg.mxu0
    %v309 = vadd.f32 %v295, %v210
    %v310 = vadd.f32 %v298, %v211
    %v311 = vadd.f32 %v303, %v210
    %v312 = vadd.f32 %v306, %v211
    %v313 = vld [vmem:[%s6] sm:$0x1]
    %v314 = vld [vmem:[%s7] sm:$0x1]
    %vm315 = vcmask 523264
    %v316 = vsel %vm315, %v309, 0.0
    %317 = vadd.xlane.f32.xlu0 %v316
    %v318 = vpop.xlane.xlu0 %317
    %v319 = vsel %vm315, %v310, 0.0
    %320 = vadd.xlane.f32.xlu0 %v319
    %v321 = vpop.xlane.xlu0 %320
    %v322 = vsel %vm315, %v311, 0.0
    %323 = vadd.xlane.f32.xlu0 %v322
    %v324 = vpop.xlane.xlu0 %323
    %v325 = vsel %vm315, %v312, 0.0
    %326 = vadd.xlane.f32.xlu0 %v325
    %v327 = vpop.xlane.xlu0 %326
    %v328 = vrcp.pop 64.0
    %v329 = vmul.f32 %v318, %v328
    %v330 = vmul.f32 %v321, %v328
    %v331 = vmul.f32 %v324, %v328
    %v332 = vmul.f32 %v327, %v328
    %v333 = vsub.f32 %v309, %v329
    %v334 = vsub.f32 %v310, %v330
    %v335 = vsub.f32 %v311, %v331
    %v336 = vsub.f32 %v312, %v332
    %v337 = vmul.f32 %v333, %v333
    %v338 = vmul.f32 %v334, %v334
    %v339 = vmul.f32 %v335, %v335
    %v340 = vmul.f32 %v336, %v336
    %v341 = vsel %vm315, %v337, 0.0
    %342 = vadd.xlane.f32.xlu0 %v341
    %v343 = vpop.xlane.xlu0 %342
    %v344 = vsel %vm315, %v338, 0.0
    %345 = vadd.xlane.f32.xlu0 %v344
    %v346 = vpop.xlane.xlu0 %345
    %v347 = vsel %vm315, %v339, 0.0
    %348 = vadd.xlane.f32.xlu0 %v347
    %v349 = vpop.xlane.xlu0 %348
    %v350 = vsel %vm315, %v340, 0.0
    %351 = vadd.xlane.f32.xlu0 %v350
    %v352 = vpop.xlane.xlu0 %351
    %v353 = vmul.f32 %v343, %v328
    %v354 = vmul.f32 %v346, %v328
    %v355 = vmul.f32 %v349, %v328
    %v356 = vmul.f32 %v352, %v328
    %v357 = vadd.f32 %v353, 1e-12
    %v358 = vadd.f32 %v354, 1e-12
    %v359 = vadd.f32 %v355, 1e-12
    %v360 = vadd.f32 %v356, 1e-12
    %v361 = vrsqrt.pop %v357
    %v362 = vrsqrt.pop %v358
    %v363 = vrsqrt.pop %v359
    %v364 = vrsqrt.pop %v360
    %v365 = vmul.f32 %v333, %v361
    %v366 = vmul.f32 %v334, %v362
    %v367 = vmul.f32 %v335, %v363
    %v368 = vmul.f32 %v336, %v364
    %v370 = vlaneseq
    %v371 = vshrl.u32 %v370, 7
    %v372 = vsub.s32 0, %v371
    %v373 = vrot.slane %v313, %v372
    %v375 = vmul.f32 %v365, %v373
    %v376 = vmul.f32 %v366, %v373
    %v377 = vmul.f32 %v367, %v373
    %v378 = vmul.f32 %v368, %v373
    %v380 = vlaneseq
    %v381 = vshrl.u32 %v380, 7
    %v382 = vsub.s32 0, %v381
    %v383 = vrot.slane %v314, %v382
    %v385 = vadd.f32 %v375, %v383
    %v386 = vadd.f32 %v376, %v383
    %v387 = vadd.f32 %v377, %v383
    %v388 = vadd.f32 %v378, %v383
    %v389 = vld [vmem:[%s2] sm:$0xff]
    %v390 = vld [vmem:[%s2 + $0x8] sm:$0xff]
    %v391 = vld [vmem:[%s2 + $0x10] sm:$0xff]
    %v392 = vld [vmem:[%s2 + $0x18] sm:$0xff]
    %v393 = vpack.c.bf16 %v386, %v385
    %v394 = vpack.c.bf16 %v388, %v387
    %v395 = vld [vmem:[%s8] sm:$0xff]
    %v396 = vld [vmem:[%s8 + $0x8] sm:$0xff]
    %v397 = vld [vmem:[%s8 + $0x10] sm:$0xff]
    %v398 = vld [vmem:[%s8 + $0x18] sm:$0xff]
    %v399 = vld [vmem:[%s8 + $0x20] sm:$0xff]
    %v400 = vld [vmem:[%s8 + $0x28] sm:$0xff]
    %v401 = vld [vmem:[%s8 + $0x30] sm:$0xff]
    %v402 = vld [vmem:[%s8 + $0x38] sm:$0xff]
    %v403 = vld [vmem:[%s8 + $0x40] sm:$0xff]
    %v404 = vld [vmem:[%s8 + $0x48] sm:$0xff]
    %v405 = vld [vmem:[%s8 + $0x50] sm:$0xff]
    %v406 = vld [vmem:[%s8 + $0x58] sm:$0xff]
    %v407 = vld [vmem:[%s8 + $0x60] sm:$0xff]
    %v408 = vld [vmem:[%s8 + $0x68] sm:$0xff]
    %v409 = vld [vmem:[%s8 + $0x70] sm:$0xff]
    %v410 = vld [vmem:[%s8 + $0x78] sm:$0xff]
    %v411 = vld [vmem:[%s8 + $0x80] sm:$0xff]
    %v412 = vld [vmem:[%s8 + $0x88] sm:$0xff]
    %v413 = vld [vmem:[%s8 + $0x90] sm:$0xff]
    %v414 = vld [vmem:[%s8 + $0x98] sm:$0xff]
    %v415 = vld [vmem:[%s8 + $0xa0] sm:$0xff]
    %v416 = vld [vmem:[%s8 + $0xa8] sm:$0xff]
    %v417 = vld [vmem:[%s8 + $0xb0] sm:$0xff]
    %v418 = vld [vmem:[%s8 + $0xb8] sm:$0xff]
    %v419 = vld [vmem:[%s9] sm:$0x3f]
    %v421 = vlaneseq
    %v422 = vshrl.u32 %v421, 7
    %v423 = vsub.s32 0, %v422
    %v424 = vrot.slane %v419, %v423
    %v425 = vlaneseq
    %v426 = vshrl.u32 %v425, 7
    %v427 = vsub.s32 1, %v426
    %v428 = vrot.slane %v419, %v427
    %v429 = vlaneseq
    %v430 = vshrl.u32 %v429, 7
    %v431 = vsub.s32 2, %v430
    %v432 = vrot.slane %v419, %v431
    %v433 = vlaneseq
    %v434 = vshrl.u32 %v433, 7
    %v435 = vsub.s32 3, %v434
    %v436 = vrot.slane %v419, %v435
    %v437 = vlaneseq
    %v438 = vshrl.u32 %v437, 7
    %v439 = vsub.s32 4, %v438
    %v440 = vrot.slane %v419, %v439
    %v441 = vlaneseq
    %v442 = vshrl.u32 %v441, 7
    %v443 = vsub.s32 5, %v442
    %v444 = vrot.slane %v419, %v443
    %v475 = vunpack.c.l.b16 %v395
    %v476 = vunpack.c.h.b16 %v395
    %v477 = vunpack.c.l.b16 %v396
    %v478 = vunpack.c.h.b16 %v396
    %v479 = vunpack.c.l.b16 %v397
    %v480 = vunpack.c.h.b16 %v397
    %v481 = vunpack.c.l.b16 %v398
    %v482 = vunpack.c.h.b16 %v398
    %v483 = vunpack.c.l.b16 %v399
    %v484 = vunpack.c.h.b16 %v399
    %v485 = vunpack.c.l.b16 %v400
    %v486 = vunpack.c.h.b16 %v400
    %v487 = vunpack.c.l.b16 %v401
    %v488 = vunpack.c.h.b16 %v401
    %v489 = vunpack.c.l.b16 %v402
    %v490 = vunpack.c.h.b16 %v402
    %v491 = vunpack.c.l.b16 %v403
    %v492 = vunpack.c.h.b16 %v403
    %v493 = vunpack.c.l.b16 %v404
    %v494 = vunpack.c.h.b16 %v404
    %v495 = vunpack.c.l.b16 %v405
    %v496 = vunpack.c.h.b16 %v405
    %v497 = vunpack.c.l.b16 %v406
    %v498 = vunpack.c.h.b16 %v406
    %v499 = vunpack.c.l.b16 %v407
    %v500 = vunpack.c.h.b16 %v407
    %v501 = vunpack.c.l.b16 %v408
    %v502 = vunpack.c.h.b16 %v408
    %v503 = vunpack.c.l.b16 %v409
    %v504 = vunpack.c.h.b16 %v409
    %v505 = vunpack.c.l.b16 %v410
    %v506 = vunpack.c.h.b16 %v410
    %v507 = vunpack.c.l.b16 %v411
    %v508 = vunpack.c.h.b16 %v411
    %v509 = vunpack.c.l.b16 %v412
    %v510 = vunpack.c.h.b16 %v412
    %v511 = vunpack.c.l.b16 %v413
    %v512 = vunpack.c.h.b16 %v413
    %v513 = vunpack.c.l.b16 %v414
    %v514 = vunpack.c.h.b16 %v414
    %v515 = vunpack.c.l.b16 %v415
    %v516 = vunpack.c.h.b16 %v415
    %v517 = vunpack.c.l.b16 %v416
    %v518 = vunpack.c.h.b16 %v416
    %v519 = vunpack.c.l.b16 %v417
    %v520 = vunpack.c.h.b16 %v417
    %v521 = vunpack.c.l.b16 %v418
    %v522 = vunpack.c.h.b16 %v418
    %v523 = vpack.c.b16 %v481, %v475
    %v524 = vpack.c.b16 %v482, %v476
    %v525 = vpack.c.b16 %v483, %v477
    %v526 = vpack.c.b16 %v484, %v478
    %v527 = vpack.c.b16 %v485, %v479
    %v528 = vpack.c.b16 %v486, %v480
    %v529 = vpack.c.b16 %v493, %v487
    %v530 = vpack.c.b16 %v494, %v488
    %v531 = vpack.c.b16 %v495, %v489
    %v532 = vpack.c.b16 %v496, %v490
    %v533 = vpack.c.b16 %v497, %v491
    %v534 = vpack.c.b16 %v498, %v492
    %v535 = vpack.c.b16 %v505, %v499
    %v536 = vpack.c.b16 %v506, %v500
    %v537 = vpack.c.b16 %v507, %v501
    %v538 = vpack.c.b16 %v508, %v502
    %v539 = vpack.c.b16 %v509, %v503
    %v540 = vpack.c.b16 %v510, %v504
    %v541 = vpack.c.b16 %v517, %v511
    %v542 = vpack.c.b16 %v518, %v512
    %v543 = vpack.c.b16 %v519, %v513
    %v544 = vpack.c.b16 %v520, %v514
    %v545 = vpack.c.b16 %v521, %v515
    %v546 = vpack.c.b16 %v522, %v516
    %v572 = vsel %vm315, %v393, 0
    %v575 = vsel %vm315, %v394, 0
    %577 = vmatprep.subr.bf16.mxu0 0
    %578 = vmatpush1.bf16.msra.mxu0 0
    %579 = vmatprep.subr.bf16.mxu0 0
    %580 = vmatpush1.bf16.msra.mxu0 0
    %581 = vmatprep.subr.bf16.mxu0 0
    %582 = vmatpush1.bf16.msra.mxu0 0
    %583 = vmatprep.subr.bf16.mxu0 0
    %584 = vmatpush1.bf16.msra.mxu0 0
    %585 = vmatprep.subr.bf16.mxu0 %v542
    %586 = vmatpush1.bf16.msra.mxu0 %v541
    %587 = vmatprep.subr.bf16.mxu0 %v536
    %588 = vmatpush1.bf16.msra.mxu0 %v535
    %589 = vmatprep.subr.bf16.mxu0 %v530
    %590 = vmatpush1.bf16.msra.mxu0 %v529
    %591 = vmatprep.subr.bf16.mxu0 %v524
    %592 = vmatpush1.bf16.msra.mxu0 %v523
    %593 = vmatprep.subr.bf16.mxu0 0
    %594 = vmatpush2.bf16.msra.mxu0 0
    %595 = vmatprep.subr.bf16.mxu0 0
    %596 = vmatpush2.bf16.msra.mxu0 0
    %597 = vmatprep.subr.bf16.mxu0 0
    %598 = vmatpush2.bf16.msra.mxu0 0
    %599 = vmatprep.subr.bf16.mxu0 0
    %600 = vmatpush2.bf16.msra.mxu0 0
    %601 = vmatprep.subr.bf16.mxu0 0
    %602 = vmatpush2.bf16.msra.mxu0 0
    %603 = vmatprep.subr.bf16.mxu0 0
    %604 = vmatpush2.bf16.msra.mxu0 0
    %605 = vmatprep.subr.bf16.mxu0 0
    %606 = vmatpush2.bf16.msra.mxu0 0
    %607 = vmatprep.subr.bf16.mxu0 0
    %608 = vmatpush2.bf16.msra.mxu0 0
    %609 = vmatprep.mubr.bf16.mxu0 0
    %610 = vmatmul.mubr.bf16.gmra.mxu0 %v572
    %v611 = vpop.f32.mrf.mxu0
    %v612 = vadd.f32 %v424, %v611
    %v613 = vpop.f32.mrf.mxu0
    %v614 = vadd.f32 %v428, %v613
    %v615 = vpop.f32.mrf.mxu0
    %v616 = vadd.f32 %v424, %v615
    %v617 = vpop.f32.mrf.mxu0
    %v618 = vadd.f32 %v428, %v617
    %619 = vmatprep.mubr.bf16.mxu0 0
    %620 = vmatmul.mubr.bf16.gmra.mxu0 %v575
    %v621 = vpop.f32.mrf.mxu0
    %v622 = vadd.f32 %v424, %v621
    %v623 = vpop.f32.mrf.mxu0
    %v624 = vadd.f32 %v428, %v623
    %v625 = vpop.f32.mrf.mxu0
    %v626 = vadd.f32 %v424, %v625
    %v627 = vpop.f32.mrf.mxu0
    %v628 = vadd.f32 %v428, %v627
    %629 = vdwg.mxu0
    %630 = vmatprep.subr.bf16.mxu0 0
    %631 = vmatpush1.bf16.msra.mxu0 0
    %632 = vmatprep.subr.bf16.mxu0 0
    %633 = vmatpush1.bf16.msra.mxu0 0
    %634 = vmatprep.subr.bf16.mxu0 0
    %635 = vmatpush1.bf16.msra.mxu0 0
    %636 = vmatprep.subr.bf16.mxu0 0
    %637 = vmatpush1.bf16.msra.mxu0 0
    %638 = vmatprep.subr.bf16.mxu0 %v544
    %639 = vmatpush1.bf16.msra.mxu0 %v543
    %640 = vmatprep.subr.bf16.mxu0 %v538
    %641 = vmatpush1.bf16.msra.mxu0 %v537
    %642 = vmatprep.subr.bf16.mxu0 %v532
    %643 = vmatpush1.bf16.msra.mxu0 %v531
    %644 = vmatprep.subr.bf16.mxu0 %v526
    %645 = vmatpush1.bf16.msra.mxu0 %v525
    %646 = vmatprep.subr.bf16.mxu0 0
    %647 = vmatpush2.bf16.msra.mxu0 0
    %648 = vmatprep.subr.bf16.mxu0 0
    %649 = vmatpush2.bf16.msra.mxu0 0
    %650 = vmatprep.subr.bf16.mxu0 0
    %651 = vmatpush2.bf16.msra.mxu0 0
    %652 = vmatprep.subr.bf16.mxu0 0
    %653 = vmatpush2.bf16.msra.mxu0 0
    %654 = vmatprep.subr.bf16.mxu0 0
    %655 = vmatpush2.bf16.msra.mxu0 0
    %656 = vmatprep.subr.bf16.mxu0 0
    %657 = vmatpush2.bf16.msra.mxu0 0
    %658 = vmatprep.subr.bf16.mxu0 0
    %659 = vmatpush2.bf16.msra.mxu0 0
    %660 = vmatprep.subr.bf16.mxu0 0
    %661 = vmatpush2.bf16.msra.mxu0 0
    %662 = vmatprep.mubr.bf16.mxu0 0
    %663 = vmatmul.mubr.bf16.gmra.mxu0 %v572
    %v664 = vpop.f32.mrf.mxu0
    %v665 = vadd.f32 %v432, %v664
    %v666 = vpop.f32.mrf.mxu0
    %v667 = vadd.f32 %v436, %v666
    %v668 = vpop.f32.mrf.mxu0
    %v669 = vadd.f32 %v432, %v668
    %v670 = vpop.f32.mrf.mxu0
    %v671 = vadd.f32 %v436, %v670
    %672 = vmatprep.mubr.bf16.mxu0 0
    %673 = vmatmul.mubr.bf16.gmra.mxu0 %v575
    %v674 = vpop.f32.mrf.mxu0
    %v675 = vadd.f32 %v432, %v674
    %v676 = vpop.f32.mrf.mxu0
    %v677 = vadd.f32 %v436, %v676
    %v678 = vpop.f32.mrf.mxu0
    %v679 = vadd.f32 %v432, %v678
    %v680 = vpop.f32.mrf.mxu0
    %v681 = vadd.f32 %v436, %v680
    %682 = vdwg.mxu0
    %683 = vmatprep.subr.bf16.mxu0 0
    %684 = vmatpush1.bf16.msra.mxu0 0
    %685 = vmatprep.subr.bf16.mxu0 0
    %686 = vmatpush1.bf16.msra.mxu0 0
    %687 = vmatprep.subr.bf16.mxu0 0
    %688 = vmatpush1.bf16.msra.mxu0 0
    %689 = vmatprep.subr.bf16.mxu0 0
    %690 = vmatpush1.bf16.msra.mxu0 0
    %691 = vmatprep.subr.bf16.mxu0 %v546
    %692 = vmatpush1.bf16.msra.mxu0 %v545
    %693 = vmatprep.subr.bf16.mxu0 %v540
    %694 = vmatpush1.bf16.msra.mxu0 %v539
    %695 = vmatprep.subr.bf16.mxu0 %v534
    %696 = vmatpush1.bf16.msra.mxu0 %v533
    %697 = vmatprep.subr.bf16.mxu0 %v528
    %698 = vmatpush1.bf16.msra.mxu0 %v527
    %699 = vmatprep.subr.bf16.mxu0 0
    %700 = vmatpush2.bf16.msra.mxu0 0
    %701 = vmatprep.subr.bf16.mxu0 0
    %702 = vmatpush2.bf16.msra.mxu0 0
    %703 = vmatprep.subr.bf16.mxu0 0
    %704 = vmatpush2.bf16.msra.mxu0 0
    %705 = vmatprep.subr.bf16.mxu0 0
    %706 = vmatpush2.bf16.msra.mxu0 0
    %707 = vmatprep.subr.bf16.mxu0 0
    %708 = vmatpush2.bf16.msra.mxu0 0
    %709 = vmatprep.subr.bf16.mxu0 0
    %710 = vmatpush2.bf16.msra.mxu0 0
    %711 = vmatprep.subr.bf16.mxu0 0
    %712 = vmatpush2.bf16.msra.mxu0 0
    %713 = vmatprep.subr.bf16.mxu0 0
    %714 = vmatpush2.bf16.msra.mxu0 0
    %715 = vmatprep.mubr.bf16.mxu0 0
    %716 = vmatmul.mubr.bf16.gmra.mxu0 %v572
    %v717 = vpop.f32.mrf.mxu0
    %v718 = vadd.f32 %v440, %v717
    %v719 = vpop.f32.mrf.mxu0
    %v720 = vadd.f32 %v444, %v719
    %v721 = vpop.f32.mrf.mxu0
    %v722 = vadd.f32 %v440, %v721
    %v723 = vpop.f32.mrf.mxu0
    %v724 = vadd.f32 %v444, %v723
    %725 = vmatprep.mubr.bf16.mxu0 0
    %726 = vmatmul.mubr.bf16.gmra.mxu0 %v575
    %v727 = vpop.f32.mrf.mxu0
    %v728 = vadd.f32 %v440, %v727
    %v729 = vpop.f32.mrf.mxu0
    %v730 = vadd.f32 %v444, %v729
    %v731 = vpop.f32.mrf.mxu0
    %v732 = vadd.f32 %v440, %v731
    %v733 = vpop.f32.mrf.mxu0
    %v734 = vadd.f32 %v444, %v733
    %735 = vdwg.mxu0
    %v736 = vpack.c.bf16 %v616, %v612
    %v737 = vpack.c.bf16 %v626, %v622
    %v738 = vpack.c.bf16 %v618, %v614
    %v739 = vpack.c.bf16 %v628, %v624
    %v740 = vpack.c.bf16 %v669, %v665
    %v741 = vpack.c.bf16 %v679, %v675
    %742 = vmatprep.subr.bf16.mxu0 0
    %743 = vmatpush1.bf16.xpose.msra.mxu0 0
    %744 = vmatprep.subr.bf16.mxu0 0
    %745 = vmatpush1.bf16.xpose.msra.mxu0 0
    %746 = vmatprep.subr.bf16.mxu0 0
    %747 = vmatpush1.bf16.xpose.msra.mxu0 0
    %748 = vmatprep.subr.bf16.mxu0 0
    %749 = vmatpush1.bf16.xpose.msra.mxu0 0
    %750 = vmatprep.subr.bf16.mxu0 0
    %751 = vmatpush1.bf16.xpose.msra.mxu0 0
    %752 = vmatprep.subr.bf16.mxu0 0
    %753 = vmatpush1.bf16.xpose.msra.mxu0 0
    %754 = vmatprep.subr.bf16.mxu0 0
    %755 = vmatpush1.bf16.xpose.msra.mxu0 %v739
    %756 = vmatprep.subr.bf16.mxu0 0
    %757 = vmatpush1.bf16.xpose.msra.mxu0 %v738
    %758 = vmatprep.subr.bf16.mxu0 0
    %759 = vmatpush2.bf16.xpose.msra.mxu0 0
    %760 = vmatprep.subr.bf16.mxu0 0
    %761 = vmatpush2.bf16.xpose.msra.mxu0 0
    %762 = vmatprep.subr.bf16.mxu0 0
    %763 = vmatpush2.bf16.xpose.msra.mxu0 0
    %764 = vmatprep.subr.bf16.mxu0 0
    %765 = vmatpush2.bf16.xpose.msra.mxu0 0
    %766 = vmatprep.subr.bf16.mxu0 0
    %767 = vmatpush2.bf16.xpose.msra.mxu0 0
    %768 = vmatprep.subr.bf16.mxu0 0
    %769 = vmatpush2.bf16.xpose.msra.mxu0 0
    %770 = vmatprep.subr.bf16.mxu0 0
    %771 = vmatpush2.bf16.xpose.msra.mxu0 0
    %772 = vmatprep.subr.bf16.mxu0 0
    %773 = vmatpush2.bf16.xpose.msra.mxu0 0
    %774 = vmatprep.mubr.bf16.mxu0 0
    %775 = vmatmul.mubr.bf16.gmra.mxu0 %v736
    %v776 = vpop.f32.mrf.mxu0
    %v777 = vadd.f32 %v389, %v776
    %v778 = vpop.f32.mrf.mxu0
    %v779 = vpop.f32.mrf.mxu0
    %v780 = vadd.f32 %v390, %v779
    %v781 = vpop.f32.mrf.mxu0
    %782 = vmatprep.mubr.bf16.mxu0 0
    %783 = vmatmul.mubr.bf16.gmra.mxu0 %v737
    %v784 = vpop.f32.mrf.mxu0
    %v785 = vadd.f32 %v391, %v784
    %v786 = vpop.f32.mrf.mxu0
    %v787 = vpop.f32.mrf.mxu0
    %v788 = vadd.f32 %v392, %v787
    %v789 = vpop.f32.mrf.mxu0
    %790 = vdwg.mxu0
    %vm791 = vcmask 261120
    %v792 = vsel %vm791, %v777, -inf
    %793 = vmax.xlane.f32.xlu0 %v792
    %v794 = vpop.xlane.xlu0 %793
    %v795 = vsel %vm791, %v780, -inf
    %796 = vmax.xlane.f32.xlu0 %v795
    %v797 = vpop.xlane.xlu0 %796
    %v798 = vsel %vm791, %v785, -inf
    %799 = vmax.xlane.f32.xlu0 %v798
    %v800 = vpop.xlane.xlu0 %799
    %v801 = vsel %vm791, %v788, -inf
    %802 = vmax.xlane.f32.xlu0 %v801
    %v803 = vpop.xlane.xlu0 %802
    %v804 = vsub.f32 %v777, %v794
    %v805 = vsub.f32 %v780, %v797
    %v806 = vsub.f32 %v785, %v800
    %v807 = vsub.f32 %v788, %v803
    %v808 = vmul.f32 %v804, 1.442695
    %v809 = vpow.pop %v808
    %v810 = vmul.f32 %v805, 1.442695
    %v811 = vpow.pop %v810
    %v812 = vmul.f32 %v806, 1.442695
    %v813 = vpow.pop %v812
    %v814 = vmul.f32 %v807, 1.442695
    %v815 = vpow.pop %v814
    %v816 = vsel %vm791, %v809, 0.0
    %817 = vadd.xlane.f32.xlu0 %v816
    %v818 = vpop.xlane.xlu0 %817
    %v819 = vsel %vm791, %v811, 0.0
    %820 = vadd.xlane.f32.xlu0 %v819
    %v821 = vpop.xlane.xlu0 %820
    %v822 = vsel %vm791, %v813, 0.0
    %823 = vadd.xlane.f32.xlu0 %v822
    %v824 = vpop.xlane.xlu0 %823
    %v825 = vsel %vm791, %v815, 0.0
    %826 = vadd.xlane.f32.xlu0 %v825
    %v827 = vpop.xlane.xlu0 %826
    %v828 = vrcp.pop %v818
    %v829 = vmul.f32 %v809, %v828
    %v830 = vrcp.pop %v821
    %v831 = vmul.f32 %v811, %v830
    %v832 = vrcp.pop %v824
    %v833 = vmul.f32 %v813, %v832
    %v834 = vrcp.pop %v827
    %v835 = vmul.f32 %v815, %v834
    %v836 = vpack.c.bf16 %v831, %v829
    %v837 = vpack.c.bf16 %v835, %v833
    %v839 = vsel %vm791, %v836, 0
    %v842 = vsel %vm791, %v837, 0
    %844 = vmatprep.subr.bf16.mxu0 0
    %845 = vmatpush1.bf16.msra.mxu0 0
    %846 = vmatprep.subr.bf16.mxu0 0
    %847 = vmatpush1.bf16.msra.mxu0 0
    %848 = vmatprep.subr.bf16.mxu0 0
    %849 = vmatpush1.bf16.msra.mxu0 0
    %850 = vmatprep.subr.bf16.mxu0 0
    %851 = vmatpush1.bf16.msra.mxu0 0
    %852 = vmatprep.subr.bf16.mxu0 0
    %853 = vmatpush1.bf16.msra.mxu0 0
    %854 = vmatprep.subr.bf16.mxu0 0
    %855 = vmatpush1.bf16.msra.mxu0 0
    %856 = vmatprep.subr.bf16.mxu0 0
    %857 = vmatpush1.bf16.msra.mxu0 %v741
    %858 = vmatprep.subr.bf16.mxu0 0
    %859 = vmatpush1.bf16.msra.mxu0 %v740
    %860 = vmatprep.subr.bf16.mxu0 0
    %861 = vmatpush2.bf16.msra.mxu0 0
    %862 = vmatprep.subr.bf16.mxu0 0
    %863 = vmatpush2.bf16.msra.mxu0 0
    %864 = vmatprep.subr.bf16.mxu0 0
    %865 = vmatpush2.bf16.msra.mxu0 0
    %866 = vmatprep.subr.bf16.mxu0 0
    %867 = vmatpush2.bf16.msra.mxu0 0
    %868 = vmatprep.subr.bf16.mxu0 0
    %869 = vmatpush2.bf16.msra.mxu0 0
    %870 = vmatprep.subr.bf16.mxu0 0
    %871 = vmatpush2.bf16.msra.mxu0 0
    %872 = vmatprep.subr.bf16.mxu0 0
    %873 = vmatpush2.bf16.msra.mxu0 0
    %874 = vmatprep.subr.bf16.mxu0 0
    %875 = vmatpush2.bf16.msra.mxu0 0
    %876 = vmatprep.mubr.bf16.mxu0 0
    %877 = vmatmul.mubr.bf16.gmra.mxu0 %v839
    %v878 = vpop.f32.mrf.mxu0
    %v879 = vadd.f32 0.0, %v878
    %v880 = vpop.f32.mrf.mxu0
    %v881 = vpop.f32.mrf.mxu0
    %v882 = vadd.f32 0.0, %v881
    %v883 = vpop.f32.mrf.mxu0
    %884 = vmatprep.mubr.bf16.mxu0 0
    %885 = vmatmul.mubr.bf16.gmra.mxu0 %v842
    %v886 = vpop.f32.mrf.mxu0
    %v887 = vadd.f32 0.0, %v886
    %v888 = vpop.f32.mrf.mxu0
    %v889 = vpop.f32.mrf.mxu0
    %v890 = vadd.f32 0.0, %v889
    %v891 = vpop.f32.mrf.mxu0
    %892 = vdwg.mxu0
    %v893 = vpack.c.bf16 %v882, %v879
    %v894 = vpack.c.bf16 %v890, %v887
    %v895 = vld [vmem:[%s10] sm:$0xf]
    %v896 = vld [vmem:[%s10 + $0x4] sm:$0xf]
    %v897 = vld [vmem:[%s10 + $0x8] sm:$0xf]
    %v898 = vld [vmem:[%s10 + $0xc] sm:$0xf]
    %v899 = vld [vmem:[%s10 + $0x10] sm:$0xf]
    %v900 = vld [vmem:[%s10 + $0x14] sm:$0xf]
    %v901 = vld [vmem:[%s10 + $0x18] sm:$0xf]
    %v902 = vld [vmem:[%s10 + $0x1c] sm:$0xf]
    %v903 = vld [vmem:[%s10 + $0x20] sm:$0xf]
    %v904 = vld [vmem:[%s10 + $0x24] sm:$0xf]
    %v905 = vld [vmem:[%s10 + $0x28] sm:$0xf]
    %v906 = vld [vmem:[%s10 + $0x2c] sm:$0xf]
    %v907 = vld [vmem:[%s10 + $0x30] sm:$0xf]
    %v908 = vld [vmem:[%s10 + $0x34] sm:$0xf]
    %v909 = vld [vmem:[%s10 + $0x38] sm:$0xf]
    %v910 = vld [vmem:[%s10 + $0x3c] sm:$0xf]
    %v911 = vpack.c.bf16 %v671, %v667
    %v912 = vpack.c.bf16 %v681, %v677
    %v913 = vpack.c.bf16 %v722, %v718
    %v914 = vpack.c.bf16 %v732, %v728
    %v915 = vpack.c.bf16 %v724, %v720
    %v916 = vpack.c.bf16 %v734, %v730
    %917 = vmatprep.subr.bf16.mxu0 0
    %918 = vmatpush1.bf16.xpose.msra.mxu0 0
    %919 = vmatprep.subr.bf16.mxu0 0
    %920 = vmatpush1.bf16.xpose.msra.mxu0 0
    %921 = vmatprep.subr.bf16.mxu0 0
    %922 = vmatpush1.bf16.xpose.msra.mxu0 0
    %923 = vmatprep.subr.bf16.mxu0 0
    %924 = vmatpush1.bf16.xpose.msra.mxu0 0
    %925 = vmatprep.subr.bf16.mxu0 0
    %926 = vmatpush1.bf16.xpose.msra.mxu0 0
    %927 = vmatprep.subr.bf16.mxu0 0
    %928 = vmatpush1.bf16.xpose.msra.mxu0 0
    %929 = vmatprep.subr.bf16.mxu0 0
    %930 = vmatpush1.bf16.xpose.msra.mxu0 %v914
    %931 = vmatprep.subr.bf16.mxu0 0
    %932 = vmatpush1.bf16.xpose.msra.mxu0 %v913
    %933 = vmatprep.subr.bf16.mxu0 0
    %934 = vmatpush2.bf16.xpose.msra.mxu0 0
    %935 = vmatprep.subr.bf16.mxu0 0
    %936 = vmatpush2.bf16.xpose.msra.mxu0 0
    %937 = vmatprep.subr.bf16.mxu0 0
    %938 = vmatpush2.bf16.xpose.msra.mxu0 0
    %939 = vmatprep.subr.bf16.mxu0 0
    %940 = vmatpush2.bf16.xpose.msra.mxu0 0
    %941 = vmatprep.subr.bf16.mxu0 0
    %942 = vmatpush2.bf16.xpose.msra.mxu0 0
    %943 = vmatprep.subr.bf16.mxu0 0
    %944 = vmatpush2.bf16.xpose.msra.mxu0 0
    %945 = vmatprep.subr.bf16.mxu0 0
    %946 = vmatpush2.bf16.xpose.msra.mxu0 0
    %947 = vmatprep.subr.bf16.mxu0 0
    %948 = vmatpush2.bf16.xpose.msra.mxu0 0
    %949 = vmatprep.mubr.bf16.mxu0 0
    %950 = vmatmul.mubr.bf16.gmra.mxu0 %v911
    %v951 = vpop.f32.mrf.mxu0
    %v952 = vadd.f32 %v389, %v951
    %v953 = vpop.f32.mrf.mxu0
    %v954 = vpop.f32.mrf.mxu0
    %v955 = vadd.f32 %v390, %v954
    %v956 = vpop.f32.mrf.mxu0
    %957 = vmatprep.mubr.bf16.mxu0 0
    %958 = vmatmul.mubr.bf16.gmra.mxu0 %v912
    %v959 = vpop.f32.mrf.mxu0
    %v960 = vadd.f32 %v391, %v959
    %v961 = vpop.f32.mrf.mxu0
    %v962 = vpop.f32.mrf.mxu0
    %v963 = vadd.f32 %v392, %v962
    %v964 = vpop.f32.mrf.mxu0
    %965 = vdwg.mxu0
    %v966 = vsel %vm791, %v952, -inf
    %967 = vmax.xlane.f32.xlu0 %v966
    %v968 = vpop.xlane.xlu0 %967
    %v969 = vsel %vm791, %v955, -inf
    %970 = vmax.xlane.f32.xlu0 %v969
    %v971 = vpop.xlane.xlu0 %970
    %v972 = vsel %vm791, %v960, -inf
    %973 = vmax.xlane.f32.xlu0 %v972
    %v974 = vpop.xlane.xlu0 %973
    %v975 = vsel %vm791, %v963, -inf
    %976 = vmax.xlane.f32.xlu0 %v975
    %v977 = vpop.xlane.xlu0 %976
    %v978 = vsub.f32 %v952, %v968
    %v979 = vsub.f32 %v955, %v971
    %v980 = vsub.f32 %v960, %v974
    %v981 = vsub.f32 %v963, %v977
    %v982 = vmul.f32 %v978, 1.442695
    %v983 = vpow.pop %v982
    %v984 = vmul.f32 %v979, 1.442695
    %v985 = vpow.pop %v984
    %v986 = vmul.f32 %v980, 1.442695
    %v987 = vpow.pop %v986
    %v988 = vmul.f32 %v981, 1.442695
    %v989 = vpow.pop %v988
    %v990 = vsel %vm791, %v983, 0.0
    %991 = vadd.xlane.f32.xlu0 %v990
    %v992 = vpop.xlane.xlu0 %991
    %v993 = vsel %vm791, %v985, 0.0
    %994 = vadd.xlane.f32.xlu0 %v993
    %v995 = vpop.xlane.xlu0 %994
    %v996 = vsel %vm791, %v987, 0.0
    %997 = vadd.xlane.f32.xlu0 %v996
    %v998 = vpop.xlane.xlu0 %997
    %v999 = vsel %vm791, %v989, 0.0
    %1000 = vadd.xlane.f32.xlu0 %v999
    %v1001 = vpop.xlane.xlu0 %1000
    %v1002 = vrcp.pop %v992
    %v1003 = vmul.f32 %v983, %v1002
    %v1004 = vrcp.pop %v995
    %v1005 = vmul.f32 %v985, %v1004
    %v1006 = vrcp.pop %v998
    %v1007 = vmul.f32 %v987, %v1006
    %v1008 = vrcp.pop %v1001
    %v1009 = vmul.f32 %v989, %v1008
    %v1010 = vpack.c.bf16 %v1005, %v1003
    %v1011 = vpack.c.bf16 %v1009, %v1007
    %v1013 = vsel %vm791, %v1010, 0
    %v1016 = vsel %vm791, %v1011, 0
    %1018 = vmatprep.subr.bf16.mxu0 0
    %1019 = vmatpush1.bf16.msra.mxu0 0
    %1020 = vmatprep.subr.bf16.mxu0 0
    %1021 = vmatpush1.bf16.msra.mxu0 0
    %1022 = vmatprep.subr.bf16.mxu0 0
    %1023 = vmatpush1.bf16.msra.mxu0 0
    %1024 = vmatprep.subr.bf16.mxu0 0
    %1025 = vmatpush1.bf16.msra.mxu0 0
    %1026 = vmatprep.subr.bf16.mxu0 0
    %1027 = vmatpush1.bf16.msra.mxu0 0
    %1028 = vmatprep.subr.bf16.mxu0 0
    %1029 = vmatpush1.bf16.msra.mxu0 0
    %1030 = vmatprep.subr.bf16.mxu0 0
    %1031 = vmatpush1.bf16.msra.mxu0 %v916
    %1032 = vmatprep.subr.bf16.mxu0 0
    %1033 = vmatpush1.bf16.msra.mxu0 %v915
    %1034 = vmatprep.subr.bf16.mxu0 0
    %1035 = vmatpush2.bf16.msra.mxu0 0
    %1036 = vmatprep.subr.bf16.mxu0 0
    %1037 = vmatpush2.bf16.msra.mxu0 0
    %1038 = vmatprep.subr.bf16.mxu0 0
    %1039 = vmatpush2.bf16.msra.mxu0 0
    %1040 = vmatprep.subr.bf16.mxu0 0
    %1041 = vmatpush2.bf16.msra.mxu0 0
    %1042 = vmatprep.subr.bf16.mxu0 0
    %1043 = vmatpush2.bf16.msra.mxu0 0
    %1044 = vmatprep.subr.bf16.mxu0 0
    %1045 = vmatpush2.bf16.msra.mxu0 0
    %1046 = vmatprep.subr.bf16.mxu0 0
    %1047 = vmatpush2.bf16.msra.mxu0 0
    %1048 = vmatprep.subr.bf16.mxu0 0
    %1049 = vmatpush2.bf16.msra.mxu0 0
    %1050 = vmatprep.mubr.bf16.mxu0 0
    %1051 = vmatmul.mubr.bf16.gmra.mxu0 %v1013
    %v1052 = vpop.f32.mrf.mxu0
    %v1053 = vadd.f32 0.0, %v1052
    %v1054 = vpop.f32.mrf.mxu0
    %v1055 = vpop.f32.mrf.mxu0
    %v1056 = vadd.f32 0.0, %v1055
    %v1057 = vpop.f32.mrf.mxu0
    %1058 = vmatprep.mubr.bf16.mxu0 0
    %1059 = vmatmul.mubr.bf16.gmra.mxu0 %v1016
    %v1060 = vpop.f32.mrf.mxu0
    %v1061 = vadd.f32 0.0, %v1060
    %v1062 = vpop.f32.mrf.mxu0
    %v1063 = vpop.f32.mrf.mxu0
    %v1064 = vadd.f32 0.0, %v1063
    %v1065 = vpop.f32.mrf.mxu0
    %1066 = vdwg.mxu0
    %v1067 = vpack.c.bf16 %v1056, %v1053
    %v1068 = vpack.c.bf16 %v1064, %v1061
    %s1069 = scalar_lea.vmem %s10, 64
    %v1070 = vld [vmem:[%s1069] sm:$0xf]
    %v1071 = vld [vmem:[%s1069 + $0x4] sm:$0xf]
    %v1072 = vld [vmem:[%s1069 + $0x8] sm:$0xf]
    %v1073 = vld [vmem:[%s1069 + $0xc] sm:$0xf]
    %v1074 = vld [vmem:[%s1069 + $0x10] sm:$0xf]
    %v1075 = vld [vmem:[%s1069 + $0x14] sm:$0xf]
    %v1076 = vld [vmem:[%s1069 + $0x18] sm:$0xf]
    %v1077 = vld [vmem:[%s1069 + $0x1c] sm:$0xf]
    %v1078 = vld [vmem:[%s1069 + $0x20] sm:$0xf]
    %v1079 = vld [vmem:[%s1069 + $0x24] sm:$0xf]
    %v1080 = vld [vmem:[%s1069 + $0x28] sm:$0xf]
    %v1081 = vld [vmem:[%s1069 + $0x2c] sm:$0xf]
    %v1082 = vld [vmem:[%s1069 + $0x30] sm:$0xf]
    %v1083 = vld [vmem:[%s1069 + $0x34] sm:$0xf]
    %v1084 = vld [vmem:[%s1069 + $0x38] sm:$0xf]
    %v1085 = vld [vmem:[%s1069 + $0x3c] sm:$0xf]
    %v1102 = vunpack.c.l.b16 %v1070
    %v1103 = vunpack.c.l.b16 %v1071
    %v1104 = vunpack.c.l.b16 %v1072
    %v1105 = vunpack.c.l.b16 %v1073
    %v1106 = vunpack.c.l.b16 %v1074
    %v1107 = vunpack.c.l.b16 %v1075
    %v1108 = vunpack.c.l.b16 %v1076
    %v1109 = vunpack.c.l.b16 %v1077
    %v1110 = vunpack.c.l.b16 %v1078
    %v1111 = vunpack.c.l.b16 %v1079
    %v1112 = vunpack.c.l.b16 %v1080
    %v1113 = vunpack.c.l.b16 %v1081
    %v1114 = vunpack.c.l.b16 %v1082
    %v1115 = vunpack.c.l.b16 %v1083
    %v1116 = vunpack.c.l.b16 %v1084
    %v1117 = vunpack.c.l.b16 %v1085
    %v1118 = vpack.c.b16 %v1103, %v1102
    %v1119 = vpack.c.b16 %v1105, %v1104
    %v1120 = vpack.c.b16 %v1107, %v1106
    %v1121 = vpack.c.b16 %v1109, %v1108
    %v1122 = vpack.c.b16 %v1111, %v1110
    %v1123 = vpack.c.b16 %v1113, %v1112
    %v1124 = vpack.c.b16 %v1115, %v1114
    %v1125 = vpack.c.b16 %v1117, %v1116
    %1134 = vmatprep.subr.bf16.mxu0 0
    %1135 = vmatpush1.bf16.msra.mxu0 %v1125
    %1136 = vmatprep.subr.bf16.mxu0 0
    %1137 = vmatpush1.bf16.msra.mxu0 %v1124
    %1138 = vmatprep.subr.bf16.mxu0 0
    %1139 = vmatpush1.bf16.msra.mxu0 %v1123
    %1140 = vmatprep.subr.bf16.mxu0 0
    %1141 = vmatpush1.bf16.msra.mxu0 %v1122
    %1142 = vmatprep.subr.bf16.mxu0 0
    %1143 = vmatpush1.bf16.msra.mxu0 %v1121
    %1144 = vmatprep.subr.bf16.mxu0 0
    %1145 = vmatpush1.bf16.msra.mxu0 %v1120
    %1146 = vmatprep.subr.bf16.mxu0 0
    %1147 = vmatpush1.bf16.msra.mxu0 %v1119
    %1148 = vmatprep.subr.bf16.mxu0 0
    %1149 = vmatpush1.bf16.msra.mxu0 %v1118
    %1150 = vmatprep.subr.bf16.mxu0 0
    %1151 = vmatpush2.bf16.msra.mxu0 0
    %1152 = vmatprep.subr.bf16.mxu0 0
    %1153 = vmatpush2.bf16.msra.mxu0 0
    %1154 = vmatprep.subr.bf16.mxu0 0
    %1155 = vmatpush2.bf16.msra.mxu0 0
    %1156 = vmatprep.subr.bf16.mxu0 0
    %1157 = vmatpush2.bf16.msra.mxu0 0
    %1158 = vmatprep.subr.bf16.mxu0 0
    %1159 = vmatpush2.bf16.msra.mxu0 0
    %1160 = vmatprep.subr.bf16.mxu0 0
    %1161 = vmatpush2.bf16.msra.mxu0 0
    %1162 = vmatprep.subr.bf16.mxu0 0
    %1163 = vmatpush2.bf16.msra.mxu0 0
    %1164 = vmatprep.subr.bf16.mxu0 0
    %1165 = vmatpush2.bf16.msra.mxu0 0
    %1166 = vmatprep.mubr.bf16.mxu0 0
    %1167 = vmatmul.mubr.bf16.gmra.mxu0 %v1067
    %v1168 = vpop.f32.mrf.mxu0
    %v1169 = vadd.f32 0.0, %v1168
    %v1170 = vpop.f32.mrf.mxu0
    %v1171 = vpop.f32.mrf.mxu0
    %v1172 = vadd.f32 0.0, %v1171
    %v1173 = vpop.f32.mrf.mxu0
    %1174 = vmatprep.mubr.bf16.mxu0 0
    %1175 = vmatmul.mubr.bf16.gmra.mxu0 %v1068
    %v1176 = vpop.f32.mrf.mxu0
    %v1177 = vadd.f32 0.0, %v1176
    %v1178 = vpop.f32.mrf.mxu0
    %v1179 = vpop.f32.mrf.mxu0
    %v1180 = vadd.f32 0.0, %v1179
    %v1181 = vpop.f32.mrf.mxu0
    %1182 = vdwg.mxu0
    %v1199 = vunpack.c.l.b16 %v895
    %v1200 = vunpack.c.l.b16 %v896
    %v1201 = vunpack.c.l.b16 %v897
    %v1202 = vunpack.c.l.b16 %v898
    %v1203 = vunpack.c.l.b16 %v899
    %v1204 = vunpack.c.l.b16 %v900
    %v1205 = vunpack.c.l.b16 %v901
    %v1206 = vunpack.c.l.b16 %v902
    %v1207 = vunpack.c.l.b16 %v903
    %v1208 = vunpack.c.l.b16 %v904
    %v1209 = vunpack.c.l.b16 %v905
    %v1210 = vunpack.c.l.b16 %v906
    %v1211 = vunpack.c.l.b16 %v907
    %v1212 = vunpack.c.l.b16 %v908
    %v1213 = vunpack.c.l.b16 %v909
    %v1214 = vunpack.c.l.b16 %v910
    %v1215 = vpack.c.b16 %v1200, %v1199
    %v1216 = vpack.c.b16 %v1202, %v1201
    %v1217 = vpack.c.b16 %v1204, %v1203
    %v1218 = vpack.c.b16 %v1206, %v1205
    %v1219 = vpack.c.b16 %v1208, %v1207
    %v1220 = vpack.c.b16 %v1210, %v1209
    %v1221 = vpack.c.b16 %v1212, %v1211
    %v1222 = vpack.c.b16 %v1214, %v1213
    %1231 = vmatprep.subr.bf16.mxu0 0
    %1232 = vmatpush1.bf16.msra.mxu0 %v1222
    %1233 = vmatprep.subr.bf16.mxu0 0
    %1234 = vmatpush1.bf16.msra.mxu0 %v1221
    %1235 = vmatprep.subr.bf16.mxu0 0
    %1236 = vmatpush1.bf16.msra.mxu0 %v1220
    %1237 = vmatprep.subr.bf16.mxu0 0
    %1238 = vmatpush1.bf16.msra.mxu0 %v1219
    %1239 = vmatprep.subr.bf16.mxu0 0
    %1240 = vmatpush1.bf16.msra.mxu0 %v1218
    %1241 = vmatprep.subr.bf16.mxu0 0
    %1242 = vmatpush1.bf16.msra.mxu0 %v1217
    %1243 = vmatprep.subr.bf16.mxu0 0
    %1244 = vmatpush1.bf16.msra.mxu0 %v1216
    %1245 = vmatprep.subr.bf16.mxu0 0
    %1246 = vmatpush1.bf16.msra.mxu0 %v1215
    %1247 = vmatprep.subr.bf16.mxu0 0
    %1248 = vmatpush2.bf16.msra.mxu0 0
    %1249 = vmatprep.subr.bf16.mxu0 0
    %1250 = vmatpush2.bf16.msra.mxu0 0
    %1251 = vmatprep.subr.bf16.mxu0 0
    %1252 = vmatpush2.bf16.msra.mxu0 0
    %1253 = vmatprep.subr.bf16.mxu0 0
    %1254 = vmatpush2.bf16.msra.mxu0 0
    %1255 = vmatprep.subr.bf16.mxu0 0
    %1256 = vmatpush2.bf16.msra.mxu0 0
    %1257 = vmatprep.subr.bf16.mxu0 0
    %1258 = vmatpush2.bf16.msra.mxu0 0
    %1259 = vmatprep.subr.bf16.mxu0 0
    %1260 = vmatpush2.bf16.msra.mxu0 0
    %1261 = vmatprep.subr.bf16.mxu0 0
    %1262 = vmatpush2.bf16.msra.mxu0 0
    %1263 = vmatprep.mubr.bf16.mxu0 0
    %1264 = vmatmul.mubr.bf16.gmra.mxu0 %v893
    %v1265 = vpop.f32.mrf.mxu0
    %v1266 = vadd.f32 %v1169, %v1265
    %v1267 = vpop.f32.mrf.mxu0
    %v1268 = vpop.f32.mrf.mxu0
    %v1269 = vadd.f32 %v1172, %v1268
    %v1270 = vpop.f32.mrf.mxu0
    %1271 = vmatprep.mubr.bf16.mxu0 0
    %1272 = vmatmul.mubr.bf16.gmra.mxu0 %v894
    %v1273 = vpop.f32.mrf.mxu0
    %v1274 = vadd.f32 %v1177, %v1273
    %v1275 = vpop.f32.mrf.mxu0
    %v1276 = vpop.f32.mrf.mxu0
    %v1277 = vadd.f32 %v1180, %v1276
    %v1278 = vpop.f32.mrf.mxu0
    %1279 = vdwg.mxu0
    %v1280 = vld [vmem:[%s11] sm:$0x1]
    %v1282 = vlaneseq
    %v1283 = vshrl.u32 %v1282, 7
    %v1284 = vsub.s32 0, %v1283
    %v1285 = vrot.slane %v1280, %v1284
    %v1287 = vadd.f32 %v1266, %v1285
    %v1288 = vadd.f32 %v1269, %v1285
    %v1289 = vadd.f32 %v1274, %v1285
    %v1290 = vadd.f32 %v1277, %v1285
    %v1291 = vadd.f32 %v1287, %v385
    %v1292 = vadd.f32 %v1288, %v386
    %v1293 = vadd.f32 %v1289, %v387
    %v1294 = vadd.f32 %v1290, %v388
    %v1295 = vld [vmem:[%s12] sm:$0x1]
    %v1296 = vld [vmem:[%s13] sm:$0x1]
    %v1297 = vsel %vm315, %v1291, 0.0
    %1298 = vadd.xlane.f32.xlu0 %v1297
    %v1299 = vpop.xlane.xlu0 %1298
    %v1300 = vsel %vm315, %v1292, 0.0
    %1301 = vadd.xlane.f32.xlu0 %v1300
    %v1302 = vpop.xlane.xlu0 %1301
    %v1303 = vsel %vm315, %v1293, 0.0
    %1304 = vadd.xlane.f32.xlu0 %v1303
    %v1305 = vpop.xlane.xlu0 %1304
    %v1306 = vsel %vm315, %v1294, 0.0
    %1307 = vadd.xlane.f32.xlu0 %v1306
    %v1308 = vpop.xlane.xlu0 %1307
    %v1309 = vmul.f32 %v1299, %v328
    %v1310 = vmul.f32 %v1302, %v328
    %v1311 = vmul.f32 %v1305, %v328
    %v1312 = vmul.f32 %v1308, %v328
    %v1313 = vsub.f32 %v1291, %v1309
    %v1314 = vsub.f32 %v1292, %v1310
    %v1315 = vsub.f32 %v1293, %v1311
    %v1316 = vsub.f32 %v1294, %v1312
    %v1317 = vmul.f32 %v1313, %v1313
    %v1318 = vmul.f32 %v1314, %v1314
    %v1319 = vmul.f32 %v1315, %v1315
    %v1320 = vmul.f32 %v1316, %v1316
    %v1321 = vsel %vm315, %v1317, 0.0
    %1322 = vadd.xlane.f32.xlu0 %v1321
    %v1323 = vpop.xlane.xlu0 %1322
    %v1324 = vsel %vm315, %v1318, 0.0
    %1325 = vadd.xlane.f32.xlu0 %v1324
    %v1326 = vpop.xlane.xlu0 %1325
    %v1327 = vsel %vm315, %v1319, 0.0
    %1328 = vadd.xlane.f32.xlu0 %v1327
    %v1329 = vpop.xlane.xlu0 %1328
    %v1330 = vsel %vm315, %v1320, 0.0
    %1331 = vadd.xlane.f32.xlu0 %v1330
    %v1332 = vpop.xlane.xlu0 %1331
    %v1333 = vmul.f32 %v1323, %v328
    %v1334 = vmul.f32 %v1326, %v328
    %v1335 = vmul.f32 %v1329, %v328
    %v1336 = vmul.f32 %v1332, %v328
    %v1337 = vadd.f32 %v1333, 1e-12
    %v1338 = vadd.f32 %v1334, 1e-12
    %v1339 = vadd.f32 %v1335, 1e-12
    %v1340 = vadd.f32 %v1336, 1e-12
    %v1341 = vrsqrt.pop %v1337
    %v1342 = vrsqrt.pop %v1338
    %v1343 = vrsqrt.pop %v1339
    %v1344 = vrsqrt.pop %v1340
    %v1345 = vmul.f32 %v1313, %v1341
    %v1346 = vmul.f32 %v1314, %v1342
    %v1347 = vmul.f32 %v1315, %v1343
    %v1348 = vmul.f32 %v1316, %v1344
    %v1350 = vlaneseq
    %v1351 = vshrl.u32 %v1350, 7
    %v1352 = vsub.s32 0, %v1351
    %v1353 = vrot.slane %v1295, %v1352
    %v1355 = vmul.f32 %v1345, %v1353
    %v1356 = vmul.f32 %v1346, %v1353
    %v1357 = vmul.f32 %v1347, %v1353
    %v1358 = vmul.f32 %v1348, %v1353
    %v1360 = vlaneseq
    %v1361 = vshrl.u32 %v1360, 7
    %v1362 = vsub.s32 0, %v1361
    %v1363 = vrot.slane %v1296, %v1362
    %v1365 = vadd.f32 %v1355, %v1363
    %v1366 = vadd.f32 %v1356, %v1363
    %v1367 = vadd.f32 %v1357, %v1363
    %v1368 = vadd.f32 %v1358, %v1363
    %v1369 = vpack.c.bf16 %v1366, %v1365
    %v1370 = vpack.c.bf16 %v1368, %v1367
    %v1371 = vld [vmem:[%s14] sm:$0xff]
    %v1372 = vld [vmem:[%s14 + $0x8] sm:$0xff]
    %v1373 = vld [vmem:[%s14 + $0x10] sm:$0xff]
    %v1374 = vld [vmem:[%s14 + $0x18] sm:$0xff]
    %v1375 = vld [vmem:[%s14 + $0x20] sm:$0xff]
    %v1376 = vld [vmem:[%s14 + $0x28] sm:$0xff]
    %v1377 = vld [vmem:[%s14 + $0x30] sm:$0xff]
    %v1378 = vld [vmem:[%s14 + $0x38] sm:$0xff]
    %v1379 = vld [vmem:[%s15] sm:$0x3]
    %v1381 = vlaneseq
    %v1382 = vshrl.u32 %v1381, 7
    %v1383 = vsub.s32 0, %v1382
    %v1384 = vrot.slane %v1379, %v1383
    %v1385 = vlaneseq
    %v1386 = vshrl.u32 %v1385, 7
    %v1387 = vsub.s32 1, %v1386
    %v1388 = vrot.slane %v1379, %v1387
    %v1399 = vunpack.c.l.b16 %v1371
    %v1400 = vunpack.c.h.b16 %v1371
    %v1401 = vunpack.c.l.b16 %v1372
    %v1402 = vunpack.c.h.b16 %v1372
    %v1403 = vunpack.c.l.b16 %v1373
    %v1404 = vunpack.c.h.b16 %v1373
    %v1405 = vunpack.c.l.b16 %v1374
    %v1406 = vunpack.c.h.b16 %v1374
    %v1407 = vunpack.c.l.b16 %v1375
    %v1408 = vunpack.c.h.b16 %v1375
    %v1409 = vunpack.c.l.b16 %v1376
    %v1410 = vunpack.c.h.b16 %v1376
    %v1411 = vunpack.c.l.b16 %v1377
    %v1412 = vunpack.c.h.b16 %v1377
    %v1413 = vunpack.c.l.b16 %v1378
    %v1414 = vunpack.c.h.b16 %v1378
    %v1415 = vpack.c.b16 %v1401, %v1399
    %v1416 = vpack.c.b16 %v1402, %v1400
    %v1417 = vpack.c.b16 %v1405, %v1403
    %v1418 = vpack.c.b16 %v1406, %v1404
    %v1419 = vpack.c.b16 %v1409, %v1407
    %v1420 = vpack.c.b16 %v1410, %v1408
    %v1421 = vpack.c.b16 %v1413, %v1411
    %v1422 = vpack.c.b16 %v1414, %v1412
    %v1432 = vsel %vm315, %v1369, 0
    %v1435 = vsel %vm315, %v1370, 0
    %1437 = vmatprep.subr.bf16.mxu0 0
    %1438 = vmatpush1.bf16.msra.mxu0 0
    %1439 = vmatprep.subr.bf16.mxu0 0
    %1440 = vmatpush1.bf16.msra.mxu0 0
    %1441 = vmatprep.subr.bf16.mxu0 0
    %1442 = vmatpush1.bf16.msra.mxu0 0
    %1443 = vmatprep.subr.bf16.mxu0 0
    %1444 = vmatpush1.bf16.msra.mxu0 0
    %1445 = vmatprep.subr.bf16.mxu0 %v1422
    %1446 = vmatpush1.bf16.msra.mxu0 %v1421
    %1447 = vmatprep.subr.bf16.mxu0 %v1420
    %1448 = vmatpush1.bf16.msra.mxu0 %v1419
    %1449 = vmatprep.subr.bf16.mxu0 %v1418
    %1450 = vmatpush1.bf16.msra.mxu0 %v1417
    %1451 = vmatprep.subr.bf16.mxu0 %v1416
    %1452 = vmatpush1.bf16.msra.mxu0 %v1415
    %1453 = vmatprep.subr.bf16.mxu0 0
    %1454 = vmatpush2.bf16.msra.mxu0 0
    %1455 = vmatprep.subr.bf16.mxu0 0
    %1456 = vmatpush2.bf16.msra.mxu0 0
    %1457 = vmatprep.subr.bf16.mxu0 0
    %1458 = vmatpush2.bf16.msra.mxu0 0
    %1459 = vmatprep.subr.bf16.mxu0 0
    %1460 = vmatpush2.bf16.msra.mxu0 0
    %1461 = vmatprep.subr.bf16.mxu0 0
    %1462 = vmatpush2.bf16.msra.mxu0 0
    %1463 = vmatprep.subr.bf16.mxu0 0
    %1464 = vmatpush2.bf16.msra.mxu0 0
    %1465 = vmatprep.subr.bf16.mxu0 0
    %1466 = vmatpush2.bf16.msra.mxu0 0
    %1467 = vmatprep.subr.bf16.mxu0 0
    %1468 = vmatpush2.bf16.msra.mxu0 0
    %1469 = vmatprep.mubr.bf16.mxu0 0
    %1470 = vmatmul.mubr.bf16.gmra.mxu0 %v1432
    %v1471 = vpop.f32.mrf.mxu0
    %v1472 = vadd.f32 %v1384, %v1471
    %v1473 = vpop.f32.mrf.mxu0
    %v1474 = vadd.f32 %v1388, %v1473
    %v1475 = vpop.f32.mrf.mxu0
    %v1476 = vadd.f32 %v1384, %v1475
    %v1477 = vpop.f32.mrf.mxu0
    %v1478 = vadd.f32 %v1388, %v1477
    %1479 = vmatprep.mubr.bf16.mxu0 0
    %1480 = vmatmul.mubr.bf16.gmra.mxu0 %v1435
    %v1481 = vpop.f32.mrf.mxu0
    %v1482 = vadd.f32 %v1384, %v1481
    %v1483 = vpop.f32.mrf.mxu0
    %v1484 = vadd.f32 %v1388, %v1483
    %v1485 = vpop.f32.mrf.mxu0
    %v1486 = vadd.f32 %v1384, %v1485
    %v1487 = vpop.f32.mrf.mxu0
    %v1488 = vadd.f32 %v1388, %v1487
    %1489 = vdwg.mxu0
    %v1490 = vmul.f32 %v1472, 0.5
    %v1491 = vmul.f32 %v1474, 0.5
    %v1492 = vmul.f32 %v1476, 0.5
    %v1493 = vmul.f32 %v1478, 0.5
    %v1494 = vmul.f32 %v1482, 0.5
    %v1495 = vmul.f32 %v1484, 0.5
    %v1496 = vmul.f32 %v1486, 0.5
    %v1497 = vmul.f32 %v1488, 0.5
    %v1498 = vmul.f32 %v1472, 0.044715
    %v1499 = vmul.f32 %v1474, 0.044715
    %v1500 = vmul.f32 %v1476, 0.044715
    %v1501 = vmul.f32 %v1478, 0.044715
    %v1502 = vmul.f32 %v1482, 0.044715
    %v1503 = vmul.f32 %v1484, 0.044715
    %v1504 = vmul.f32 %v1486, 0.044715
    %v1505 = vmul.f32 %v1488, 0.044715
    %v1506 = vmul.f32 %v1498, %v1472
    %v1507 = vmul.f32 %v1499, %v1474
    %v1508 = vmul.f32 %v1500, %v1476
    %v1509 = vmul.f32 %v1501, %v1478
    %v1510 = vmul.f32 %v1502, %v1482
    %v1511 = vmul.f32 %v1503, %v1484
    %v1512 = vmul.f32 %v1504, %v1486
    %v1513 = vmul.f32 %v1505, %v1488
    %v1514 = vmul.f32 %v1506, %v1472
    %v1515 = vmul.f32 %v1507, %v1474
    %v1516 = vmul.f32 %v1508, %v1476
    %v1517 = vmul.f32 %v1509, %v1478
    %v1518 = vmul.f32 %v1510, %v1482
    %v1519 = vmul.f32 %v1511, %v1484
    %v1520 = vmul.f32 %v1512, %v1486
    %v1521 = vmul.f32 %v1513, %v1488
    %v1522 = vadd.f32 %v1472, %v1514
    %v1523 = vadd.f32 %v1474, %v1515
    %v1524 = vadd.f32 %v1476, %v1516
    %v1525 = vadd.f32 %v1478, %v1517
    %v1526 = vadd.f32 %v1482, %v1518
    %v1527 = vadd.f32 %v1484, %v1519
    %v1528 = vadd.f32 %v1486, %v1520
    %v1529 = vadd.f32 %v1488, %v1521
    %v1530 = vmul.f32 %v1522, 0.7978846
    %v1531 = vmul.f32 %v1523, 0.7978846
    %v1532 = vmul.f32 %v1524, 0.7978846
    %v1533 = vmul.f32 %v1525, 0.7978846
    %v1534 = vmul.f32 %v1526, 0.7978846
    %v1535 = vmul.f32 %v1527, 0.7978846
    %v1536 = vmul.f32 %v1528, 0.7978846
    %v1537 = vmul.f32 %v1529, 0.7978846
    %v1538 = vtanh.pop %v1530
    %v1539 = vtanh.pop %v1531
    %v1540 = vtanh.pop %v1532
    %v1541 = vtanh.pop %v1533
    %v1542 = vtanh.pop %v1534
    %v1543 = vtanh.pop %v1535
    %v1544 = vtanh.pop %v1536
    %v1545 = vtanh.pop %v1537
    %v1546 = vadd.f32 %v1538, 1.0
    %v1547 = vadd.f32 %v1539, 1.0
    %v1548 = vadd.f32 %v1540, 1.0
    %v1549 = vadd.f32 %v1541, 1.0
    %v1550 = vadd.f32 %v1542, 1.0
    %v1551 = vadd.f32 %v1543, 1.0
    %v1552 = vadd.f32 %v1544, 1.0
    %v1553 = vadd.f32 %v1545, 1.0
    %v1554 = vmul.f32 %v1490, %v1546
    %v1555 = vmul.f32 %v1491, %v1547
    %v1556 = vmul.f32 %v1492, %v1548
    %v1557 = vmul.f32 %v1493, %v1549
    %v1558 = vmul.f32 %v1494, %v1550
    %v1559 = vmul.f32 %v1495, %v1551
    %v1560 = vmul.f32 %v1496, %v1552
    %v1561 = vmul.f32 %v1497, %v1553
    %v1562 = vpack.c.bf16 %v1556, %v1554
    %v1563 = vpack.c.bf16 %v1557, %v1555
    %v1564 = vpack.c.bf16 %v1560, %v1558
    %v1565 = vpack.c.bf16 %v1561, %v1559
    %v1566 = vld [vmem:[%s16] sm:$0xf]
    %v1567 = vld [vmem:[%s16 + $0x4] sm:$0xf]
    %v1568 = vld [vmem:[%s16 + $0x8] sm:$0xf]
    %v1569 = vld [vmem:[%s16 + $0xc] sm:$0xf]
    %v1570 = vld [vmem:[%s16 + $0x10] sm:$0xf]
    %v1571 = vld [vmem:[%s16 + $0x14] sm:$0xf]
    %v1572 = vld [vmem:[%s16 + $0x18] sm:$0xf]
    %v1573 = vld [vmem:[%s16 + $0x1c] sm:$0xf]
    %v1574 = vld [vmem:[%s16 + $0x20] sm:$0xf]
    %v1575 = vld [vmem:[%s16 + $0x24] sm:$0xf]
    %v1576 = vld [vmem:[%s16 + $0x28] sm:$0xf]
    %v1577 = vld [vmem:[%s16 + $0x2c] sm:$0xf]
    %v1578 = vld [vmem:[%s16 + $0x30] sm:$0xf]
    %v1579 = vld [vmem:[%s16 + $0x34] sm:$0xf]
    %v1580 = vld [vmem:[%s16 + $0x38] sm:$0xf]
    %v1581 = vld [vmem:[%s16 + $0x3c] sm:$0xf]
    %v1582 = vld [vmem:[%s16 + $0x40] sm:$0xf]
    %v1583 = vld [vmem:[%s16 + $0x44] sm:$0xf]
    %v1584 = vld [vmem:[%s16 + $0x48] sm:$0xf]
    %v1585 = vld [vmem:[%s16 + $0x4c] sm:$0xf]
    %v1586 = vld [vmem:[%s16 + $0x50] sm:$0xf]
    %v1587 = vld [vmem:[%s16 + $0x54] sm:$0xf]
    %v1588 = vld [vmem:[%s16 + $0x58] sm:$0xf]
    %v1589 = vld [vmem:[%s16 + $0x5c] sm:$0xf]
    %v1590 = vld [vmem:[%s16 + $0x60] sm:$0xf]
    %v1591 = vld [vmem:[%s16 + $0x64] sm:$0xf]
    %v1592 = vld [vmem:[%s16 + $0x68] sm:$0xf]
    %v1593 = vld [vmem:[%s16 + $0x6c] sm:$0xf]
    %v1594 = vld [vmem:[%s16 + $0x70] sm:$0xf]
    %v1595 = vld [vmem:[%s16 + $0x74] sm:$0xf]
    %v1596 = vld [vmem:[%s16 + $0x78] sm:$0xf]
    %v1597 = vld [vmem:[%s16 + $0x7c] sm:$0xf]
    %v1598 = vld [vmem:[%s17] sm:$0x1]
    %v1600 = vlaneseq
    %v1601 = vshrl.u32 %v1600, 7
    %v1602 = vsub.s32 0, %v1601
    %v1603 = vrot.slane %v1598, %v1602
    %v1637 = vunpack.c.l.b16 %v1566
    %v1638 = vunpack.c.l.b16 %v1567
    %v1639 = vunpack.c.l.b16 %v1568
    %v1640 = vunpack.c.l.b16 %v1569
    %v1641 = vunpack.c.l.b16 %v1570
    %v1642 = vunpack.c.l.b16 %v1571
    %v1643 = vunpack.c.l.b16 %v1572
    %v1644 = vunpack.c.l.b16 %v1573
    %v1645 = vunpack.c.l.b16 %v1574
    %v1646 = vunpack.c.l.b16 %v1575
    %v1647 = vunpack.c.l.b16 %v1576
    %v1648 = vunpack.c.l.b16 %v1577
    %v1649 = vunpack.c.l.b16 %v1578
    %v1650 = vunpack.c.l.b16 %v1579
    %v1651 = vunpack.c.l.b16 %v1580
    %v1652 = vunpack.c.l.b16 %v1581
    %v1653 = vunpack.c.l.b16 %v1582
    %v1654 = vunpack.c.l.b16 %v1583
    %v1655 = vunpack.c.l.b16 %v1584
    %v1656 = vunpack.c.l.b16 %v1585
    %v1657 = vunpack.c.l.b16 %v1586
    %v1658 = vunpack.c.l.b16 %v1587
    %v1659 = vunpack.c.l.b16 %v1588
    %v1660 = vunpack.c.l.b16 %v1589
    %v1661 = vunpack.c.l.b16 %v1590
    %v1662 = vunpack.c.l.b16 %v1591
    %v1663 = vunpack.c.l.b16 %v1592
    %v1664 = vunpack.c.l.b16 %v1593
    %v1665 = vunpack.c.l.b16 %v1594
    %v1666 = vunpack.c.l.b16 %v1595
    %v1667 = vunpack.c.l.b16 %v1596
    %v1668 = vunpack.c.l.b16 %v1597
    %v1669 = vpack.c.b16 %v1638, %v1637
    %v1670 = vpack.c.b16 %v1640, %v1639
    %v1671 = vpack.c.b16 %v1642, %v1641
    %v1672 = vpack.c.b16 %v1644, %v1643
    %v1673 = vpack.c.b16 %v1646, %v1645
    %v1674 = vpack.c.b16 %v1648, %v1647
    %v1675 = vpack.c.b16 %v1650, %v1649
    %v1676 = vpack.c.b16 %v1652, %v1651
    %v1677 = vpack.c.b16 %v1654, %v1653
    %v1678 = vpack.c.b16 %v1656, %v1655
    %v1679 = vpack.c.b16 %v1658, %v1657
    %v1680 = vpack.c.b16 %v1660, %v1659
    %v1681 = vpack.c.b16 %v1662, %v1661
    %v1682 = vpack.c.b16 %v1664, %v1663
    %v1683 = vpack.c.b16 %v1666, %v1665
    %v1684 = vpack.c.b16 %v1668, %v1667
    %1701 = vmatprep.subr.bf16.mxu0 0
    %1702 = vmatpush1.bf16.msra.mxu0 %v1676
    %1703 = vmatprep.subr.bf16.mxu0 0
    %1704 = vmatpush1.bf16.msra.mxu0 %v1675
    %1705 = vmatprep.subr.bf16.mxu0 0
    %1706 = vmatpush1.bf16.msra.mxu0 %v1674
    %1707 = vmatprep.subr.bf16.mxu0 0
    %1708 = vmatpush1.bf16.msra.mxu0 %v1673
    %1709 = vmatprep.subr.bf16.mxu0 0
    %1710 = vmatpush1.bf16.msra.mxu0 %v1672
    %1711 = vmatprep.subr.bf16.mxu0 0
    %1712 = vmatpush1.bf16.msra.mxu0 %v1671
    %1713 = vmatprep.subr.bf16.mxu0 0
    %1714 = vmatpush1.bf16.msra.mxu0 %v1670
    %1715 = vmatprep.subr.bf16.mxu0 0
    %1716 = vmatpush1.bf16.msra.mxu0 %v1669
    %1717 = vmatprep.subr.bf16.mxu0 0
    %1718 = vmatpush2.bf16.msra.mxu0 %v1684
    %1719 = vmatprep.subr.bf16.mxu0 0
    %1720 = vmatpush2.bf16.msra.mxu0 %v1683
    %1721 = vmatprep.subr.bf16.mxu0 0
    %1722 = vmatpush2.bf16.msra.mxu0 %v1682
    %1723 = vmatprep.subr.bf16.mxu0 0
    %1724 = vmatpush2.bf16.msra.mxu0 %v1681
    %1725 = vmatprep.subr.bf16.mxu0 0
    %1726 = vmatpush2.bf16.msra.mxu0 %v1680
    %1727 = vmatprep.subr.bf16.mxu0 0
    %1728 = vmatpush2.bf16.msra.mxu0 %v1679
    %1729 = vmatprep.subr.bf16.mxu0 0
    %1730 = vmatpush2.bf16.msra.mxu0 %v1678
    %1731 = vmatprep.subr.bf16.mxu0 0
    %1732 = vmatpush2.bf16.msra.mxu0 %v1677
    %1733 = vmatprep.mubr.bf16.mxu0 %v1563
    %1734 = vmatmul.mubr.bf16.gmra.mxu0 %v1562
    %v1735 = vpop.f32.mrf.mxu0
    %v1736 = vadd.f32 %v1603, %v1735
    %v1737 = vpop.f32.mrf.mxu0
    %v1738 = vpop.f32.mrf.mxu0
    %v1739 = vadd.f32 %v1603, %v1738
    %v1740 = vpop.f32.mrf.mxu0
    %1741 = vmatprep.mubr.bf16.mxu0 %v1565
    %1742 = vmatmul.mubr.bf16.gmra.mxu0 %v1564
    %v1743 = vpop.f32.mrf.mxu0
    %v1744 = vadd.f32 %v1603, %v1743
    %v1745 = vpop.f32.mrf.mxu0
    %v1746 = vpop.f32.mrf.mxu0
    %v1747 = vadd.f32 %v1603, %v1746
    %v1748 = vpop.f32.mrf.mxu0
    %1749 = vdwg.mxu0
    %v1750 = vadd.f32 %v1736, %v1365
    %v1751 = vadd.f32 %v1739, %v1366
    %v1752 = vadd.f32 %v1744, %v1367
    %v1753 = vadd.f32 %v1747, %v1368
    %v1754 = vld [vmem:[%s18] sm:$0x1]
    %v1755 = vld [vmem:[%s19] sm:$0x1]
    %v1756 = vsel %vm315, %v1750, 0.0
    %1757 = vadd.xlane.f32.xlu0 %v1756
    %v1758 = vpop.xlane.xlu0 %1757
    %v1759 = vsel %vm315, %v1751, 0.0
    %1760 = vadd.xlane.f32.xlu0 %v1759
    %v1761 = vpop.xlane.xlu0 %1760
    %v1762 = vsel %vm315, %v1752, 0.0
    %1763 = vadd.xlane.f32.xlu0 %v1762
    %v1764 = vpop.xlane.xlu0 %1763
    %v1765 = vsel %vm315, %v1753, 0.0
    %1766 = vadd.xlane.f32.xlu0 %v1765
    %v1767 = vpop.xlane.xlu0 %1766
    %v1768 = vmul.f32 %v1758, %v328
    %v1769 = vmul.f32 %v1761, %v328
    %v1770 = vmul.f32 %v1764, %v328
    %v1771 = vmul.f32 %v1767, %v328
    %v1772 = vsub.f32 %v1750, %v1768
    %v1773 = vsub.f32 %v1751, %v1769
    %v1774 = vsub.f32 %v1752, %v1770
    %v1775 = vsub.f32 %v1753, %v1771
    %v1776 = vmul.f32 %v1772, %v1772
    %v1777 = vmul.f32 %v1773, %v1773
    %v1778 = vmul.f32 %v1774, %v1774
    %v1779 = vmul.f32 %v1775, %v1775
    %v1780 = vsel %vm315, %v1776, 0.0
    %1781 = vadd.xlane.f32.xlu0 %v1780
    %v1782 = vpop.xlane.xlu0 %1781
    %v1783 = vsel %vm315, %v1777, 0.0
    %1784 = vadd.xlane.f32.xlu0 %v1783
    %v1785 = vpop.xlane.xlu0 %1784
    %v1786 = vsel %vm315, %v1778, 0.0
    %1787 = vadd.xlane.f32.xlu0 %v1786
    %v1788 = vpop.xlane.xlu0 %1787
    %v1789 = vsel %vm315, %v1779, 0.0
    %1790 = vadd.xlane.f32.xlu0 %v1789
    %v1791 = vpop.xlane.xlu0 %1790
    %v1792 = vmul.f32 %v1782, %v328
    %v1793 = vmul.f32 %v1785, %v328
    %v1794 = vmul.f32 %v1788, %v328
    %v1795 = vmul.f32 %v1791, %v328
    %v1796 = vadd.f32 %v1792, 1e-12
    %v1797 = vadd.f32 %v1793, 1e-12
    %v1798 = vadd.f32 %v1794, 1e-12
    %v1799 = vadd.f32 %v1795, 1e-12
    %v1800 = vrsqrt.pop %v1796
    %v1801 = vrsqrt.pop %v1797
    %v1802 = vrsqrt.pop %v1798
    %v1803 = vrsqrt.pop %v1799
    %v1804 = vmul.f32 %v1772, %v1800
    %v1805 = vmul.f32 %v1773, %v1801
    %v1806 = vmul.f32 %v1774, %v1802
    %v1807 = vmul.f32 %v1775, %v1803
    %v1809 = vlaneseq
    %v1810 = vshrl.u32 %v1809, 7
    %v1811 = vsub.s32 0, %v1810
    %v1812 = vrot.slane %v1754, %v1811
    %v1814 = vmul.f32 %v1804, %v1812
    %v1815 = vmul.f32 %v1805, %v1812
    %v1816 = vmul.f32 %v1806, %v1812
    %v1817 = vmul.f32 %v1807, %v1812
    %v1819 = vlaneseq
    %v1820 = vshrl.u32 %v1819, 7
    %v1821 = vsub.s32 0, %v1820
    %v1822 = vrot.slane %v1755, %v1821
    %v1824 = vadd.f32 %v1814, %v1822
    %v1825 = vadd.f32 %v1815, %v1822
    %v1826 = vadd.f32 %v1816, %v1822
    %v1827 = vadd.f32 %v1817, %v1822
    %v1828 = vpack.c.bf16 %v1825, %v1824
    %v1829 = vpack.c.bf16 %v1827, %v1826
    %s1830 = scalar_lea.vmem %s8, 192
    %v1831 = vld [vmem:[%s1830] sm:$0xff]
    %v1832 = vld [vmem:[%s1830 + $0x8] sm:$0xff]
    %v1833 = vld [vmem:[%s1830 + $0x10] sm:$0xff]
    %v1834 = vld [vmem:[%s1830 + $0x18] sm:$0xff]
    %v1835 = vld [vmem:[%s1830 + $0x20] sm:$0xff]
    %v1836 = vld [vmem:[%s1830 + $0x28] sm:$0xff]
    %v1837 = vld [vmem:[%s1830 + $0x30] sm:$0xff]
    %v1838 = vld [vmem:[%s1830 + $0x38] sm:$0xff]
    %v1839 = vld [vmem:[%s1830 + $0x40] sm:$0xff]
    %v1840 = vld [vmem:[%s1830 + $0x48] sm:$0xff]
    %v1841 = vld [vmem:[%s1830 + $0x50] sm:$0xff]
    %v1842 = vld [vmem:[%s1830 + $0x58] sm:$0xff]
    %v1843 = vld [vmem:[%s1830 + $0x60] sm:$0xff]
    %v1844 = vld [vmem:[%s1830 + $0x68] sm:$0xff]
    %v1845 = vld [vmem:[%s1830 + $0x70] sm:$0xff]
    %v1846 = vld [vmem:[%s1830 + $0x78] sm:$0xff]
    %v1847 = vld [vmem:[%s1830 + $0x80] sm:$0xff]
    %v1848 = vld [vmem:[%s1830 + $0x88] sm:$0xff]
    %v1849 = vld [vmem:[%s1830 + $0x90] sm:$0xff]
    %v1850 = vld [vmem:[%s1830 + $0x98] sm:$0xff]
    %v1851 = vld [vmem:[%s1830 + $0xa0] sm:$0xff]
    %v1852 = vld [vmem:[%s1830 + $0xa8] sm:$0xff]
    %v1853 = vld [vmem:[%s1830 + $0xb0] sm:$0xff]
    %v1854 = vld [vmem:[%s1830 + $0xb8] sm:$0xff]
    %s1855 = scalar_lea.vmem %s9, 6
    %v1856 = vld [vmem:[%s1855] sm:$0x3f]
    %v1858 = vlaneseq
    %v1859 = vshrl.u32 %v1858, 7
    %v1860 = vsub.s32 0, %v1859
    %v1861 = vrot.slane %v1856, %v1860
    %v1862 = vlaneseq
    %v1863 = vshrl.u32 %v1862, 7
    %v1864 = vsub.s32 1, %v1863
    %v1865 = vrot.slane %v1856, %v1864
    %v1866 = vlaneseq
    %v1867 = vshrl.u32 %v1866, 7
    %v1868 = vsub.s32 2, %v1867
    %v1869 = vrot.slane %v1856, %v1868
    %v1870 = vlaneseq
    %v1871 = vshrl.u32 %v1870, 7
    %v1872 = vsub.s32 3, %v1871
    %v1873 = vrot.slane %v1856, %v1872
    %v1874 = vlaneseq
    %v1875 = vshrl.u32 %v1874, 7
    %v1876 = vsub.s32 4, %v1875
    %v1877 = vrot.slane %v1856, %v1876
    %v1878 = vlaneseq
    %v1879 = vshrl.u32 %v1878, 7
    %v1880 = vsub.s32 5, %v1879
    %v1881 = vrot.slane %v1856, %v1880
    %v1912 = vunpack.c.l.b16 %v1831
    %v1913 = vunpack.c.h.b16 %v1831
    %v1914 = vunpack.c.l.b16 %v1832
    %v1915 = vunpack.c.h.b16 %v1832
    %v1916 = vunpack.c.l.b16 %v1833
    %v1917 = vunpack.c.h.b16 %v1833
    %v1918 = vunpack.c.l.b16 %v1834
    %v1919 = vunpack.c.h.b16 %v1834
    %v1920 = vunpack.c.l.b16 %v1835
    %v1921 = vunpack.c.h.b16 %v1835
    %v1922 = vunpack.c.l.b16 %v1836
    %v1923 = vunpack.c.h.b16 %v1836
    %v1924 = vunpack.c.l.b16 %v1837
    %v1925 = vunpack.c.h.b16 %v1837
    %v1926 = vunpack.c.l.b16 %v1838
    %v1927 = vunpack.c.h.b16 %v1838
    %v1928 = vunpack.c.l.b16 %v1839
    %v1929 = vunpack.c.h.b16 %v1839
    %v1930 = vunpack.c.l.b16 %v1840
    %v1931 = vunpack.c.h.b16 %v1840
    %v1932 = vunpack.c.l.b16 %v1841
    %v1933 = vunpack.c.h.b16 %v1841
    %v1934 = vunpack.c.l.b16 %v1842
    %v1935 = vunpack.c.h.b16 %v1842
    %v1936 = vunpack.c.l.b16 %v1843
    %v1937 = vunpack.c.h.b16 %v1843
    %v1938 = vunpack.c.l.b16 %v1844
    %v1939 = vunpack.c.h.b16 %v1844
    %v1940 = vunpack.c.l.b16 %v1845
    %v1941 = vunpack.c.h.b16 %v1845
    %v1942 = vunpack.c.l.b16 %v1846
    %v1943 = vunpack.c.h.b16 %v1846
    %v1944 = vunpack.c.l.b16 %v1847
    %v1945 = vunpack.c.h.b16 %v1847
    %v1946 = vunpack.c.l.b16 %v1848
    %v1947 = vunpack.c.h.b16 %v1848
    %v1948 = vunpack.c.l.b16 %v1849
    %v1949 = vunpack.c.h.b16 %v1849
    %v1950 = vunpack.c.l.b16 %v1850
    %v1951 = vunpack.c.h.b16 %v1850
    %v1952 = vunpack.c.l.b16 %v1851
    %v1953 = vunpack.c.h.b16 %v1851
    %v1954 = vunpack.c.l.b16 %v1852
    %v1955 = vunpack.c.h.b16 %v1852
    %v1956 = vunpack.c.l.b16 %v1853
    %v1957 = vunpack.c.h.b16 %v1853
    %v1958 = vunpack.c.l.b16 %v1854
    %v1959 = vunpack.c.h.b16 %v1854
    %v1960 = vpack.c.b16 %v1918, %v1912
    %v1961 = vpack.c.b16 %v1919, %v1913
    %v1962 = vpack.c.b16 %v1920, %v1914
    %v1963 = vpack.c.b16 %v1921, %v1915
    %v1964 = vpack.c.b16 %v1922, %v1916
    %v1965 = vpack.c.b16 %v1923, %v1917
    %v1966 = vpack.c.b16 %v1930, %v1924
    %v1967 = vpack.c.b16 %v1931, %v1925
    %v1968 = vpack.c.b16 %v1932, %v1926
    %v1969 = vpack.c.b16 %v1933, %v1927
    %v1970 = vpack.c.b16 %v1934, %v1928
    %v1971 = vpack.c.b16 %v1935, %v1929
    %v1972 = vpack.c.b16 %v1942, %v1936
    %v1973 = vpack.c.b16 %v1943, %v1937
    %v1974 = vpack.c.b16 %v1944, %v1938
    %v1975 = vpack.c.b16 %v1945, %v1939
    %v1976 = vpack.c.b16 %v1946, %v1940
    %v1977 = vpack.c.b16 %v1947, %v1941
    %v1978 = vpack.c.b16 %v1954, %v1948
    %v1979 = vpack.c.b16 %v1955, %v1949
    %v1980 = vpack.c.b16 %v1956, %v1950
    %v1981 = vpack.c.b16 %v1957, %v1951
    %v1982 = vpack.c.b16 %v1958, %v1952
    %v1983 = vpack.c.b16 %v1959, %v1953
    %v2009 = vsel %vm315, %v1828, 0
    %v2012 = vsel %vm315, %v1829, 0
    %2014 = vmatprep.subr.bf16.mxu0 0
    %2015 = vmatpush1.bf16.msra.mxu0 0
    %2016 = vmatprep.subr.bf16.mxu0 0
    %2017 = vmatpush1.bf16.msra.mxu0 0
    %2018 = vmatprep.subr.bf16.mxu0 0
    %2019 = vmatpush1.bf16.msra.mxu0 0
    %2020 = vmatprep.subr.bf16.mxu0 0
    %2021 = vmatpush1.bf16.msra.mxu0 0
    %2022 = vmatprep.subr.bf16.mxu0 %v1979
    %2023 = vmatpush1.bf16.msra.mxu0 %v1978
    %2024 = vmatprep.subr.bf16.mxu0 %v1973
    %2025 = vmatpush1.bf16.msra.mxu0 %v1972
    %2026 = vmatprep.subr.bf16.mxu0 %v1967
    %2027 = vmatpush1.bf16.msra.mxu0 %v1966
    %2028 = vmatprep.subr.bf16.mxu0 %v1961
    %2029 = vmatpush1.bf16.msra.mxu0 %v1960
    %2030 = vmatprep.subr.bf16.mxu0 0
    %2031 = vmatpush2.bf16.msra.mxu0 0
    %2032 = vmatprep.subr.bf16.mxu0 0
    %2033 = vmatpush2.bf16.msra.mxu0 0
    %2034 = vmatprep.subr.bf16.mxu0 0
    %2035 = vmatpush2.bf16.msra.mxu0 0
    %2036 = vmatprep.subr.bf16.mxu0 0
    %2037 = vmatpush2.bf16.msra.mxu0 0
    %2038 = vmatprep.subr.bf16.mxu0 0
    %2039 = vmatpush2.bf16.msra.mxu0 0
    %2040 = vmatprep.subr.bf16.mxu0 0
    %2041 = vmatpush2.bf16.msra.mxu0 0
    %2042 = vmatprep.subr.bf16.mxu0 0
    %2043 = vmatpush2.bf16.msra.mxu0 0
    %2044 = vmatprep.subr.bf16.mxu0 0
    %2045 = vmatpush2.bf16.msra.mxu0 0
    %2046 = vmatprep.mubr.bf16.mxu0 0
    %2047 = vmatmul.mubr.bf16.gmra.mxu0 %v2009
    %v2048 = vpop.f32.mrf.mxu0
    %v2049 = vadd.f32 %v1861, %v2048
    %v2050 = vpop.f32.mrf.mxu0
    %v2051 = vadd.f32 %v1865, %v2050
    %v2052 = vpop.f32.mrf.mxu0
    %v2053 = vadd.f32 %v1861, %v2052
    %v2054 = vpop.f32.mrf.mxu0
    %v2055 = vadd.f32 %v1865, %v2054
    %2056 = vmatprep.mubr.bf16.mxu0 0
    %2057 = vmatmul.mubr.bf16.gmra.mxu0 %v2012
    %v2058 = vpop.f32.mrf.mxu0
    %v2059 = vadd.f32 %v1861, %v2058
    %v2060 = vpop.f32.mrf.mxu0
    %v2061 = vadd.f32 %v1865, %v2060
    %v2062 = vpop.f32.mrf.mxu0
    %v2063 = vadd.f32 %v1861, %v2062
    %v2064 = vpop.f32.mrf.mxu0
    %v2065 = vadd.f32 %v1865, %v2064
    %2066 = vdwg.mxu0
    %2067 = vmatprep.subr.bf16.mxu0 0
    %2068 = vmatpush1.bf16.msra.mxu0 0
    %2069 = vmatprep.subr.bf16.mxu0 0
    %2070 = vmatpush1.bf16.msra.mxu0 0
    %2071 = vmatprep.subr.bf16.mxu0 0
    %2072 = vmatpush1.bf16.msra.mxu0 0
    %2073 = vmatprep.subr.bf16.mxu0 0
    %2074 = vmatpush1.bf16.msra.mxu0 0
    %2075 = vmatprep.subr.bf16.mxu0 %v1981
    %2076 = vmatpush1.bf16.msra.mxu0 %v1980
    %2077 = vmatprep.subr.bf16.mxu0 %v1975
    %2078 = vmatpush1.bf16.msra.mxu0 %v1974
    %2079 = vmatprep.subr.bf16.mxu0 %v1969
    %2080 = vmatpush1.bf16.msra.mxu0 %v1968
    %2081 = vmatprep.subr.bf16.mxu0 %v1963
    %2082 = vmatpush1.bf16.msra.mxu0 %v1962
    %2083 = vmatprep.subr.bf16.mxu0 0
    %2084 = vmatpush2.bf16.msra.mxu0 0
    %2085 = vmatprep.subr.bf16.mxu0 0
    %2086 = vmatpush2.bf16.msra.mxu0 0
    %2087 = vmatprep.subr.bf16.mxu0 0
    %2088 = vmatpush2.bf16.msra.mxu0 0
    %2089 = vmatprep.subr.bf16.mxu0 0
    %2090 = vmatpush2.bf16.msra.mxu0 0
    %2091 = vmatprep.subr.bf16.mxu0 0
    %2092 = vmatpush2.bf16.msra.mxu0 0
    %2093 = vmatprep.subr.bf16.mxu0 0
    %2094 = vmatpush2.bf16.msra.mxu0 0
    %2095 = vmatprep.subr.bf16.mxu0 0
    %2096 = vmatpush2.bf16.msra.mxu0 0
    %2097 = vmatprep.subr.bf16.mxu0 0
    %2098 = vmatpush2.bf16.msra.mxu0 0
    %2099 = vmatprep.mubr.bf16.mxu0 0
    %2100 = vmatmul.mubr.bf16.gmra.mxu0 %v2009
    %v2101 = vpop.f32.mrf.mxu0
    %v2102 = vadd.f32 %v1869, %v2101
    %v2103 = vpop.f32.mrf.mxu0
    %v2104 = vadd.f32 %v1873, %v2103
    %v2105 = vpop.f32.mrf.mxu0
    %v2106 = vadd.f32 %v1869, %v2105
    %v2107 = vpop.f32.mrf.mxu0
    %v2108 = vadd.f32 %v1873, %v2107
    %2109 = vmatprep.mubr.bf16.mxu0 0
    %2110 = vmatmul.mubr.bf16.gmra.mxu0 %v2012
    %v2111 = vpop.f32.mrf.mxu0
    %v2112 = vadd.f32 %v1869, %v2111
    %v2113 = vpop.f32.mrf.mxu0
    %v2114 = vadd.f32 %v1873, %v2113
    %v2115 = vpop.f32.mrf.mxu0
    %v2116 = vadd.f32 %v1869, %v2115
    %v2117 = vpop.f32.mrf.mxu0
    %v2118 = vadd.f32 %v1873, %v2117
    %2119 = vdwg.mxu0
    %2120 = vmatprep.subr.bf16.mxu0 0
    %2121 = vmatpush1.bf16.msra.mxu0 0
    %2122 = vmatprep.subr.bf16.mxu0 0
    %2123 = vmatpush1.bf16.msra.mxu0 0
    %2124 = vmatprep.subr.bf16.mxu0 0
    %2125 = vmatpush1.bf16.msra.mxu0 0
    %2126 = vmatprep.subr.bf16.mxu0 0
    %2127 = vmatpush1.bf16.msra.mxu0 0
    %2128 = vmatprep.subr.bf16.mxu0 %v1983
    %2129 = vmatpush1.bf16.msra.mxu0 %v1982
    %2130 = vmatprep.subr.bf16.mxu0 %v1977
    %2131 = vmatpush1.bf16.msra.mxu0 %v1976
    %2132 = vmatprep.subr.bf16.mxu0 %v1971
    %2133 = vmatpush1.bf16.msra.mxu0 %v1970
    %2134 = vmatprep.subr.bf16.mxu0 %v1965
    %2135 = vmatpush1.bf16.msra.mxu0 %v1964
    %2136 = vmatprep.subr.bf16.mxu0 0
    %2137 = vmatpush2.bf16.msra.mxu0 0
    %2138 = vmatprep.subr.bf16.mxu0 0
    %2139 = vmatpush2.bf16.msra.mxu0 0
    %2140 = vmatprep.subr.bf16.mxu0 0
    %2141 = vmatpush2.bf16.msra.mxu0 0
    %2142 = vmatprep.subr.bf16.mxu0 0
    %2143 = vmatpush2.bf16.msra.mxu0 0
    %2144 = vmatprep.subr.bf16.mxu0 0
    %2145 = vmatpush2.bf16.msra.mxu0 0
    %2146 = vmatprep.subr.bf16.mxu0 0
    %2147 = vmatpush2.bf16.msra.mxu0 0
    %2148 = vmatprep.subr.bf16.mxu0 0
    %2149 = vmatpush2.bf16.msra.mxu0 0
    %2150 = vmatprep.subr.bf16.mxu0 0
    %2151 = vmatpush2.bf16.msra.mxu0 0
    %2152 = vmatprep.mubr.bf16.mxu0 0
    %2153 = vmatmul.mubr.bf16.gmra.mxu0 %v2009
    %v2154 = vpop.f32.mrf.mxu0
    %v2155 = vadd.f32 %v1877, %v2154
    %v2156 = vpop.f32.mrf.mxu0
    %v2157 = vadd.f32 %v1881, %v2156
    %v2158 = vpop.f32.mrf.mxu0
    %v2159 = vadd.f32 %v1877, %v2158
    %v2160 = vpop.f32.mrf.mxu0
    %v2161 = vadd.f32 %v1881, %v2160
    %2162 = vmatprep.mubr.bf16.mxu0 0
    %2163 = vmatmul.mubr.bf16.gmra.mxu0 %v2012
    %v2164 = vpop.f32.mrf.mxu0
    %v2165 = vadd.f32 %v1877, %v2164
    %v2166 = vpop.f32.mrf.mxu0
    %v2167 = vadd.f32 %v1881, %v2166
    %v2168 = vpop.f32.mrf.mxu0
    %v2169 = vadd.f32 %v1877, %v2168
    %v2170 = vpop.f32.mrf.mxu0
    %v2171 = vadd.f32 %v1881, %v2170
    %2172 = vdwg.mxu0
    %v2173 = vpack.c.bf16 %v2053, %v2049
    %v2174 = vpack.c.bf16 %v2063, %v2059
    %v2175 = vpack.c.bf16 %v2055, %v2051
    %v2176 = vpack.c.bf16 %v2065, %v2061
    %v2177 = vpack.c.bf16 %v2106, %v2102
    %v2178 = vpack.c.bf16 %v2116, %v2112
    %2179 = vmatprep.subr.bf16.mxu0 0
    %2180 = vmatpush1.bf16.xpose.msra.mxu0 0
    %2181 = vmatprep.subr.bf16.mxu0 0
    %2182 = vmatpush1.bf16.xpose.msra.mxu0 0
    %2183 = vmatprep.subr.bf16.mxu0 0
    %2184 = vmatpush1.bf16.xpose.msra.mxu0 0
    %2185 = vmatprep.subr.bf16.mxu0 0
    %2186 = vmatpush1.bf16.xpose.msra.mxu0 0
    %2187 = vmatprep.subr.bf16.mxu0 0
    %2188 = vmatpush1.bf16.xpose.msra.mxu0 0
    %2189 = vmatprep.subr.bf16.mxu0 0
    %2190 = vmatpush1.bf16.xpose.msra.mxu0 0
    %2191 = vmatprep.subr.bf16.mxu0 0
    %2192 = vmatpush1.bf16.xpose.msra.mxu0 %v2176
    %2193 = vmatprep.subr.bf16.mxu0 0
    %2194 = vmatpush1.bf16.xpose.msra.mxu0 %v2175
    %2195 = vmatprep.subr.bf16.mxu0 0
    %2196 = vmatpush2.bf16.xpose.msra.mxu0 0
    %2197 = vmatprep.subr.bf16.mxu0 0
    %2198 = vmatpush2.bf16.xpose.msra.mxu0 0
    %2199 = vmatprep.subr.bf16.mxu0 0
    %2200 = vmatpush2.bf16.xpose.msra.mxu0 0
    %2201 = vmatprep.subr.bf16.mxu0 0
    %2202 = vmatpush2.bf16.xpose.msra.mxu0 0
    %2203 = vmatprep.subr.bf16.mxu0 0
    %2204 = vmatpush2.bf16.xpose.msra.mxu0 0
    %2205 = vmatprep.subr.bf16.mxu0 0
    %2206 = vmatpush2.bf16.xpose.msra.mxu0 0
    %2207 = vmatprep.subr.bf16.mxu0 0
    %2208 = vmatpush2.bf16.xpose.msra.mxu0 0
    %2209 = vmatprep.subr.bf16.mxu0 0
    %2210 = vmatpush2.bf16.xpose.msra.mxu0 0
    %2211 = vmatprep.mubr.bf16.mxu0 0
    %2212 = vmatmul.mubr.bf16.gmra.mxu0 %v2173
    %v2213 = vpop.f32.mrf.mxu0
    %v2214 = vadd.f32 %v389, %v2213
    %v2215 = vpop.f32.mrf.mxu0
    %v2216 = vpop.f32.mrf.mxu0
    %v2217 = vadd.f32 %v390, %v2216
    %v2218 = vpop.f32.mrf.mxu0
    %2219 = vmatprep.mubr.bf16.mxu0 0
    %2220 = vmatmul.mubr.bf16.gmra.mxu0 %v2174
    %v2221 = vpop.f32.mrf.mxu0
    %v2222 = vadd.f32 %v391, %v2221
    %v2223 = vpop.f32.mrf.mxu0
    %v2224 = vpop.f32.mrf.mxu0
    %v2225 = vadd.f32 %v392, %v2224
    %v2226 = vpop.f32.mrf.mxu0
    %2227 = vdwg.mxu0
    %v2228 = vsel %vm791, %v2214, -inf
    %2229 = vmax.xlane.f32.xlu0 %v2228
    %v2230 = vpop.xlane.xlu0 %2229
    %v2231 = vsel %vm791, %v2217, -inf
    %2232 = vmax.xlane.f32.xlu0 %v2231
    %v2233 = vpop.xlane.xlu0 %2232
    %v2234 = vsel %vm791, %v2222, -inf
    %2235 = vmax.xlane.f32.xlu0 %v2234
    %v2236 = vpop.xlane.xlu0 %2235
    %v2237 = vsel %vm791, %v2225, -inf
    %2238 = vmax.xlane.f32.xlu0 %v2237
    %v2239 = vpop.xlane.xlu0 %2238
    %v2240 = vsub.f32 %v2214, %v2230
    %v2241 = vsub.f32 %v2217, %v2233
    %v2242 = vsub.f32 %v2222, %v2236
    %v2243 = vsub.f32 %v2225, %v2239
    %v2244 = vmul.f32 %v2240, 1.442695
    %v2245 = vpow.pop %v2244
    %v2246 = vmul.f32 %v2241, 1.442695
    %v2247 = vpow.pop %v2246
    %v2248 = vmul.f32 %v2242, 1.442695
    %v2249 = vpow.pop %v2248
    %v2250 = vmul.f32 %v2243, 1.442695
    %v2251 = vpow.pop %v2250
    %v2252 = vsel %vm791, %v2245, 0.0
    %2253 = vadd.xlane.f32.xlu0 %v2252
    %v2254 = vpop.xlane.xlu0 %2253
    %v2255 = vsel %vm791, %v2247, 0.0
    %2256 = vadd.xlane.f32.xlu0 %v2255
    %v2257 = vpop.xlane.xlu0 %2256
    %v2258 = vsel %vm791, %v2249, 0.0
    %2259 = vadd.xlane.f32.xlu0 %v2258
    %v2260 = vpop.xlane.xlu0 %2259
    %v2261 = vsel %vm791, %v2251, 0.0
    %2262 = vadd.xlane.f32.xlu0 %v2261
    %v2263 = vpop.xlane.xlu0 %2262
    %v2264 = vrcp.pop %v2254
    %v2265 = vmul.f32 %v2245, %v2264
    %v2266 = vrcp.pop %v2257
    %v2267 = vmul.f32 %v2247, %v2266
    %v2268 = vrcp.pop %v2260
    %v2269 = vmul.f32 %v2249, %v2268
    %v2270 = vrcp.pop %v2263
    %v2271 = vmul.f32 %v2251, %v2270
    %v2272 = vpack.c.bf16 %v2267, %v2265
    %v2273 = vpack.c.bf16 %v2271, %v2269
    %v2275 = vsel %vm791, %v2272, 0
    %v2278 = vsel %vm791, %v2273, 0
    %2280 = vmatprep.subr.bf16.mxu0 0
    %2281 = vmatpush1.bf16.msra.mxu0 0
    %2282 = vmatprep.subr.bf16.mxu0 0
    %2283 = vmatpush1.bf16.msra.mxu0 0
    %2284 = vmatprep.subr.bf16.mxu0 0
    %2285 = vmatpush1.bf16.msra.mxu0 0
    %2286 = vmatprep.subr.bf16.mxu0 0
    %2287 = vmatpush1.bf16.msra.mxu0 0
    %2288 = vmatprep.subr.bf16.mxu0 0
    %2289 = vmatpush1.bf16.msra.mxu0 0
    %2290 = vmatprep.subr.bf16.mxu0 0
    %2291 = vmatpush1.bf16.msra.mxu0 0
    %2292 = vmatprep.subr.bf16.mxu0 0
    %2293 = vmatpush1.bf16.msra.mxu0 %v2178
    %2294 = vmatprep.subr.bf16.mxu0 0
    %2295 = vmatpush1.bf16.msra.mxu0 %v2177
    %2296 = vmatprep.subr.bf16.mxu0 0
    %2297 = vmatpush2.bf16.msra.mxu0 0
    %2298 = vmatprep.subr.bf16.mxu0 0
    %2299 = vmatpush2.bf16.msra.mxu0 0
    %2300 = vmatprep.subr.bf16.mxu0 0
    %2301 = vmatpush2.bf16.msra.mxu0 0
    %2302 = vmatprep.subr.bf16.mxu0 0
    %2303 = vmatpush2.bf16.msra.mxu0 0
    %2304 = vmatprep.subr.bf16.mxu0 0
    %2305 = vmatpush2.bf16.msra.mxu0 0
    %2306 = vmatprep.subr.bf16.mxu0 0
    %2307 = vmatpush2.bf16.msra.mxu0 0
    %2308 = vmatprep.subr.bf16.mxu0 0
    %2309 = vmatpush2.bf16.msra.mxu0 0
    %2310 = vmatprep.subr.bf16.mxu0 0
    %2311 = vmatpush2.bf16.msra.mxu0 0
    %2312 = vmatprep.mubr.bf16.mxu0 0
    %2313 = vmatmul.mubr.bf16.gmra.mxu0 %v2275
    %v2314 = vpop.f32.mrf.mxu0
    %v2315 = vadd.f32 0.0, %v2314
    %v2316 = vpop.f32.mrf.mxu0
    %v2317 = vpop.f32.mrf.mxu0
    %v2318 = vadd.f32 0.0, %v2317
    %v2319 = vpop.f32.mrf.mxu0
    %2320 = vmatprep.mubr.bf16.mxu0 0
    %2321 = vmatmul.mubr.bf16.gmra.mxu0 %v2278
    %v2322 = vpop.f32.mrf.mxu0
    %v2323 = vadd.f32 0.0, %v2322
    %v2324 = vpop.f32.mrf.mxu0
    %v2325 = vpop.f32.mrf.mxu0
    %v2326 = vadd.f32 0.0, %v2325
    %v2327 = vpop.f32.mrf.mxu0
    %2328 = vdwg.mxu0
    %v2329 = vpack.c.bf16 %v2318, %v2315
    %v2330 = vpack.c.bf16 %v2326, %v2323
    %s2331 = scalar_lea.vmem %s10, 128
    %v2332 = vld [vmem:[%s2331] sm:$0xf]
    %v2333 = vld [vmem:[%s2331 + $0x4] sm:$0xf]
    %v2334 = vld [vmem:[%s2331 + $0x8] sm:$0xf]
    %v2335 = vld [vmem:[%s2331 + $0xc] sm:$0xf]
    %v2336 = vld [vmem:[%s2331 + $0x10] sm:$0xf]
    %v2337 = vld [vmem:[%s2331 + $0x14] sm:$0xf]
    %v2338 = vld [vmem:[%s2331 + $0x18] sm:$0xf]
    %v2339 = vld [vmem:[%s2331 + $0x1c] sm:$0xf]
    %v2340 = vld [vmem:[%s2331 + $0x20] sm:$0xf]
    %v2341 = vld [vmem:[%s2331 + $0x24] sm:$0xf]
    %v2342 = vld [vmem:[%s2331 + $0x28] sm:$0xf]
    %v2343 = vld [vmem:[%s2331 + $0x2c] sm:$0xf]
    %v2344 = vld [vmem:[%s2331 + $0x30] sm:$0xf]
    %v2345 = vld [vmem:[%s2331 + $0x34] sm:$0xf]
    %v2346 = vld [vmem:[%s2331 + $0x38] sm:$0xf]
    %v2347 = vld [vmem:[%s2331 + $0x3c] sm:$0xf]
    %v2348 = vpack.c.bf16 %v2108, %v2104
    %v2349 = vpack.c.bf16 %v2118, %v2114
    %v2350 = vpack.c.bf16 %v2159, %v2155
    %v2351 = vpack.c.bf16 %v2169, %v2165
    %v2352 = vpack.c.bf16 %v2161, %v2157
    %v2353 = vpack.c.bf16 %v2171, %v2167
    %2354 = vmatprep.subr.bf16.mxu0 0
    %2355 = vmatpush1.bf16.xpose.msra.mxu0 0
    %2356 = vmatprep.subr.bf16.mxu0 0
    %2357 = vmatpush1.bf16.xpose.msra.mxu0 0
    %2358 = vmatprep.subr.bf16.mxu0 0
    %2359 = vmatpush1.bf16.xpose.msra.mxu0 0
    %2360 = vmatprep.subr.bf16.mxu0 0
    %2361 = vmatpush1.bf16.xpose.msra.mxu0 0
    %2362 = vmatprep.subr.bf16.mxu0 0
    %2363 = vmatpush1.bf16.xpose.msra.mxu0 0
    %2364 = vmatprep.subr.bf16.mxu0 0
    %2365 = vmatpush1.bf16.xpose.msra.mxu0 0
    %2366 = vmatprep.subr.bf16.mxu0 0
    %2367 = vmatpush1.bf16.xpose.msra.mxu0 %v2351
    %2368 = vmatprep.subr.bf16.mxu0 0
    %2369 = vmatpush1.bf16.xpose.msra.mxu0 %v2350
    %2370 = vmatprep.subr.bf16.mxu0 0
    %2371 = vmatpush2.bf16.xpose.msra.mxu0 0
    %2372 = vmatprep.subr.bf16.mxu0 0
    %2373 = vmatpush2.bf16.xpose.msra.mxu0 0
    %2374 = vmatprep.subr.bf16.mxu0 0
    %2375 = vmatpush2.bf16.xpose.msra.mxu0 0
    %2376 = vmatprep.subr.bf16.mxu0 0
    %2377 = vmatpush2.bf16.xpose.msra.mxu0 0
    %2378 = vmatprep.subr.bf16.mxu0 0
    %2379 = vmatpush2.bf16.xpose.msra.mxu0 0
    %2380 = vmatprep.subr.bf16.mxu0 0
    %2381 = vmatpush2.bf16.xpose.msra.mxu0 0
    %2382 = vmatprep.subr.bf16.mxu0 0
    %2383 = vmatpush2.bf16.xpose.msra.mxu0 0
    %2384 = vmatprep.subr.bf16.mxu0 0
    %2385 = vmatpush2.bf16.xpose.msra.mxu0 0
    %2386 = vmatprep.mubr.bf16.mxu0 0
    %2387 = vmatmul.mubr.bf16.gmra.mxu0 %v2348
    %v2388 = vpop.f32.mrf.mxu0
    %v2389 = vadd.f32 %v389, %v2388
    %v2390 = vpop.f32.mrf.mxu0
    %v2391 = vpop.f32.mrf.mxu0
    %v2392 = vadd.f32 %v390, %v2391
    %v2393 = vpop.f32.mrf.mxu0
    %2394 = vmatprep.mubr.bf16.mxu0 0
    %2395 = vmatmul.mubr.bf16.gmra.mxu0 %v2349
    %v2396 = vpop.f32.mrf.mxu0
    %v2397 = vadd.f32 %v391, %v2396
    %v2398 = vpop.f32.mrf.mxu0
    %v2399 = vpop.f32.mrf.mxu0
    %v2400 = vadd.f32 %v392, %v2399
    %v2401 = vpop.f32.mrf.mxu0
    %2402 = vdwg.mxu0
    %v2403 = vsel %vm791, %v2389, -inf
    %2404 = vmax.xlane.f32.xlu0 %v2403
    %v2405 = vpop.xlane.xlu0 %2404
    %v2406 = vsel %vm791, %v2392, -inf
    %2407 = vmax.xlane.f32.xlu0 %v2406
    %v2408 = vpop.xlane.xlu0 %2407
    %v2409 = vsel %vm791, %v2397, -inf
    %2410 = vmax.xlane.f32.xlu0 %v2409
    %v2411 = vpop.xlane.xlu0 %2410
    %v2412 = vsel %vm791, %v2400, -inf
    %2413 = vmax.xlane.f32.xlu0 %v2412
    %v2414 = vpop.xlane.xlu0 %2413
    %v2415 = vsub.f32 %v2389, %v2405
    %v2416 = vsub.f32 %v2392, %v2408
    %v2417 = vsub.f32 %v2397, %v2411
    %v2418 = vsub.f32 %v2400, %v2414
    %v2419 = vmul.f32 %v2415, 1.442695
    %v2420 = vpow.pop %v2419
    %v2421 = vmul.f32 %v2416, 1.442695
    %v2422 = vpow.pop %v2421
    %v2423 = vmul.f32 %v2417, 1.442695
    %v2424 = vpow.pop %v2423
    %v2425 = vmul.f32 %v2418, 1.442695
    %v2426 = vpow.pop %v2425
    %v2427 = vsel %vm791, %v2420, 0.0
    %2428 = vadd.xlane.f32.xlu0 %v2427
    %v2429 = vpop.xlane.xlu0 %2428
    %v2430 = vsel %vm791, %v2422, 0.0
    %2431 = vadd.xlane.f32.xlu0 %v2430
    %v2432 = vpop.xlane.xlu0 %2431
    %v2433 = vsel %vm791, %v2424, 0.0
    %2434 = vadd.xlane.f32.xlu0 %v2433
    %v2435 = vpop.xlane.xlu0 %2434
    %v2436 = vsel %vm791, %v2426, 0.0
    %2437 = vadd.xlane.f32.xlu0 %v2436
    %v2438 = vpop.xlane.xlu0 %2437
    %v2439 = vrcp.pop %v2429
    %v2440 = vmul.f32 %v2420, %v2439
    %v2441 = vrcp.pop %v2432
    %v2442 = vmul.f32 %v2422, %v2441
    %v2443 = vrcp.pop %v2435
    %v2444 = vmul.f32 %v2424, %v2443
    %v2445 = vrcp.pop %v2438
    %v2446 = vmul.f32 %v2426, %v2445
    %v2447 = vpack.c.bf16 %v2442, %v2440
    %v2448 = vpack.c.bf16 %v2446, %v2444
    %v2450 = vsel %vm791, %v2447, 0
    %v2453 = vsel %vm791, %v2448, 0
    %2455 = vmatprep.subr.bf16.mxu0 0
    %2456 = vmatpush1.bf16.msra.mxu0 0
    %2457 = vmatprep.subr.bf16.mxu0 0
    %2458 = vmatpush1.bf16.msra.mxu0 0
    %2459 = vmatprep.subr.bf16.mxu0 0
    %2460 = vmatpush1.bf16.msra.mxu0 0
    %2461 = vmatprep.subr.bf16.mxu0 0
    %2462 = vmatpush1.bf16.msra.mxu0 0
    %2463 = vmatprep.subr.bf16.mxu0 0
    %2464 = vmatpush1.bf16.msra.mxu0 0
    %2465 = vmatprep.subr.bf16.mxu0 0
    %2466 = vmatpush1.bf16.msra.mxu0 0
    %2467 = vmatprep.subr.bf16.mxu0 0
    %2468 = vmatpush1.bf16.msra.mxu0 %v2353
    %2469 = vmatprep.subr.bf16.mxu0 0
    %2470 = vmatpush1.bf16.msra.mxu0 %v2352
    %2471 = vmatprep.subr.bf16.mxu0 0
    %2472 = vmatpush2.bf16.msra.mxu0 0
    %2473 = vmatprep.subr.bf16.mxu0 0
    %2474 = vmatpush2.bf16.msra.mxu0 0
    %2475 = vmatprep.subr.bf16.mxu0 0
    %2476 = vmatpush2.bf16.msra.mxu0 0
    %2477 = vmatprep.subr.bf16.mxu0 0
    %2478 = vmatpush2.bf16.msra.mxu0 0
    %2479 = vmatprep.subr.bf16.mxu0 0
    %2480 = vmatpush2.bf16.msra.mxu0 0
    %2481 = vmatprep.subr.bf16.mxu0 0
    %2482 = vmatpush2.bf16.msra.mxu0 0
    %2483 = vmatprep.subr.bf16.mxu0 0
    %2484 = vmatpush2.bf16.msra.mxu0 0
    %2485 = vmatprep.subr.bf16.mxu0 0
    %2486 = vmatpush2.bf16.msra.mxu0 0
    %2487 = vmatprep.mubr.bf16.mxu0 0
    %2488 = vmatmul.mubr.bf16.gmra.mxu0 %v2450
    %v2489 = vpop.f32.mrf.mxu0
    %v2490 = vadd.f32 0.0, %v2489
    %v2491 = vpop.f32.mrf.mxu0
    %v2492 = vpop.f32.mrf.mxu0
    %v2493 = vadd.f32 0.0, %v2492
    %v2494 = vpop.f32.mrf.mxu0
    %2495 = vmatprep.mubr.bf16.mxu0 0
    %2496 = vmatmul.mubr.bf16.gmra.mxu0 %v2453
    %v2497 = vpop.f32.mrf.mxu0
    %v2498 = vadd.f32 0.0, %v2497
    %v2499 = vpop.f32.mrf.mxu0
    %v2500 = vpop.f32.mrf.mxu0
    %v2501 = vadd.f32 0.0, %v2500
    %v2502 = vpop.f32.mrf.mxu0
    %2503 = vdwg.mxu0
    %v2504 = vpack.c.bf16 %v2493, %v2490
    %v2505 = vpack.c.bf16 %v2501, %v2498
    %s2506 = scalar_lea.vmem %s10, 192
    %v2507 = vld [vmem:[%s2506] sm:$0xf]
    %v2508 = vld [vmem:[%s2506 + $0x4] sm:$0xf]
    %v2509 = vld [vmem:[%s2506 + $0x8] sm:$0xf]
    %v2510 = vld [vmem:[%s2506 + $0xc] sm:$0xf]
    %v2511 = vld [vmem:[%s2506 + $0x10] sm:$0xf]
    %v2512 = vld [vmem:[%s2506 + $0x14] sm:$0xf]
    %v2513 = vld [vmem:[%s2506 + $0x18] sm:$0xf]
    %v2514 = vld [vmem:[%s2506 + $0x1c] sm:$0xf]
    %v2515 = vld [vmem:[%s2506 + $0x20] sm:$0xf]
    %v2516 = vld [vmem:[%s2506 + $0x24] sm:$0xf]
    %v2517 = vld [vmem:[%s2506 + $0x28] sm:$0xf]
    %v2518 = vld [vmem:[%s2506 + $0x2c] sm:$0xf]
    %v2519 = vld [vmem:[%s2506 + $0x30] sm:$0xf]
    %v2520 = vld [vmem:[%s2506 + $0x34] sm:$0xf]
    %v2521 = vld [vmem:[%s2506 + $0x38] sm:$0xf]
    %v2522 = vld [vmem:[%s2506 + $0x3c] sm:$0xf]
    %v2539 = vunpack.c.l.b16 %v2507
    %v2540 = vunpack.c.l.b16 %v2508
    %v2541 = vunpack.c.l.b16 %v2509
    %v2542 = vunpack.c.l.b16 %v2510
    %v2543 = vunpack.c.l.b16 %v2511
    %v2544 = vunpack.c.l.b16 %v2512
    %v2545 = vunpack.c.l.b16 %v2513
    %v2546 = vunpack.c.l.b16 %v2514
    %v2547 = vunpack.c.l.b16 %v2515
    %v2548 = vunpack.c.l.b16 %v2516
    %v2549 = vunpack.c.l.b16 %v2517
    %v2550 = vunpack.c.l.b16 %v2518
    %v2551 = vunpack.c.l.b16 %v2519
    %v2552 = vunpack.c.l.b16 %v2520
    %v2553 = vunpack.c.l.b16 %v2521
    %v2554 = vunpack.c.l.b16 %v2522
    %v2555 = vpack.c.b16 %v2540, %v2539
    %v2556 = vpack.c.b16 %v2542, %v2541
    %v2557 = vpack.c.b16 %v2544, %v2543
    %v2558 = vpack.c.b16 %v2546, %v2545
    %v2559 = vpack.c.b16 %v2548, %v2547
    %v2560 = vpack.c.b16 %v2550, %v2549
    %v2561 = vpack.c.b16 %v2552, %v2551
    %v2562 = vpack.c.b16 %v2554, %v2553
    %2571 = vmatprep.subr.bf16.mxu0 0
    %2572 = vmatpush1.bf16.msra.mxu0 %v2562
    %2573 = vmatprep.subr.bf16.mxu0 0
    %2574 = vmatpush1.bf16.msra.mxu0 %v2561
    %2575 = vmatprep.subr.bf16.mxu0 0
    %2576 = vmatpush1.bf16.msra.mxu0 %v2560
    %2577 = vmatprep.subr.bf16.mxu0 0
    %2578 = vmatpush1.bf16.msra.mxu0 %v2559
    %2579 = vmatprep.subr.bf16.mxu0 0
    %2580 = vmatpush1.bf16.msra.mxu0 %v2558
    %2581 = vmatprep.subr.bf16.mxu0 0
    %2582 = vmatpush1.bf16.msra.mxu0 %v2557
    %2583 = vmatprep.subr.bf16.mxu0 0
    %2584 = vmatpush1.bf16.msra.mxu0 %v2556
    %2585 = vmatprep.subr.bf16.mxu0 0
    %2586 = vmatpush1.bf16.msra.mxu0 %v2555
    %2587 = vmatprep.subr.bf16.mxu0 0
    %2588 = vmatpush2.bf16.msra.mxu0 0
    %2589 = vmatprep.subr.bf16.mxu0 0
    %2590 = vmatpush2.bf16.msra.mxu0 0
    %2591 = vmatprep.subr.bf16.mxu0 0
    %2592 = vmatpush2.bf16.msra.mxu0 0
    %2593 = vmatprep.subr.bf16.mxu0 0
    %2594 = vmatpush2.bf16.msra.mxu0 0
    %2595 = vmatprep.subr.bf16.mxu0 0
    %2596 = vmatpush2.bf16.msra.mxu0 0
    %2597 = vmatprep.subr.bf16.mxu0 0
    %2598 = vmatpush2.bf16.msra.mxu0 0
    %2599 = vmatprep.subr.bf16.mxu0 0
    %2600 = vmatpush2.bf16.msra.mxu0 0
    %2601 = vmatprep.subr.bf16.mxu0 0
    %2602 = vmatpush2.bf16.msra.mxu0 0
    %2603 = vmatprep.mubr.bf16.mxu0 0
    %2604 = vmatmul.mubr.bf16.gmra.mxu0 %v2504
    %v2605 = vpop.f32.mrf.mxu0
    %v2606 = vadd.f32 0.0, %v2605
    %v2607 = vpop.f32.mrf.mxu0
    %v2608 = vpop.f32.mrf.mxu0
    %v2609 = vadd.f32 0.0, %v2608
    %v2610 = vpop.f32.mrf.mxu0
    %2611 = vmatprep.mubr.bf16.mxu0 0
    %2612 = vmatmul.mubr.bf16.gmra.mxu0 %v2505
    %v2613 = vpop.f32.mrf.mxu0
    %v2614 = vadd.f32 0.0, %v2613
    %v2615 = vpop.f32.mrf.mxu0
    %v2616 = vpop.f32.mrf.mxu0
    %v2617 = vadd.f32 0.0, %v2616
    %v2618 = vpop.f32.mrf.mxu0
    %2619 = vdwg.mxu0
    %v2636 = vunpack.c.l.b16 %v2332
    %v2637 = vunpack.c.l.b16 %v2333
    %v2638 = vunpack.c.l.b16 %v2334
    %v2639 = vunpack.c.l.b16 %v2335
    %v2640 = vunpack.c.l.b16 %v2336
    %v2641 = vunpack.c.l.b16 %v2337
    %v2642 = vunpack.c.l.b16 %v2338
    %v2643 = vunpack.c.l.b16 %v2339
    %v2644 = vunpack.c.l.b16 %v2340
    %v2645 = vunpack.c.l.b16 %v2341
    %v2646 = vunpack.c.l.b16 %v2342
    %v2647 = vunpack.c.l.b16 %v2343
    %v2648 = vunpack.c.l.b16 %v2344
    %v2649 = vunpack.c.l.b16 %v2345
    %v2650 = vunpack.c.l.b16 %v2346
    %v2651 = vunpack.c.l.b16 %v2347
    %v2652 = vpack.c.b16 %v2637, %v2636
    %v2653 = vpack.c.b16 %v2639, %v2638
    %v2654 = vpack.c.b16 %v2641, %v2640
    %v2655 = vpack.c.b16 %v2643, %v2642
    %v2656 = vpack.c.b16 %v2645, %v2644
    %v2657 = vpack.c.b16 %v2647, %v2646
    %v2658 = vpack.c.b16 %v2649, %v2648
    %v2659 = vpack.c.b16 %v2651, %v2650
    %2668 = vmatprep.subr.bf16.mxu0 0
    %2669 = vmatpush1.bf16.msra.mxu0 %v2659
    %2670 = vmatprep.subr.bf16.mxu0 0
    %2671 = vmatpush1.bf16.msra.mxu0 %v2658
    %2672 = vmatprep.subr.bf16.mxu0 0
    %2673 = vmatpush1.bf16.msra.mxu0 %v2657
    %2674 = vmatprep.subr.bf16.mxu0 0
    %2675 = vmatpush1.bf16.msra.mxu0 %v2656
    %2676 = vmatprep.subr.bf16.mxu0 0
    %2677 = vmatpush1.bf16.msra.mxu0 %v2655
    %2678 = vmatprep.subr.bf16.mxu0 0
    %2679 = vmatpush1.bf16.msra.mxu0 %v2654
    %2680 = vmatprep.subr.bf16.mxu0 0
    %2681 = vmatpush1.bf16.msra.mxu0 %v2653
    %2682 = vmatprep.subr.bf16.mxu0 0
    %2683 = vmatpush1.bf16.msra.mxu0 %v2652
    %2684 = vmatprep.subr.bf16.mxu0 0
    %2685 = vmatpush2.bf16.msra.mxu0 0
    %2686 = vmatprep.subr.bf16.mxu0 0
    %2687 = vmatpush2.bf16.msra.mxu0 0
    %2688 = vmatprep.subr.bf16.mxu0 0
    %2689 = vmatpush2.bf16.msra.mxu0 0
    %2690 = vmatprep.subr.bf16.mxu0 0
    %2691 = vmatpush2.bf16.msra.mxu0 0
    %2692 = vmatprep.subr.bf16.mxu0 0
    %2693 = vmatpush2.bf16.msra.mxu0 0
    %2694 = vmatprep.subr.bf16.mxu0 0
    %2695 = vmatpush2.bf16.msra.mxu0 0
    %2696 = vmatprep.subr.bf16.mxu0 0
    %2697 = vmatpush2.bf16.msra.mxu0 0
    %2698 = vmatprep.subr.bf16.mxu0 0
    %2699 = vmatpush2.bf16.msra.mxu0 0
    %2700 = vmatprep.mubr.bf16.mxu0 0
    %2701 = vmatmul.mubr.bf16.gmra.mxu0 %v2329
    %v2702 = vpop.f32.mrf.mxu0
    %v2703 = vadd.f32 %v2606, %v2702
    %v2704 = vpop.f32.mrf.mxu0
    %v2705 = vpop.f32.mrf.mxu0
    %v2706 = vadd.f32 %v2609, %v2705
    %v2707 = vpop.f32.mrf.mxu0
    %2708 = vmatprep.mubr.bf16.mxu0 0
    %2709 = vmatmul.mubr.bf16.gmra.mxu0 %v2330
    %v2710 = vpop.f32.mrf.mxu0
    %v2711 = vadd.f32 %v2614, %v2710
    %v2712 = vpop.f32.mrf.mxu0
    %v2713 = vpop.f32.mrf.mxu0
    %v2714 = vadd.f32 %v2617, %v2713
    %v2715 = vpop.f32.mrf.mxu0
    %2716 = vdwg.mxu0
    %s2717 = scalar_lea.vmem %s11, 1
    %v2718 = vld [vmem:[%s2717] sm:$0x1]
    %v2720 = vlaneseq
    %v2721 = vshrl.u32 %v2720, 7
    %v2722 = vsub.s32 0, %v2721
    %v2723 = vrot.slane %v2718, %v2722
    %v2725 = vadd.f32 %v2703, %v2723
    %v2726 = vadd.f32 %v2706, %v2723
    %v2727 = vadd.f32 %v2711, %v2723
    %v2728 = vadd.f32 %v2714, %v2723
    %v2729 = vadd.f32 %v2725, %v1824
    %v2730 = vadd.f32 %v2726, %v1825
    %v2731 = vadd.f32 %v2727, %v1826
    %v2732 = vadd.f32 %v2728, %v1827
    %s2733 = scalar_lea.vmem %s12, 1
    %v2734 = vld [vmem:[%s2733] sm:$0x1]
    %s2735 = scalar_lea.vmem %s13, 1
    %v2736 = vld [vmem:[%s2735] sm:$0x1]
    %v2737 = vsel %vm315, %v2729, 0.0
    %2738 = vadd.xlane.f32.xlu0 %v2737
    %v2739 = vpop.xlane.xlu0 %2738
    %v2740 = vsel %vm315, %v2730, 0.0
    %2741 = vadd.xlane.f32.xlu0 %v2740
    %v2742 = vpop.xlane.xlu0 %2741
    %v2743 = vsel %vm315, %v2731, 0.0
    %2744 = vadd.xlane.f32.xlu0 %v2743
    %v2745 = vpop.xlane.xlu0 %2744
    %v2746 = vsel %vm315, %v2732, 0.0
    %2747 = vadd.xlane.f32.xlu0 %v2746
    %v2748 = vpop.xlane.xlu0 %2747
    %v2749 = vmul.f32 %v2739, %v328
    %v2750 = vmul.f32 %v2742, %v328
    %v2751 = vmul.f32 %v2745, %v328
    %v2752 = vmul.f32 %v2748, %v328
    %v2753 = vsub.f32 %v2729, %v2749
    %v2754 = vsub.f32 %v2730, %v2750
    %v2755 = vsub.f32 %v2731, %v2751
    %v2756 = vsub.f32 %v2732, %v2752
    %v2757 = vmul.f32 %v2753, %v2753
    %v2758 = vmul.f32 %v2754, %v2754
    %v2759 = vmul.f32 %v2755, %v2755
    %v2760 = vmul.f32 %v2756, %v2756
    %v2761 = vsel %vm315, %v2757, 0.0
    %2762 = vadd.xlane.f32.xlu0 %v2761
    %v2763 = vpop.xlane.xlu0 %2762
    %v2764 = vsel %vm315, %v2758, 0.0
    %2765 = vadd.xlane.f32.xlu0 %v2764
    %v2766 = vpop.xlane.xlu0 %2765
    %v2767 = vsel %vm315, %v2759, 0.0
    %2768 = vadd.xlane.f32.xlu0 %v2767
    %v2769 = vpop.xlane.xlu0 %2768
    %v2770 = vsel %vm315, %v2760, 0.0
    %2771 = vadd.xlane.f32.xlu0 %v2770
    %v2772 = vpop.xlane.xlu0 %2771
    %v2773 = vmul.f32 %v2763, %v328
    %v2774 = vmul.f32 %v2766, %v328
    %v2775 = vmul.f32 %v2769, %v328
    %v2776 = vmul.f32 %v2772, %v328
    %v2777 = vadd.f32 %v2773, 1e-12
    %v2778 = vadd.f32 %v2774, 1e-12
    %v2779 = vadd.f32 %v2775, 1e-12
    %v2780 = vadd.f32 %v2776, 1e-12
    %v2781 = vrsqrt.pop %v2777
    %v2782 = vrsqrt.pop %v2778
    %v2783 = vrsqrt.pop %v2779
    %v2784 = vrsqrt.pop %v2780
    %v2785 = vmul.f32 %v2753, %v2781
    %v2786 = vmul.f32 %v2754, %v2782
    %v2787 = vmul.f32 %v2755, %v2783
    %v2788 = vmul.f32 %v2756, %v2784
    %v2790 = vlaneseq
    %v2791 = vshrl.u32 %v2790, 7
    %v2792 = vsub.s32 0, %v2791
    %v2793 = vrot.slane %v2734, %v2792
    %v2795 = vmul.f32 %v2785, %v2793
    %v2796 = vmul.f32 %v2786, %v2793
    %v2797 = vmul.f32 %v2787, %v2793
    %v2798 = vmul.f32 %v2788, %v2793
    %v2800 = vlaneseq
    %v2801 = vshrl.u32 %v2800, 7
    %v2802 = vsub.s32 0, %v2801
    %v2803 = vrot.slane %v2736, %v2802
    %v2805 = vadd.f32 %v2795, %v2803
    %v2806 = vadd.f32 %v2796, %v2803
    %v2807 = vadd.f32 %v2797, %v2803
    %v2808 = vadd.f32 %v2798, %v2803
    %v2809 = vpack.c.bf16 %v2806, %v2805
    %v2810 = vpack.c.bf16 %v2808, %v2807
    %s2811 = scalar_lea.vmem %s14, 64
    %v2812 = vld [vmem:[%s2811] sm:$0xff]
    %v2813 = vld [vmem:[%s2811 + $0x8] sm:$0xff]
    %v2814 = vld [vmem:[%s2811 + $0x10] sm:$0xff]
    %v2815 = vld [vmem:[%s2811 + $0x18] sm:$0xff]
    %v2816 = vld [vmem:[%s2811 + $0x20] sm:$0xff]
    %v2817 = vld [vmem:[%s2811 + $0x28] sm:$0xff]
    %v2818 = vld [vmem:[%s2811 + $0x30] sm:$0xff]
    %v2819 = vld [vmem:[%s2811 + $0x38] sm:$0xff]
    %s2820 = scalar_lea.vmem %s15, 2
    %v2821 = vld [vmem:[%s2820] sm:$0x3]
    %v2823 = vlaneseq
    %v2824 = vshrl.u32 %v2823, 7
    %v2825 = vsub.s32 0, %v2824
    %v2826 = vrot.slane %v2821, %v2825
    %v2827 = vlaneseq
    %v2828 = vshrl.u32 %v2827, 7
    %v2829 = vsub.s32 1, %v2828
    %v2830 = vrot.slane %v2821, %v2829
    %v2841 = vunpack.c.l.b16 %v2812
    %v2842 = vunpack.c.h.b16 %v2812
    %v2843 = vunpack.c.l.b16 %v2813
    %v2844 = vunpack.c.h.b16 %v2813
    %v2845 = vunpack.c.l.b16 %v2814
    %v2846 = vunpack.c.h.b16 %v2814
    %v2847 = vunpack.c.l.b16 %v2815
    %v2848 = vunpack.c.h.b16 %v2815
    %v2849 = vunpack.c.l.b16 %v2816
    %v2850 = vunpack.c.h.b16 %v2816
    %v2851 = vunpack.c.l.b16 %v2817
    %v2852 = vunpack.c.h.b16 %v2817
    %v2853 = vunpack.c.l.b16 %v2818
    %v2854 = vunpack.c.h.b16 %v2818
    %v2855 = vunpack.c.l.b16 %v2819
    %v2856 = vunpack.c.h.b16 %v2819
    %v2857 = vpack.c.b16 %v2843, %v2841
    %v2858 = vpack.c.b16 %v2844, %v2842
    %v2859 = vpack.c.b16 %v2847, %v2845
    %v2860 = vpack.c.b16 %v2848, %v2846
    %v2861 = vpack.c.b16 %v2851, %v2849
    %v2862 = vpack.c.b16 %v2852, %v2850
    %v2863 = vpack.c.b16 %v2855, %v2853
    %v2864 = vpack.c.b16 %v2856, %v2854
    %v2874 = vsel %vm315, %v2809, 0
    %v2877 = vsel %vm315, %v2810, 0
    %2879 = vmatprep.subr.bf16.mxu0 0
    %2880 = vmatpush1.bf16.msra.mxu0 0
    %2881 = vmatprep.subr.bf16.mxu0 0
    %2882 = vmatpush1.bf16.msra.mxu0 0
    %2883 = vmatprep.subr.bf16.mxu0 0
    %2884 = vmatpush1.bf16.msra.mxu0 0
    %2885 = vmatprep.subr.bf16.mxu0 0
    %2886 = vmatpush1.bf16.msra.mxu0 0
    %2887 = vmatprep.subr.bf16.mxu0 %v2864
    %2888 = vmatpush1.bf16.msra.mxu0 %v2863
    %2889 = vmatprep.subr.bf16.mxu0 %v2862
    %2890 = vmatpush1.bf16.msra.mxu0 %v2861
    %2891 = vmatprep.subr.bf16.mxu0 %v2860
    %2892 = vmatpush1.bf16.msra.mxu0 %v2859
    %2893 = vmatprep.subr.bf16.mxu0 %v2858
    %2894 = vmatpush1.bf16.msra.mxu0 %v2857
    %2895 = vmatprep.subr.bf16.mxu0 0
    %2896 = vmatpush2.bf16.msra.mxu0 0
    %2897 = vmatprep.subr.bf16.mxu0 0
    %2898 = vmatpush2.bf16.msra.mxu0 0
    %2899 = vmatprep.subr.bf16.mxu0 0
    %2900 = vmatpush2.bf16.msra.mxu0 0
    %2901 = vmatprep.subr.bf16.mxu0 0
    %2902 = vmatpush2.bf16.msra.mxu0 0
    %2903 = vmatprep.subr.bf16.mxu0 0
    %2904 = vmatpush2.bf16.msra.mxu0 0
    %2905 = vmatprep.subr.bf16.mxu0 0
    %2906 = vmatpush2.bf16.msra.mxu0 0
    %2907 = vmatprep.subr.bf16.mxu0 0
    %2908 = vmatpush2.bf16.msra.mxu0 0
    %2909 = vmatprep.subr.bf16.mxu0 0
    %2910 = vmatpush2.bf16.msra.mxu0 0
    %2911 = vmatprep.mubr.bf16.mxu0 0
    %2912 = vmatmul.mubr.bf16.gmra.mxu0 %v2874
    %v2913 = vpop.f32.mrf.mxu0
    %v2914 = vadd.f32 %v2826, %v2913
    %v2915 = vpop.f32.mrf.mxu0
    %v2916 = vadd.f32 %v2830, %v2915
    %v2917 = vpop.f32.mrf.mxu0
    %v2918 = vadd.f32 %v2826, %v2917
    %v2919 = vpop.f32.mrf.mxu0
    %v2920 = vadd.f32 %v2830, %v2919
    %2921 = vmatprep.mubr.bf16.mxu0 0
    %2922 = vmatmul.mubr.bf16.gmra.mxu0 %v2877
    %v2923 = vpop.f32.mrf.mxu0
    %v2924 = vadd.f32 %v2826, %v2923
    %v2925 = vpop.f32.mrf.mxu0
    %v2926 = vadd.f32 %v2830, %v2925
    %v2927 = vpop.f32.mrf.mxu0
    %v2928 = vadd.f32 %v2826, %v2927
    %v2929 = vpop.f32.mrf.mxu0
    %v2930 = vadd.f32 %v2830, %v2929
    %2931 = vdwg.mxu0
    %v2932 = vmul.f32 %v2914, 0.5
    %v2933 = vmul.f32 %v2916, 0.5
    %v2934 = vmul.f32 %v2918, 0.5
    %v2935 = vmul.f32 %v2920, 0.5
    %v2936 = vmul.f32 %v2924, 0.5
    %v2937 = vmul.f32 %v2926, 0.5
    %v2938 = vmul.f32 %v2928, 0.5
    %v2939 = vmul.f32 %v2930, 0.5
    %v2940 = vmul.f32 %v2914, 0.044715
    %v2941 = vmul.f32 %v2916, 0.044715
    %v2942 = vmul.f32 %v2918, 0.044715
    %v2943 = vmul.f32 %v2920, 0.044715
    %v2944 = vmul.f32 %v2924, 0.044715
    %v2945 = vmul.f32 %v2926, 0.044715
    %v2946 = vmul.f32 %v2928, 0.044715
    %v2947 = vmul.f32 %v2930, 0.044715
    %v2948 = vmul.f32 %v2940, %v2914
    %v2949 = vmul.f32 %v2941, %v2916
    %v2950 = vmul.f32 %v2942, %v2918
    %v2951 = vmul.f32 %v2943, %v2920
    %v2952 = vmul.f32 %v2944, %v2924
    %v2953 = vmul.f32 %v2945, %v2926
    %v2954 = vmul.f32 %v2946, %v2928
    %v2955 = vmul.f32 %v2947, %v2930
    %v2956 = vmul.f32 %v2948, %v2914
    %v2957 = vmul.f32 %v2949, %v2916
    %v2958 = vmul.f32 %v2950, %v2918
    %v2959 = vmul.f32 %v2951, %v2920
    %v2960 = vmul.f32 %v2952, %v2924
    %v2961 = vmul.f32 %v2953, %v2926
    %v2962 = vmul.f32 %v2954, %v2928
    %v2963 = vmul.f32 %v2955, %v2930
    %v2964 = vadd.f32 %v2914, %v2956
    %v2965 = vadd.f32 %v2916, %v2957
    %v2966 = vadd.f32 %v2918, %v2958
    %v2967 = vadd.f32 %v2920, %v2959
    %v2968 = vadd.f32 %v2924, %v2960
    %v2969 = vadd.f32 %v2926, %v2961
    %v2970 = vadd.f32 %v2928, %v2962
    %v2971 = vadd.f32 %v2930, %v2963
    %v2972 = vmul.f32 %v2964, 0.7978846
    %v2973 = vmul.f32 %v2965, 0.7978846
    %v2974 = vmul.f32 %v2966, 0.7978846
    %v2975 = vmul.f32 %v2967, 0.7978846
    %v2976 = vmul.f32 %v2968, 0.7978846
    %v2977 = vmul.f32 %v2969, 0.7978846
    %v2978 = vmul.f32 %v2970, 0.7978846
    %v2979 = vmul.f32 %v2971, 0.7978846
    %v2980 = vtanh.pop %v2972
    %v2981 = vtanh.pop %v2973
    %v2982 = vtanh.pop %v2974
    %v2983 = vtanh.pop %v2975
    %v2984 = vtanh.pop %v2976
    %v2985 = vtanh.pop %v2977
    %v2986 = vtanh.pop %v2978
    %v2987 = vtanh.pop %v2979
    %v2988 = vadd.f32 %v2980, 1.0
    %v2989 = vadd.f32 %v2981, 1.0
    %v2990 = vadd.f32 %v2982, 1.0
    %v2991 = vadd.f32 %v2983, 1.0
    %v2992 = vadd.f32 %v2984, 1.0
    %v2993 = vadd.f32 %v2985, 1.0
    %v2994 = vadd.f32 %v2986, 1.0
    %v2995 = vadd.f32 %v2987, 1.0
    %v2996 = vmul.f32 %v2932, %v2988
    %v2997 = vmul.f32 %v2933, %v2989
    %v2998 = vmul.f32 %v2934, %v2990
    %v2999 = vmul.f32 %v2935, %v2991
    %v3000 = vmul.f32 %v2936, %v2992
    %v3001 = vmul.f32 %v2937, %v2993
    %v3002 = vmul.f32 %v2938, %v2994
    %v3003 = vmul.f32 %v2939, %v2995
    %v3004 = vpack.c.bf16 %v2998, %v2996
    %v3005 = vpack.c.bf16 %v2999, %v2997
    %v3006 = vpack.c.bf16 %v3002, %v3000
    %v3007 = vpack.c.bf16 %v3003, %v3001
    %s3008 = scalar_lea.vmem %s16, 128
    %v3009 = vld [vmem:[%s3008] sm:$0xf]
    %v3010 = vld [vmem:[%s3008 + $0x4] sm:$0xf]
    %v3011 = vld [vmem:[%s3008 + $0x8] sm:$0xf]
    %v3012 = vld [vmem:[%s3008 + $0xc] sm:$0xf]
    %v3013 = vld [vmem:[%s3008 + $0x10] sm:$0xf]
    %v3014 = vld [vmem:[%s3008 + $0x14] sm:$0xf]
    %v3015 = vld [vmem:[%s3008 + $0x18] sm:$0xf]
    %v3016 = vld [vmem:[%s3008 + $0x1c] sm:$0xf]
    %v3017 = vld [vmem:[%s3008 + $0x20] sm:$0xf]
    %v3018 = vld [vmem:[%s3008 + $0x24] sm:$0xf]
    %v3019 = vld [vmem:[%s3008 + $0x28] sm:$0xf]
    %v3020 = vld [vmem:[%s3008 + $0x2c] sm:$0xf]
    %v3021 = vld [vmem:[%s3008 + $0x30] sm:$0xf]
    %v3022 = vld [vmem:[%s3008 + $0x34] sm:$0xf]
    %v3023 = vld [vmem:[%s3008 + $0x38] sm:$0xf]
    %v3024 = vld [vmem:[%s3008 + $0x3c] sm:$0xf]
    %v3025 = vld [vmem:[%s3008 + $0x40] sm:$0xf]
    %v3026 = vld [vmem:[%s3008 + $0x44] sm:$0xf]
    %v3027 = vld [vmem:[%s3008 + $0x48] sm:$0xf]
    %v3028 = vld [vmem:[%s3008 + $0x4c] sm:$0xf]
    %v3029 = vld [vmem:[%s3008 + $0x50] sm:$0xf]
    %v3030 = vld [vmem:[%s3008 + $0x54] sm:$0xf]
    %v3031 = vld [vmem:[%s3008 + $0x58] sm:$0xf]
    %v3032 = vld [vmem:[%s3008 + $0x5c] sm:$0xf]
    %v3033 = vld [vmem:[%s3008 + $0x60] sm:$0xf]
    %v3034 = vld [vmem:[%s3008 + $0x64] sm:$0xf]
    %v3035 = vld [vmem:[%s3008 + $0x68] sm:$0xf]
    %v3036 = vld [vmem:[%s3008 + $0x6c] sm:$0xf]
    %v3037 = vld [vmem:[%s3008 + $0x70] sm:$0xf]
    %v3038 = vld [vmem:[%s3008 + $0x74] sm:$0xf]
    %v3039 = vld [vmem:[%s3008 + $0x78] sm:$0xf]
    %v3040 = vld [vmem:[%s3008 + $0x7c] sm:$0xf]
    %s3041 = scalar_lea.vmem %s17, 1
    %v3042 = vld [vmem:[%s3041] sm:$0x1]
    %v3044 = vlaneseq
    %v3045 = vshrl.u32 %v3044, 7
    %v3046 = vsub.s32 0, %v3045
    %v3047 = vrot.slane %v3042, %v3046
    %v3081 = vunpack.c.l.b16 %v3009
    %v3082 = vunpack.c.l.b16 %v3010
    %v3083 = vunpack.c.l.b16 %v3011
    %v3084 = vunpack.c.l.b16 %v3012
    %v3085 = vunpack.c.l.b16 %v3013
    %v3086 = vunpack.c.l.b16 %v3014
    %v3087 = vunpack.c.l.b16 %v3015
    %v3088 = vunpack.c.l.b16 %v3016
    %v3089 = vunpack.c.l.b16 %v3017
    %v3090 = vunpack.c.l.b16 %v3018
    %v3091 = vunpack.c.l.b16 %v3019
    %v3092 = vunpack.c.l.b16 %v3020
    %v3093 = vunpack.c.l.b16 %v3021
    %v3094 = vunpack.c.l.b16 %v3022
    %v3095 = vunpack.c.l.b16 %v3023
    %v3096 = vunpack.c.l.b16 %v3024
    %v3097 = vunpack.c.l.b16 %v3025
    %v3098 = vunpack.c.l.b16 %v3026
    %v3099 = vunpack.c.l.b16 %v3027
    %v3100 = vunpack.c.l.b16 %v3028
    %v3101 = vunpack.c.l.b16 %v3029
    %v3102 = vunpack.c.l.b16 %v3030
    %v3103 = vunpack.c.l.b16 %v3031
    %v3104 = vunpack.c.l.b16 %v3032
    %v3105 = vunpack.c.l.b16 %v3033
    %v3106 = vunpack.c.l.b16 %v3034
    %v3107 = vunpack.c.l.b16 %v3035
    %v3108 = vunpack.c.l.b16 %v3036
    %v3109 = vunpack.c.l.b16 %v3037
    %v3110 = vunpack.c.l.b16 %v3038
    %v3111 = vunpack.c.l.b16 %v3039
    %v3112 = vunpack.c.l.b16 %v3040
    %v3113 = vpack.c.b16 %v3082, %v3081
    %v3114 = vpack.c.b16 %v3084, %v3083
    %v3115 = vpack.c.b16 %v3086, %v3085
    %v3116 = vpack.c.b16 %v3088, %v3087
    %v3117 = vpack.c.b16 %v3090, %v3089
    %v3118 = vpack.c.b16 %v3092, %v3091
    %v3119 = vpack.c.b16 %v3094, %v3093
    %v3120 = vpack.c.b16 %v3096, %v3095
    %v3121 = vpack.c.b16 %v3098, %v3097
    %v3122 = vpack.c.b16 %v3100, %v3099
    %v3123 = vpack.c.b16 %v3102, %v3101
    %v3124 = vpack.c.b16 %v3104, %v3103
    %v3125 = vpack.c.b16 %v3106, %v3105
    %v3126 = vpack.c.b16 %v3108, %v3107
    %v3127 = vpack.c.b16 %v3110, %v3109
    %v3128 = vpack.c.b16 %v3112, %v3111
    %3145 = vmatprep.subr.bf16.mxu0 0
    %3146 = vmatpush1.bf16.msra.mxu0 %v3120
    %3147 = vmatprep.subr.bf16.mxu0 0
    %3148 = vmatpush1.bf16.msra.mxu0 %v3119
    %3149 = vmatprep.subr.bf16.mxu0 0
    %3150 = vmatpush1.bf16.msra.mxu0 %v3118
    %3151 = vmatprep.subr.bf16.mxu0 0
    %3152 = vmatpush1.bf16.msra.mxu0 %v3117
    %3153 = vmatprep.subr.bf16.mxu0 0
    %3154 = vmatpush1.bf16.msra.mxu0 %v3116
    %3155 = vmatprep.subr.bf16.mxu0 0
    %3156 = vmatpush1.bf16.msra.mxu0 %v3115
    %3157 = vmatprep.subr.bf16.mxu0 0
    %3158 = vmatpush1.bf16.msra.mxu0 %v3114
    %3159 = vmatprep.subr.bf16.mxu0 0
    %3160 = vmatpush1.bf16.msra.mxu0 %v3113
    %3161 = vmatprep.subr.bf16.mxu0 0
    %3162 = vmatpush2.bf16.msra.mxu0 %v3128
    %3163 = vmatprep.subr.bf16.mxu0 0
    %3164 = vmatpush2.bf16.msra.mxu0 %v3127
    %3165 = vmatprep.subr.bf16.mxu0 0
    %3166 = vmatpush2.bf16.msra.mxu0 %v3126
    %3167 = vmatprep.subr.bf16.mxu0 0
    %3168 = vmatpush2.bf16.msra.mxu0 %v3125
    %3169 = vmatprep.subr.bf16.mxu0 0
    %3170 = vmatpush2.bf16.msra.mxu0 %v3124
    %3171 = vmatprep.subr.bf16.mxu0 0
    %3172 = vmatpush2.bf16.msra.mxu0 %v3123
    %3173 = vmatprep.subr.bf16.mxu0 0
    %3174 = vmatpush2.bf16.msra.mxu0 %v3122
    %3175 = vmatprep.subr.bf16.mxu0 0
    %3176 = vmatpush2.bf16.msra.mxu0 %v3121
    %3177 = vmatprep.mubr.bf16.mxu0 %v3005
    %3178 = vmatmul.mubr.bf16.gmra.mxu0 %v3004
    %v3179 = vpop.f32.mrf.mxu0
    %v3180 = vadd.f32 %v3047, %v3179
    %v3181 = vpop.f32.mrf.mxu0
    %v3182 = vpop.f32.mrf.mxu0
    %v3183 = vpop.f32.mrf.mxu0
    %3184 = vmatprep.mubr.bf16.mxu0 %v3007
    %3185 = vmatmul.mubr.bf16.gmra.mxu0 %v3006
    %v3186 = vpop.f32.mrf.mxu0
    %v3187 = vadd.f32 %v3047, %v3186
    %v3188 = vpop.f32.mrf.mxu0
    %v3189 = vpop.f32.mrf.mxu0
    %v3190 = vpop.f32.mrf.mxu0
    %3191 = vdwg.mxu0
    %v3192 = vadd.f32 %v3180, %v2805
    %v3193 = vadd.f32 %v3187, %v2807
    %s3194 = scalar_lea.vmem %s18, 1
    %v3195 = vld [vmem:[%s3194] sm:$0x1]
    %s3196 = scalar_lea.vmem %s19, 1
    %v3197 = vld [vmem:[%s3196] sm:$0x1]
    %v3198 = vsel %vm315, %v3192, 0.0
    %3199 = vadd.xlane.f32.xlu0 %v3198
    %v3200 = vpop.xlane.xlu0 %3199
    %v3201 = vsel %vm315, %v3193, 0.0
    %3202 = vadd.xlane.f32.xlu0 %v3201
    %v3203 = vpop.xlane.xlu0 %3202
    %v3204 = vmul.f32 %v3200, %v328
    %v3205 = vmul.f32 %v3203, %v328
    %v3206 = vsub.f32 %v3192, %v3204
    %v3207 = vsub.f32 %v3193, %v3205
    %v3208 = vmul.f32 %v3206, %v3206
    %v3209 = vmul.f32 %v3207, %v3207
    %v3210 = vsel %vm315, %v3208, 0.0
    %3211 = vadd.xlane.f32.xlu0 %v3210
    %v3212 = vpop.xlane.xlu0 %3211
    %v3213 = vsel %vm315, %v3209, 0.0
    %3214 = vadd.xlane.f32.xlu0 %v3213
    %v3215 = vpop.xlane.xlu0 %3214
    %v3216 = vmul.f32 %v3212, %v328
    %v3217 = vmul.f32 %v3215, %v328
    %v3218 = vadd.f32 %v3216, 1e-12
    %v3219 = vadd.f32 %v3217, 1e-12
    %v3220 = vrsqrt.pop %v3218
    %v3221 = vrsqrt.pop %v3219
    %v3222 = vmul.f32 %v3206, %v3220
    %v3223 = vmul.f32 %v3207, %v3221
    %v3225 = vlaneseq
    %v3226 = vshrl.u32 %v3225, 7
    %v3227 = vsub.s32 0, %v3226
    %v3228 = vrot.slane %v3195, %v3227
    %v3230 = vmul.f32 %v3222, %v3228
    %v3231 = vmul.f32 %v3223, %v3228
    %v3233 = vlaneseq
    %v3234 = vshrl.u32 %v3233, 7
    %v3235 = vsub.s32 0, %v3234
    %v3236 = vrot.slane %v3197, %v3235
    %v3238 = vadd.f32 %v3230, %v3236
    %v3239 = vadd.f32 %v3231, %v3236
    %v3241 = vrot.slane %v3239, 7
    %vm3243 = vcmask 1040384
    %v3244 = vsel %vm3243, %v3238, %v3241
    %v3245 = vpack.c.bf16 %v3244, %v3244
    %v3246 = vld [vmem:[%s20] sm:$0xf]
    %v3247 = vld [vmem:[%s20 + $0x4] sm:$0xf]
    %v3248 = vld [vmem:[%s20 + $0x8] sm:$0xf]
    %v3249 = vld [vmem:[%s20 + $0xc] sm:$0xf]
    %v3250 = vld [vmem:[%s20 + $0x10] sm:$0xf]
    %v3251 = vld [vmem:[%s20 + $0x14] sm:$0xf]
    %v3252 = vld [vmem:[%s20 + $0x18] sm:$0xf]
    %v3253 = vld [vmem:[%s20 + $0x1c] sm:$0xf]
    %v3254 = vld [vmem:[%s21] sm:$0x1]
    %v3256 = vlaneseq
    %v3257 = vshrl.u32 %v3256, 7
    %v3258 = vsub.s32 0, %v3257
    %v3259 = vrot.slane %v3254, %v3258
    %v3269 = vunpack.c.l.b16 %v3246
    %v3270 = vunpack.c.l.b16 %v3247
    %v3271 = vunpack.c.l.b16 %v3248
    %v3272 = vunpack.c.l.b16 %v3249
    %v3273 = vunpack.c.l.b16 %v3250
    %v3274 = vunpack.c.l.b16 %v3251
    %v3275 = vunpack.c.l.b16 %v3252
    %v3276 = vunpack.c.l.b16 %v3253
    %v3277 = vpack.c.b16 %v3270, %v3269
    %v3278 = vpack.c.b16 %v3272, %v3271
    %v3279 = vpack.c.b16 %v3274, %v3273
    %v3280 = vpack.c.b16 %v3276, %v3275
    %v3286 = vsel %vm315, %v3245, 0
    %3288 = vmatprep.subr.bf16.mxu0 0
    %3289 = vmatpush1.bf16.msra.mxu0 0
    %3290 = vmatprep.subr.bf16.mxu0 0
    %3291 = vmatpush1.bf16.msra.mxu0 0
    %3292 = vmatprep.subr.bf16.mxu0 0
    %3293 = vmatpush1.bf16.msra.mxu0 0
    %3294 = vmatprep.subr.bf16.mxu0 0
    %3295 = vmatpush1.bf16.msra.mxu0 0
    %3296 = vmatprep.subr.bf16.mxu0 0
    %3297 = vmatpush1.bf16.msra.mxu0 %v3280
    %3298 = vmatprep.subr.bf16.mxu0 0
    %3299 = vmatpush1.bf16.msra.mxu0 %v3279
    %3300 = vmatprep.subr.bf16.mxu0 0
    %3301 = vmatpush1.bf16.msra.mxu0 %v3278
    %3302 = vmatprep.subr.bf16.mxu0 0
    %3303 = vmatpush1.bf16.msra.mxu0 %v3277
    %3304 = vmatprep.subr.bf16.mxu0 0
    %3305 = vmatpush2.bf16.msra.mxu0 0
    %3306 = vmatprep.subr.bf16.mxu0 0
    %3307 = vmatpush2.bf16.msra.mxu0 0
    %3308 = vmatprep.subr.bf16.mxu0 0
    %3309 = vmatpush2.bf16.msra.mxu0 0
    %3310 = vmatprep.subr.bf16.mxu0 0
    %3311 = vmatpush2.bf16.msra.mxu0 0
    %3312 = vmatprep.subr.bf16.mxu0 0
    %3313 = vmatpush2.bf16.msra.mxu0 0
    %3314 = vmatprep.subr.bf16.mxu0 0
    %3315 = vmatpush2.bf16.msra.mxu0 0
    %3316 = vmatprep.subr.bf16.mxu0 0
    %3317 = vmatpush2.bf16.msra.mxu0 0
    %3318 = vmatprep.subr.bf16.mxu0 0
    %3319 = vmatpush2.bf16.msra.mxu0 0
    %3320 = vmatprep.mubr.bf16.mxu0 0
    %3321 = vmatmul.mubr.bf16.gmra.mxu0 %v3286
    %v3322 = vpop.f32.mrf.mxu0
    %v3323 = vadd.f32 %v3259, %v3322
    %v3324 = vpop.f32.mrf.mxu0
    %v3325 = vpop.f32.mrf.mxu0
    %v3326 = vpop.f32.mrf.mxu0
    %3327 = vdwg.mxu0
    %v3328 = vtanh.pop %v3323
    %v3329 = vpack.c.bf16 %v3328, %v3328
    %v3330 = vld [vmem:[%s22] sm:$0xf]
    %v3331 = vld [vmem:[%s22 + $0x4] sm:$0xf]
    %v3332 = vld [vmem:[%s22 + $0x8] sm:$0xf]
    %v3333 = vld [vmem:[%s22 + $0xc] sm:$0xf]
    %v3334 = vld [vmem:[%s22 + $0x10] sm:$0xf]
    %v3335 = vld [vmem:[%s22 + $0x14] sm:$0xf]
    %v3336 = vld [vmem:[%s22 + $0x18] sm:$0xf]
    %v3337 = vld [vmem:[%s22 + $0x1c] sm:$0xf]
    %v3338 = vld [vmem:[%s23] sm:$0x1]
    %v3340 = vlaneseq
    %v3341 = vshrl.u32 %v3340, 7
    %v3342 = vsub.s32 0, %v3341
    %v3343 = vrot.slane %v3338, %v3342
    %v3353 = vunpack.c.l.b16 %v3330
    %v3354 = vunpack.c.l.b16 %v3331
    %v3355 = vunpack.c.l.b16 %v3332
    %v3356 = vunpack.c.l.b16 %v3333
    %v3357 = vunpack.c.l.b16 %v3334
    %v3358 = vunpack.c.l.b16 %v3335
    %v3359 = vunpack.c.l.b16 %v3336
    %v3360 = vunpack.c.l.b16 %v3337
    %v3361 = vpack.c.b16 %v3354, %v3353
    %v3362 = vpack.c.b16 %v3356, %v3355
    %v3363 = vpack.c.b16 %v3358, %v3357
    %v3364 = vpack.c.b16 %v3360, %v3359
    %v3370 = vsel %vm315, %v3329, 0
    %3372 = vmatprep.subr.bf16.mxu0 0
    %3373 = vmatpush1.bf16.msra.mxu0 0
    %3374 = vmatprep.subr.bf16.mxu0 0
    %3375 = vmatpush1.bf16.msra.mxu0 0
    %3376 = vmatprep.subr.bf16.mxu0 0
    %3377 = vmatpush1.bf16.msra.mxu0 0
    %3378 = vmatprep.subr.bf16.mxu0 0
    %3379 = vmatpush1.bf16.msra.mxu0 0
    %3380 = vmatprep.subr.bf16.mxu0 0
    %3381 = vmatpush1.bf16.msra.mxu0 %v3364
    %3382 = vmatprep.subr.bf16.mxu0 0
    %3383 = vmatpush1.bf16.msra.mxu0 %v3363
    %3384 = vmatprep.subr.bf16.mxu0 0
    %3385 = vmatpush1.bf16.msra.mxu0 %v3362
    %3386 = vmatprep.subr.bf16.mxu0 0
    %3387 = vmatpush1.bf16.msra.mxu0 %v3361
    %3388 = vmatprep.subr.bf16.mxu0 0
    %3389 = vmatpush2.bf16.msra.mxu0 0
    %3390 = vmatprep.subr.bf16.mxu0 0
    %3391 = vmatpush2.bf16.msra.mxu0 0
    %3392 = vmatprep.subr.bf16.mxu0 0
    %3393 = vmatpush2.bf16.msra.mxu0 0
    %3394 = vmatprep.subr.bf16.mxu0 0
    %3395 = vmatpush2.bf16.msra.mxu0 0
    %3396 = vmatprep.subr.bf16.mxu0 0
    %3397 = vmatpush2.bf16.msra.mxu0 0
    %3398 = vmatprep.subr.bf16.mxu0 0
    %3399 = vmatpush2.bf16.msra.mxu0 0
    %3400 = vmatprep.subr.bf16.mxu0 0
    %3401 = vmatpush2.bf16.msra.mxu0 0
    %3402 = vmatprep.subr.bf16.mxu0 0
    %3403 = vmatpush2.bf16.msra.mxu0 0
    %3404 = vmatprep.mubr.bf16.mxu0 0
    %3405 = vmatmul.mubr.bf16.gmra.mxu0 %v3370
    %v3406 = vpop.f32.mrf.mxu0
    %v3407 = vadd.f32 %v3343, %v3406
    %v3408 = vpop.f32.mrf.mxu0
    %v3409 = vpop.f32.mrf.mxu0
    %v3410 = vpop.f32.mrf.mxu0
    %3411 = vdwg.mxu0
    %vm3412 = vcmp.ge.f32.partialorder %v3407, 0.0
    %v3413 = vsub.f32 0.0, %v3407
    %v3414 = vmul.f32 %v3413, 1.442695
    %v3415 = vpow.pop %v3414
    %v3416 = vadd.f32 %v3415, 1.0
    %v3417 = vrcp.pop %v3416
    %v3418 = vmul.f32 1.0, %v3417
    %v3419 = vmul.f32 %v3407, 1.442695
    %v3420 = vpow.pop %v3419
    %v3421 = vadd.f32 %v3420, 1.0
    %v3422 = vrcp.pop %v3421
    %v3423 = vmul.f32 %v3420, %v3422
    %v3424 = vsel %vm3412, %v3418, %v3423
    %3425 = vst [vmem:[#allocation2] sm:$0x3] %v3424
    // Predicated region
    $region98: #{tpu_custom_call.1} parent=1 // pred_check
      _
    $region99: #{tpu_custom_call.1} parent=1 // pred_check_branch
      %3427 = sbr.rel (0) target = $region101
    $region100: #{tpu_custom_call.1} parent=1 // pred_region
      %s3429 = ssub.s32 32, 32
      %3430 = vsyncadd [#allocation3], %s3429
      %s3432 = sshll.u32 [#allocation2], 4
      %s3433 = int_to_ptr.vmem [resolvable:$true] %s3432
      %3435 = dma.vmem_to_hbm [thread:$0]  %s3433, 32, %s24, [#allocation3]
    $region101: #{tpu_custom_call.1} parent=1 // pred_fallthru
      _
    // Predicated region
    $region102: #{tpu_custom_call.1} parent=1 // pred_check
      _
    $region103: #{tpu_custom_call.1} parent=1 // pred_check_branch
      %3437 = sbr.rel (0) target = $region105
    $region104: #{tpu_custom_call.1} parent=1 // pred_region
      %3438 = dma.done [#allocation3], 32
    $region105: #{tpu_custom_call.1} parent=1 // pred_fallthru
      _
    %3439 = vsyncpa [#allocation3], 1

</llo_original>
